<compile_context>
chip_gen: v6e
topology: v6e:2x2x1
jax: 0.10.0
libtpu: 0.0.40
codegen_flags: <defaults>
</compile_context>

<pallas_src>
import math

import jax
import jax.numpy as jnp
from jax import lax
from jax.experimental import pallas as pl
from jax.experimental.pallas import tpu as pltpu


# ----------------------------- shared math helpers -----------------------------
def _sigmoid(x):
    return 1.0 / (1.0 + jnp.exp(-x))


def _silu(x):
    return x * _sigmoid(x)


def _softplus(x):
    # numerically stable softplus; mirrors F.softplus threshold behaviour
    safe = jnp.where(x > 20.0, 0.0, x)
    return jnp.where(x > 20.0, x, jnp.log(1.0 + jnp.exp(safe)))


# --------------------------------- Pallas kernel --------------------------------
def mamba_kernel(h_ref, w_in_ref, conv_w_ref, conv_b_ref, w_xp_ref, w_dt_ref,
                 dt_bias_ref, neg_a_T_ref, d_ref, w_out_ref,
                 out_ref,
                 xpad_scr, state_scr, dt_scr, du_scr, b_scr, c_scr, y_scr):
    c = pl.program_id(1)                                # L-chunk index
    TL = h_ref.shape[1]                                 # timesteps per chunk
    d_conv, d_inner = conv_w_ref.shape
    d_state = neg_a_T_ref.shape[0]
    dt_rank = w_dt_ref.shape[1]

    # ---- in_proj (no bias): bf16 MXU matmul, f32 accumulation
    h = h_ref[0].astype(jnp.bfloat16)                   # (TL, d_model)
    xz = lax.dot_general(h, w_in_ref[...],
                         (((1,), (1,)), ((), ())),
                         preferred_element_type=jnp.float32)   # (TL, 2*d_inner)
    x = xz[:, :d_inner]                                 # (TL, d_inner)
    z = xz[:, d_inner:]                                 # (TL, d_inner)

    # ---- conv / SSM state handling across L-chunks (persistent VMEM scratch)
    @pl.when(c == 0)
    def _init():
        xpad_scr[pl.ds(0, d_conv - 1), :] = jnp.zeros((d_conv - 1, d_inner),
                                                      jnp.float32)
        state_scr[...] = jnp.zeros_like(state_scr)

    @pl.when(c > 0)
    def _carry():
        # last (d_conv-1) rows of previous chunk's x become this chunk's left pad
        xpad_scr[pl.ds(0, d_conv - 1), :] = xpad_scr[pl.ds(TL, d_conv - 1), :]

    xpad_scr[pl.ds(d_conv - 1, TL), :] = x

    # ---- causal depthwise conv1d + bias + SiLU (taps = shifted ref reads)
    xc = xpad_scr[pl.ds(0, TL), :] * conv_w_ref[0:1, :]
    for k in range(1, d_conv):                          # d_conv is tiny
        xc = xc + xpad_scr[pl.ds(k, TL), :] * conv_w_ref[k:k + 1, :]
    xc = _silu(xc + conv_b_ref[...])

    # ---- x_proj: bf16 MXU matmul -> (TL, dt_rank + 2*d_state)
    x_dbl = lax.dot_general(xc.astype(jnp.bfloat16), w_xp_ref[...],
                            (((1,), (1,)), ((), ())),
                            preferred_element_type=jnp.float32)
    dt_in = x_dbl[:, :dt_rank]                          # (TL, dt_rank)
    Bmat = x_dbl[:, dt_rank:dt_rank + d_state]          # (TL, d_state)
    Cmat = x_dbl[:, dt_rank + d_state:]                 # (TL, d_state)

    # ---- dt_proj (weight only) + softplus(dt + dt_bias)
    dt = lax.dot_general(dt_in.astype(jnp.bfloat16), w_dt_ref[...],
                         (((1,), (1,)), ((), ())),
                         preferred_element_type=jnp.float32)   # (TL, d_inner)
    dt = _softplus(dt + dt_bias_ref[...])

    neg_A_T = neg_a_T_ref[...]                          # (d_state, d_inner) == (-exp(A_log)).T

    # stash per-timestep scan operands; the serial loop only does ref row reads
    dt_scr[...] = dt
    du_scr[...] = dt * xc
    b_scr[...] = Bmat
    c_scr[...] = Cmat

    def step(t, state):                                 # state: (d_state, d_inner), f32
        dt_t = dt_scr[pl.ds(t, 1), :]                   # (1, d_inner)
        du_t = du_scr[pl.ds(t, 1), :]                   # (1, d_inner)
        B_t = b_scr[pl.ds(t, 1), :]                     # (1, d_state)
        C_t = c_scr[pl.ds(t, 1), :]                     # (1, d_state)
        dA = jnp.exp(dt_t * neg_A_T)                    # (d_state, d_inner)
        dBu = lax.dot_general(B_t, du_t,                # rank-1 outer product
                              (((0,), (0,)), ((), ())),
                              preferred_element_type=jnp.float32)
        state = state * dA + dBu
        y_t = lax.dot_general(C_t, state,               # (1, d_inner)
                              (((1,), (0,)), ((), ())),
                              preferred_element_type=jnp.float32)
        y_scr[pl.ds(t, 1), :] = y_t
        return state

    # fully unrolled: only the state carry is serial; exp / matmuls of adjacent
    # steps overlap.  Skip (D*x) and gate (silu(z)) are hoisted below.
    state = lax.fori_loop(0, TL, step, state_scr[...], unroll=True)
    state_scr[...] = state

    # ---- skip + gate (batched, off the serial chain), then out_proj (bf16 MXU)
    y = (y_scr[...] + d_ref[...] * xc) * _silu(z)
    out = lax.dot_general(y.astype(jnp.bfloat16), w_out_ref[...],
                          (((1,), (1,)), ((), ())),
                          preferred_element_type=jnp.float32)  # (TL, d_model)
    out_ref[0] = out


# ----------------------------------- wrapper ------------------------------------
def mamba_pallas(h, params, *, chunk=8):
    (W_in, conv_wT, conv_b, W_xp, W_dt, dt_bias, A_log, D, W_out) = params
    B, L, d_model = h.shape
    d_conv, d_inner = conv_wT.shape
    d_state = A_log.shape[1]
    dt_rank = W_dt.shape[1]

    TL = min(chunk, L)
    assert L % TL == 0, "seq length must be a multiple of the L-chunk size"
    assert TL >= d_conv - 1, "chunk must cover the conv receptive-field carry"
    NC = L // TL

    # bf16 weights for the MXU projections (f32 accumulation happens in-kernel)
    W_in_b = W_in.astype(jnp.bfloat16)
    W_xp_b = W_xp.astype(jnp.bfloat16)
    W_dt_b = W_dt.astype(jnp.bfloat16)
    W_out_b = W_out.astype(jnp.bfloat16)

    conv_b2 = conv_b.reshape(1, d_inner)
    dt_bias2 = dt_bias.reshape(1, d_inner)
    D2 = D.reshape(1, d_inner)
    neg_A_T = (-jnp.exp(A_log)).T                       # (d_state, d_inner), f32

    def full2(shape):
        return pl.BlockSpec(shape, lambda b, c: (0, 0))

    in_specs = [
        pl.BlockSpec((1, TL, d_model), lambda b, c: (b, c, 0)),   # hidden_states
        full2(W_in_b.shape),
        full2(conv_wT.shape),
        full2(conv_b2.shape),
        full2(W_xp_b.shape),
        full2(W_dt_b.shape),
        full2(dt_bias2.shape),
        full2(neg_A_T.shape),
        full2(D2.shape),
        full2(W_out_b.shape),
    ]
    out_specs = pl.BlockSpec((1, TL, d_model), lambda b, c: (b, c, 0))

    scratch = [
        pltpu.VMEM((TL + d_conv - 1, d_inner), jnp.float32),  # padded conv input (tail carried)
        pltpu.VMEM((d_state, d_inner), jnp.float32),          # SSM state (carried across chunks)
        pltpu.VMEM((TL, d_inner), jnp.float32),               # dt
        pltpu.VMEM((TL, d_inner), jnp.float32),               # du = dt * x
        pltpu.VMEM((TL, d_state), jnp.float32),               # B
        pltpu.VMEM((TL, d_state), jnp.float32),               # C
        pltpu.VMEM((TL, d_inner), jnp.float32),               # y
    ]

    # advisory cost estimate for the XLA scheduler
    mm_flops = 2 * B * L * (d_model * 2 * d_inner
                            + d_inner * (dt_rank + 2 * d_state)
                            + dt_rank * d_inner
                            + d_inner * d_model)
    conv_flops = 2 * B * L * d_conv * d_inner
    scan_flops = 6 * B * L * d_state * d_inner
    transcendentals = B * L * (d_state * d_inner + 4 * d_inner)
    bytes_accessed = (int(h.size) * 4 + B * L * d_model * 4
                      + 2 * int(W_in_b.size + W_xp_b.size + W_dt_b.size + W_out_b.size)
                      + 4 * int(conv_wT.size + conv_b.size + dt_bias.size
                                + A_log.size + D.size))
    cost = pl.CostEstimate(flops=int(mm_flops + conv_flops + scan_flops),
                           transcendentals=int(transcendentals),
                           bytes_accessed=int(bytes_accessed))

    return pl.pallas_call(
        mamba_kernel,
        out_shape=jax.ShapeDtypeStruct((B, L, d_model), jnp.float32),
        grid_spec=pltpu.PrefetchScalarGridSpec(
            num_scalar_prefetch=0,
            grid=(B, NC),
            in_specs=in_specs,
            out_specs=out_specs,
            scratch_shapes=scratch),
        compiler_params=pltpu.CompilerParams(
            dimension_semantics=("parallel", "arbitrary")),
        cost_estimate=cost,
    )(h, W_in_b, conv_wT, conv_b2, W_xp_b, W_dt_b, dt_bias2, neg_A_T, D2, W_out_b)


# ------------------------------ pure-JAX reference -------------------------------
def mamba_ref(h, params):
    (W_in, conv_wT, conv_b, W_xp, W_dt, dt_bias, A_log, D, W_out) = params
    B, L, d_model = h.shape
    d_conv, d_inner = conv_wT.shape
    d_state = A_log.shape[1]
    dt_rank = W_dt.shape[1]
    bf = jnp.bfloat16

    xz = jnp.einsum('bld,ed->ble', h.astype(bf), W_in.astype(bf),
                    preferred_element_type=jnp.float32)
    x, z = xz[..., :d_inner], xz[..., d_inner:]

    xp = jnp.pad(x, ((0, 0), (d_conv - 1, 0), (0, 0)))
    xc = jnp.zeros_like(x)
    for k in range(d_conv):
        xc = xc + xp[:, k:k + L, :] * conv_wT[k][None, None, :]
    xc = _silu(xc + conv_b[None, None, :])

    x_dbl = jnp.einsum('bld,ed->ble', xc.astype(bf), W_xp.astype(bf),
                       preferred_element_type=jnp.float32)
    dt_in = x_dbl[..., :dt_rank]
    Bm = x_dbl[..., dt_rank:dt_rank + d_state]
    Cm = x_dbl[..., dt_rank + d_state:]
    dt = _softplus(jnp.einsum('blr,dr->bld', dt_in.astype(bf), W_dt.astype(bf),
                              preferred_element_type=jnp.float32)
                   + dt_bias[None, None, :])
    A = -jnp.exp(A_log)                                  # (d_inner, d_state)

    def step(state, ins):
        dt_t, x_t, B_t, C_t = ins
        dA = jnp.exp(dt_t[..., None] * A[None])
        dBu = dt_t[..., None] * B_t[:, None, :] * x_t[..., None]
        state = state * dA + dBu
        y_t = jnp.einsum('bdn,bn->bd', state, C_t)
        return state, y_t

    state0 = jnp.zeros((B, d_inner, d_state), jnp.float32)
    _, ys = lax.scan(step, state0,
                     (dt.swapaxes(0, 1), xc.swapaxes(0, 1),
                      Bm.swapaxes(0, 1), Cm.swapaxes(0, 1)))
    y = ys.swapaxes(0, 1)
    y = y + xc * D[None, None, :]
    y = y * _silu(z)
    return jnp.einsum('bld,md->blm', y.astype(bf), W_out.astype(bf),
                      preferred_element_type=jnp.float32)


# ------------------------------- param initialization ----------------------------
def init_params(key, d_model, d_state=16, d_conv=4, expand=2,
                dt_min=1e-3, dt_max=1e-1, dt_init_floor=1e-4):
    d_inner = int(expand * d_model)
    dt_rank = math.ceil(d_model / 16)
    ks = jax.random.split(key, 7)

    def unif(k, shape, lim):
        return jax.random.uniform(k, shape, jnp.float32, -lim, lim)

    W_in = unif(ks[0], (2 * d_inner, d_model), 1.0 / math.sqrt(d_model))
    # depthwise conv weight (d_inner, 1, d_conv) stored transposed as (d_conv, d_inner)
    conv_wT = unif(ks[1], (d_conv, d_inner), 1.0 / math.sqrt(d_conv))
    conv_b = unif(ks[2], (d_inner,), 1.0 / math.sqrt(d_conv))
    W_xp = unif(ks[3], (dt_rank + 2 * d_state, d_inner), 1.0 / math.sqrt(d_inner))
    dt_init_std = dt_rank ** (-0.5)
    W_dt = unif(ks[4], (d_inner, dt_rank), dt_init_std)
    dtv = jnp.exp(jax.random.uniform(ks[5], (d_inner,), jnp.float32) *
                  (math.log(dt_max) - math.log(dt_min)) + math.log(dt_min))
    dtv = jnp.maximum(dtv, dt_init_floor)
    dt_bias = dtv + jnp.log(-jnp.expm1(-dtv))            # inverse-softplus init
    A_log = jnp.log(jnp.broadcast_to(
        jnp.arange(1, d_state + 1, dtype=jnp.float32), (d_inner, d_state)))
    D = jnp.ones((d_inner,), jnp.float32)
    W_out = unif(ks[6], (d_model, d_inner), 1.0 / math.sqrt(d_inner))
    return (W_in, conv_wT, conv_b, W_xp, W_dt, dt_bias, A_log, D, W_out)


# ------------------------------------- main --------------------------------------
if __name__ == "__main__":
    # lane-friendly small config: d_model=128 -> d_inner=256, dt_rank=8
    d_model, d_state, d_conv, expand = 128, 16, 4, 2
    B, L = 2, 16

    key = jax.random.PRNGKey(0)
    k_h, k_p = jax.random.split(key)
    params = init_params(k_p, d_model, d_state, d_conv, expand)
    h = jax.random.normal(k_h, (B, L, d_model), jnp.float32)

    out = mamba_pallas(h, params, chunk=8)
    out = jax.block_until_ready(out)

    ref = jax.block_until_ready(mamba_ref(h, params))
    assert out.shape == (B, L, d_model)
    if not jnp.allclose(out, ref, atol=1e-2, rtol=1e-2):
        raise AssertionError(
            f"mismatch: max abs diff = {float(jnp.max(jnp.abs(out - ref)))}")
    print("KERNEL_OK")
</pallas_src>

<mosaic_0001>
module attributes {stable_mosaic.version = 11 : i64} {
  func.func @mamba_kernel(%arg0: i32, %arg1: i32, %arg2: memref<1x8x128xf32, #tpu.memory_space<vmem>>, %arg3: memref<512x128xbf16, #tpu.memory_space<vmem>>, %arg4: memref<4x256xf32, #tpu.memory_space<vmem>>, %arg5: memref<1x256xf32, #tpu.memory_space<vmem>>, %arg6: memref<40x256xbf16, #tpu.memory_space<vmem>>, %arg7: memref<256x8xbf16, #tpu.memory_space<vmem>>, %arg8: memref<1x256xf32, #tpu.memory_space<vmem>>, %arg9: memref<16x256xf32, #tpu.memory_space<vmem>>, %arg10: memref<1x256xf32, #tpu.memory_space<vmem>>, %arg11: memref<128x256xbf16, #tpu.memory_space<vmem>>, %arg12: memref<1x8x128xf32, #tpu.memory_space<vmem>>, %arg13: memref<11x256xf32, #tpu.memory_space<vmem>>, %arg14: memref<16x256xf32, #tpu.memory_space<vmem>>, %arg15: memref<8x256xf32, #tpu.memory_space<vmem>>, %arg16: memref<8x256xf32, #tpu.memory_space<vmem>>, %arg17: memref<8x16xf32, #tpu.memory_space<vmem>>, %arg18: memref<8x16xf32, #tpu.memory_space<vmem>>, %arg19: memref<8x256xf32, #tpu.memory_space<vmem>>) attributes {dimension_semantics = [#tpu.dimension_semantics<parallel>, #tpu.dimension_semantics<arbitrary>], iteration_bounds = array<i64: 2, 2>, scalar_prefetch = 0 : i64, scratch_operands = 7 : i64, tpu.core_type = #tpu.core_type<tc>, window_params = [{transform_indices = @transform_0, window_bounds = array<i64: 1, 8, 128>}, {pipeline_mode = #tpu.pipeline_mode<synchronous>, transform_indices = @transform_1, window_bounds = array<i64: 512, 128>}, {pipeline_mode = #tpu.pipeline_mode<synchronous>, transform_indices = @transform_2, window_bounds = array<i64: 4, 256>}, {pipeline_mode = #tpu.pipeline_mode<synchronous>, transform_indices = @transform_3, window_bounds = array<i64: 1, 256>}, {pipeline_mode = #tpu.pipeline_mode<synchronous>, transform_indices = @transform_4, window_bounds = array<i64: 40, 256>}, {pipeline_mode = #tpu.pipeline_mode<synchronous>, transform_indices = @transform_5, window_bounds = array<i64: 256, 8>}, {pipeline_mode = #tpu.pipeline_mode<synchronous>, transform_indices = @transform_6, window_bounds = array<i64: 1, 256>}, {pipeline_mode = #tpu.pipeline_mode<synchronous>, transform_indices = @transform_7, window_bounds = array<i64: 16, 256>}, {pipeline_mode = #tpu.pipeline_mode<synchronous>, transform_indices = @transform_8, window_bounds = array<i64: 1, 256>}, {pipeline_mode = #tpu.pipeline_mode<synchronous>, transform_indices = @transform_9, window_bounds = array<i64: 128, 256>}, {transform_indices = @transform_10, window_bounds = array<i64: 1, 8, 128>}]} {
    %c0 = arith.constant 0 : index
    %c0_0 = arith.constant 0 : index
    %c0_1 = arith.constant 0 : index
    %0 = vector.load %arg2[%c0, %c0_0, %c0_1] : memref<1x8x128xf32, #tpu.memory_space<vmem>>, vector<1x8x128xf32>
    %1 = vector.shape_cast %0 : vector<1x8x128xf32> to vector<8x128xf32>
    %2 = arith.truncf %1 : vector<8x128xf32> to vector<8x128xbf16>
    %c0_2 = arith.constant 0 : index
    %c0_3 = arith.constant 0 : index
    %3 = vector.load %arg3[%c0_2, %c0_3] : memref<512x128xbf16, #tpu.memory_space<vmem>>, vector<512x128xbf16>
    %cst = arith.constant dense<0.000000e+00> : vector<8x512xf32>
    %4 = tpu.matmul %2, %3, %cst {dimension_numbers = #tpu.dot_dimension_numbers<[1], [1], [0], [0], [0, 0, 1, 0], [], []>} : vector<8x128xbf16>, vector<512x128xbf16>, vector<8x512xf32> -> vector<8x512xf32>
    %5 = vector.extract_strided_slice %4 {offsets = [0, 0], sizes = [8, 256], strides = [1, 1]} : vector<8x512xf32> to vector<8x256xf32>
    %6 = vector.extract_strided_slice %4 {offsets = [0, 256], sizes = [8, 256], strides = [1, 1]} : vector<8x512xf32> to vector<8x256xf32>
    %c0_i32 = arith.constant 0 : i32
    %7 = arith.cmpi eq, %arg1, %c0_i32 : i32
    %8 = arith.extui %7 : i1 to i32
    %c0_i32_4 = arith.constant 0 : i32
    %9 = arith.cmpi ne, %8, %c0_i32_4 : i32
    scf.if %9 {
      %cst_123 = arith.constant 0.000000e+00 : f32
      %231 = vector.broadcast %cst_123 : f32 to vector<3x256xf32>
      %c0_124 = arith.constant 0 : index
      %c0_125 = arith.constant 0 : index
      %232 = vector.load %arg13[%c0_124, %c0_125] : memref<11x256xf32, #tpu.memory_space<vmem>>, vector<3x256xf32>
      tpu.vector_store %arg13[%c0_124, %c0_125], %231 {strides = array<i32>} : memref<11x256xf32, #tpu.memory_space<vmem>>, vector<3x256xf32>,
      %cst_126 = arith.constant 0.000000e+00 : f32
      %233 = vector.broadcast %cst_126 : f32 to vector<16x256xf32>
      %c0_127 = arith.constant 0 : index
      %c0_128 = arith.constant 0 : index
      %234 = vector.load %arg14[%c0_127, %c0_128] : memref<16x256xf32, #tpu.memory_space<vmem>>, vector<16x256xf32>
      tpu.vector_store %arg14[%c0_127, %c0_128], %233 {strides = array<i32>} : memref<16x256xf32, #tpu.memory_space<vmem>>, vector<16x256xf32>,
    } else {
    }
    %c0_i32_5 = arith.constant 0 : i32
    %10 = arith.cmpi sgt, %arg1, %c0_i32_5 : i32
    %11 = arith.extui %10 : i1 to i32
    %c0_i32_6 = arith.constant 0 : i32
    %12 = arith.cmpi ne, %11, %c0_i32_6 : i32
    scf.if %12 {
      %c8 = arith.constant 8 : index
      %c0_123 = arith.constant 0 : index
      %231 = vector.load %arg13[%c8, %c0_123] : memref<11x256xf32, #tpu.memory_space<vmem>>, vector<3x256xf32>
      %c0_124 = arith.constant 0 : index
      %c0_125 = arith.constant 0 : index
      %232 = vector.load %arg13[%c0_124, %c0_125] : memref<11x256xf32, #tpu.memory_space<vmem>>, vector<3x256xf32>
      tpu.vector_store %arg13[%c0_124, %c0_125], %231 {strides = array<i32>} : memref<11x256xf32, #tpu.memory_space<vmem>>, vector<3x256xf32>,
    } else {
    }
    %c3 = arith.constant 3 : index
    %c0_7 = arith.constant 0 : index
    %13 = vector.load %arg13[%c3, %c0_7] : memref<11x256xf32, #tpu.memory_space<vmem>>, vector<8x256xf32>
    tpu.vector_store %arg13[%c3, %c0_7], %5 {strides = array<i32>} : memref<11x256xf32, #tpu.memory_space<vmem>>, vector<8x256xf32>,
    %c0_8 = arith.constant 0 : index
    %c0_9 = arith.constant 0 : index
    %14 = vector.load %arg13[%c0_8, %c0_9] : memref<11x256xf32, #tpu.memory_space<vmem>>, vector<8x256xf32>
    %c0_10 = arith.constant 0 : index
    %c0_11 = arith.constant 0 : index
    %15 = vector.load %arg4[%c0_10, %c0_11] : memref<4x256xf32, #tpu.memory_space<vmem>>, vector<1x256xf32>
    %16 = vector.broadcast %15 : vector<1x256xf32> to vector<8x256xf32>
    %17 = arith.mulf %14, %16 : vector<8x256xf32>
    %c1 = arith.constant 1 : index
    %c0_12 = arith.constant 0 : index
    %18 = vector.load %arg13[%c1, %c0_12] : memref<11x256xf32, #tpu.memory_space<vmem>>, vector<8x256xf32>
    %c1_13 = arith.constant 1 : index
    %c0_14 = arith.constant 0 : index
    %19 = vector.load %arg4[%c1_13, %c0_14] : memref<4x256xf32, #tpu.memory_space<vmem>>, vector<1x256xf32>
    %20 = vector.broadcast %19 : vector<1x256xf32> to vector<8x256xf32>
    %21 = arith.mulf %18, %20 : vector<8x256xf32>
    %22 = arith.addf %17, %21 : vector<8x256xf32>
    %c2 = arith.constant 2 : index
    %c0_15 = arith.constant 0 : index
    %23 = vector.load %arg13[%c2, %c0_15] : memref<11x256xf32, #tpu.memory_space<vmem>>, vector<8x256xf32>
    %c2_16 = arith.constant 2 : index
    %c0_17 = arith.constant 0 : index
    %24 = vector.load %arg4[%c2_16, %c0_17] : memref<4x256xf32, #tpu.memory_space<vmem>>, vector<1x256xf32>
    %25 = vector.broadcast %24 : vector<1x256xf32> to vector<8x256xf32>
    %26 = arith.mulf %23, %25 : vector<8x256xf32>
    %27 = arith.addf %22, %26 : vector<8x256xf32>
    %c3_18 = arith.constant 3 : index
    %c0_19 = arith.constant 0 : index
    %28 = vector.load %arg13[%c3_18, %c0_19] : memref<11x256xf32, #tpu.memory_space<vmem>>, vector<8x256xf32>
    %c3_20 = arith.constant 3 : index
    %c0_21 = arith.constant 0 : index
    %29 = vector.load %arg4[%c3_20, %c0_21] : memref<4x256xf32, #tpu.memory_space<vmem>>, vector<1x256xf32>
    %30 = vector.broadcast %29 : vector<1x256xf32> to vector<8x256xf32>
    %31 = arith.mulf %28, %30 : vector<8x256xf32>
    %32 = arith.addf %27, %31 : vector<8x256xf32>
    %c0_22 = arith.constant 0 : index
    %c0_23 = arith.constant 0 : index
    %33 = vector.load %arg5[%c0_22, %c0_23] : memref<1x256xf32, #tpu.memory_space<vmem>>, vector<1x256xf32>
    %34 = vector.broadcast %33 : vector<1x256xf32> to vector<8x256xf32>
    %35 = arith.addf %32, %34 : vector<8x256xf32>
    %cst_24 = arith.constant 0.000000e+00 : f32
    %36 = vector.broadcast %cst_24 : f32 to vector<8x256xf32>
    %37 = arith.subf %36, %35 : vector<8x256xf32>
    %38 = math.exp %37 : vector<8x256xf32>
    %cst_25 = arith.constant 1.000000e+00 : f32
    %39 = vector.broadcast %cst_25 : f32 to vector<8x256xf32>
    %40 = arith.addf %39, %38 : vector<8x256xf32>
    %cst_26 = arith.constant 1.000000e+00 : f32
    %41 = vector.broadcast %cst_26 : f32 to vector<8x256xf32>
    %42 = arith.divf %41, %40 : vector<8x256xf32>
    %43 = arith.mulf %35, %42 : vector<8x256xf32>
    %44 = arith.truncf %43 : vector<8x256xf32> to vector<8x256xbf16>
    %c0_27 = arith.constant 0 : index
    %c0_28 = arith.constant 0 : index
    %45 = vector.load %arg6[%c0_27, %c0_28] : memref<40x256xbf16, #tpu.memory_space<vmem>>, vector<40x256xbf16>
    %cst_29 = arith.constant dense<0.000000e+00> : vector<8x40xf32>
    %46 = tpu.matmul %44, %45, %cst_29 {dimension_numbers = #tpu.dot_dimension_numbers<[1], [1], [0], [0], [0, 0, 1, 0], [], []>} : vector<8x256xbf16>, vector<40x256xbf16>, vector<8x40xf32> -> vector<8x40xf32>
    %47 = vector.extract_strided_slice %46 {offsets = [0, 0], sizes = [8, 8], strides = [1, 1]} : vector<8x40xf32> to vector<8x8xf32>
    %48 = vector.extract_strided_slice %46 {offsets = [0, 8], sizes = [8, 16], strides = [1, 1]} : vector<8x40xf32> to vector<8x16xf32>
    %49 = vector.extract_strided_slice %46 {offsets = [0, 24], sizes = [8, 16], strides = [1, 1]} : vector<8x40xf32> to vector<8x16xf32>
    %50 = arith.truncf %47 : vector<8x8xf32> to vector<8x8xbf16>
    %c0_30 = arith.constant 0 : index
    %c0_31 = arith.constant 0 : index
    %51 = vector.load %arg7[%c0_30, %c0_31] : memref<256x8xbf16, #tpu.memory_space<vmem>>, vector<256x8xbf16>
    %cst_32 = arith.constant dense<0.000000e+00> : vector<8x256xf32>
    %52 = tpu.matmul %50, %51, %cst_32 {dimension_numbers = #tpu.dot_dimension_numbers<[1], [1], [0], [0], [0, 0, 1, 0], [], []>} : vector<8x8xbf16>, vector<256x8xbf16>, vector<8x256xf32> -> vector<8x256xf32>
    %c0_33 = arith.constant 0 : index
    %c0_34 = arith.constant 0 : index
    %53 = vector.load %arg8[%c0_33, %c0_34] : memref<1x256xf32, #tpu.memory_space<vmem>>, vector<1x256xf32>
    %54 = vector.broadcast %53 : vector<1x256xf32> to vector<8x256xf32>
    %55 = arith.addf %52, %54 : vector<8x256xf32>
    %cst_35 = arith.constant 2.000000e+01 : f32
    %56 = vector.broadcast %cst_35 : f32 to vector<8x256xf32>
    %57 = arith.cmpf ogt, %55, %56 : vector<8x256xf32>
    %cst_36 = arith.constant 0.000000e+00 : f32
    %58 = vector.broadcast %cst_36 : f32 to vector<8x256xf32>
    %59 = arith.select %57, %58, %55 : vector<8x256xi1>, vector<8x256xf32>
    %cst_37 = arith.constant 2.000000e+01 : f32
    %60 = vector.broadcast %cst_37 : f32 to vector<8x256xf32>
    %61 = arith.cmpf ogt, %55, %60 : vector<8x256xf32>
    %62 = math.exp %59 : vector<8x256xf32>
    %cst_38 = arith.constant 1.000000e+00 : f32
    %63 = vector.broadcast %cst_38 : f32 to vector<8x256xf32>
    %64 = arith.addf %63, %62 : vector<8x256xf32>
    %65 = math.log %64 : vector<8x256xf32>
    %66 = arith.select %61, %55, %65 : vector<8x256xi1>, vector<8x256xf32>
    %c0_39 = arith.constant 0 : index
    %c0_40 = arith.constant 0 : index
    %67 = vector.load %arg9[%c0_39, %c0_40] : memref<16x256xf32, #tpu.memory_space<vmem>>, vector<16x256xf32>
    %c0_41 = arith.constant 0 : index
    %c0_42 = arith.constant 0 : index
    %68 = vector.load %arg15[%c0_41, %c0_42] : memref<8x256xf32, #tpu.memory_space<vmem>>, vector<8x256xf32>
    tpu.vector_store %arg15[%c0_41, %c0_42], %66 {strides = array<i32>} : memref<8x256xf32, #tpu.memory_space<vmem>>, vector<8x256xf32>,
    %69 = arith.mulf %66, %43 : vector<8x256xf32>
    %c0_43 = arith.constant 0 : index
    %c0_44 = arith.constant 0 : index
    %70 = vector.load %arg16[%c0_43, %c0_44] : memref<8x256xf32, #tpu.memory_space<vmem>>, vector<8x256xf32>
    tpu.vector_store %arg16[%c0_43, %c0_44], %69 {strides = array<i32>} : memref<8x256xf32, #tpu.memory_space<vmem>>, vector<8x256xf32>,
    %c0_45 = arith.constant 0 : index
    %c0_46 = arith.constant 0 : index
    %71 = vector.load %arg17[%c0_45, %c0_46] : memref<8x16xf32, #tpu.memory_space<vmem>>, vector<8x16xf32>
    tpu.vector_store %arg17[%c0_45, %c0_46], %48 {strides = array<i32>} : memref<8x16xf32, #tpu.memory_space<vmem>>, vector<8x16xf32>,
    %c0_47 = arith.constant 0 : index
    %c0_48 = arith.constant 0 : index
    %72 = vector.load %arg18[%c0_47, %c0_48] : memref<8x16xf32, #tpu.memory_space<vmem>>, vector<8x16xf32>
    tpu.vector_store %arg18[%c0_47, %c0_48], %49 {strides = array<i32>} : memref<8x16xf32, #tpu.memory_space<vmem>>, vector<8x16xf32>,
    %c0_49 = arith.constant 0 : index
    %c0_50 = arith.constant 0 : index
    %73 = vector.load %arg14[%c0_49, %c0_50] : memref<16x256xf32, #tpu.memory_space<vmem>>, vector<16x256xf32>
    %c0_i32_51 = arith.constant 0 : i32
    %74 = arith.index_cast %c0_i32_51 : i32 to index
    %c0_52 = arith.constant 0 : index
    %75 = vector.load %arg15[%74, %c0_52] : memref<8x256xf32, #tpu.memory_space<vmem>>, vector<1x256xf32>
    %76 = arith.index_cast %c0_i32_51 : i32 to index
    %c0_53 = arith.constant 0 : index
    %77 = vector.load %arg16[%76, %c0_53] : memref<8x256xf32, #tpu.memory_space<vmem>>, vector<1x256xf32>
    %78 = arith.index_cast %c0_i32_51 : i32 to index
    %c0_54 = arith.constant 0 : index
    %79 = vector.load %arg17[%78, %c0_54] : memref<8x16xf32, #tpu.memory_space<vmem>>, vector<1x16xf32>
    %80 = arith.index_cast %c0_i32_51 : i32 to index
    %c0_55 = arith.constant 0 : index
    %81 = vector.load %arg18[%80, %c0_55] : memref<8x16xf32, #tpu.memory_space<vmem>>, vector<1x16xf32>
    %82 = vector.broadcast %75 : vector<1x256xf32> to vector<16x256xf32>
    %83 = arith.mulf %82, %67 : vector<16x256xf32>
    %84 = math.exp %83 : vector<16x256xf32>
    %cst_56 = arith.constant dense<0.000000e+00> : vector<16x256xf32>
    %85 = tpu.matmul %79, %77, %cst_56 {dimension_numbers = #tpu.dot_dimension_numbers<[0], [0], [1], [1], [0, 1, 1, 1], [], []>} : vector<1x16xf32>, vector<1x256xf32>, vector<16x256xf32> -> vector<16x256xf32>
    %86 = arith.mulf %73, %84 : vector<16x256xf32>
    %87 = arith.addf %86, %85 : vector<16x256xf32>
    %cst_57 = arith.constant dense<0.000000e+00> : vector<1x256xf32>
    %88 = tpu.matmul %81, %87, %cst_57 {dimension_numbers = #tpu.dot_dimension_numbers<[1], [0], [0], [1], [0, 0, 1, 1], [], []>} : vector<1x16xf32>, vector<16x256xf32>, vector<1x256xf32> -> vector<1x256xf32>
    %89 = arith.index_cast %c0_i32_51 : i32 to index
    %c0_58 = arith.constant 0 : index
    %90 = vector.load %arg19[%89, %c0_58] : memref<8x256xf32, #tpu.memory_space<vmem>>, vector<1x256xf32>
    tpu.vector_store %arg19[%89, %c0_58], %88 {strides = array<i32>} : memref<8x256xf32, #tpu.memory_space<vmem>>, vector<1x256xf32>,
    %c1_i32 = arith.constant 1 : i32
    %91 = arith.index_cast %c1_i32 : i32 to index
    %c0_59 = arith.constant 0 : index
    %92 = vector.load %arg15[%91, %c0_59] : memref<8x256xf32, #tpu.memory_space<vmem>>, vector<1x256xf32>
    %93 = arith.index_cast %c1_i32 : i32 to index
    %c0_60 = arith.constant 0 : index
    %94 = vector.load %arg16[%93, %c0_60] : memref<8x256xf32, #tpu.memory_space<vmem>>, vector<1x256xf32>
    %95 = arith.index_cast %c1_i32 : i32 to index
    %c0_61 = arith.constant 0 : index
    %96 = vector.load %arg17[%95, %c0_61] : memref<8x16xf32, #tpu.memory_space<vmem>>, vector<1x16xf32>
    %97 = arith.index_cast %c1_i32 : i32 to index
    %c0_62 = arith.constant 0 : index
    %98 = vector.load %arg18[%97, %c0_62] : memref<8x16xf32, #tpu.memory_space<vmem>>, vector<1x16xf32>
    %99 = vector.broadcast %92 : vector<1x256xf32> to vector<16x256xf32>
    %100 = arith.mulf %99, %67 : vector<16x256xf32>
    %101 = math.exp %100 : vector<16x256xf32>
    %cst_63 = arith.constant dense<0.000000e+00> : vector<16x256xf32>
    %102 = tpu.matmul %96, %94, %cst_63 {dimension_numbers = #tpu.dot_dimension_numbers<[0], [0], [1], [1], [0, 1, 1, 1], [], []>} : vector<1x16xf32>, vector<1x256xf32>, vector<16x256xf32> -> vector<16x256xf32>
    %103 = arith.mulf %87, %101 : vector<16x256xf32>
    %104 = arith.addf %103, %102 : vector<16x256xf32>
    %cst_64 = arith.constant dense<0.000000e+00> : vector<1x256xf32>
    %105 = tpu.matmul %98, %104, %cst_64 {dimension_numbers = #tpu.dot_dimension_numbers<[1], [0], [0], [1], [0, 0, 1, 1], [], []>} : vector<1x16xf32>, vector<16x256xf32>, vector<1x256xf32> -> vector<1x256xf32>
    %106 = arith.index_cast %c1_i32 : i32 to index
    %c0_65 = arith.constant 0 : index
    %107 = vector.load %arg19[%106, %c0_65] : memref<8x256xf32, #tpu.memory_space<vmem>>, vector<1x256xf32>
    tpu.vector_store %arg19[%106, %c0_65], %105 {strides = array<i32>} : memref<8x256xf32, #tpu.memory_space<vmem>>, vector<1x256xf32>,
    %c2_i32 = arith.constant 2 : i32
    %108 = arith.index_cast %c2_i32 : i32 to index
    %c0_66 = arith.constant 0 : index
    %109 = vector.load %arg15[%108, %c0_66] : memref<8x256xf32, #tpu.memory_space<vmem>>, vector<1x256xf32>
    %110 = arith.index_cast %c2_i32 : i32 to index
    %c0_67 = arith.constant 0 : index
    %111 = vector.load %arg16[%110, %c0_67] : memref<8x256xf32, #tpu.memory_space<vmem>>, vector<1x256xf32>
    %112 = arith.index_cast %c2_i32 : i32 to index
    %c0_68 = arith.constant 0 : index
    %113 = vector.load %arg17[%112, %c0_68] : memref<8x16xf32, #tpu.memory_space<vmem>>, vector<1x16xf32>
    %114 = arith.index_cast %c2_i32 : i32 to index
    %c0_69 = arith.constant 0 : index
    %115 = vector.load %arg18[%114, %c0_69] : memref<8x16xf32, #tpu.memory_space<vmem>>, vector<1x16xf32>
    %116 = vector.broadcast %109 : vector<1x256xf32> to vector<16x256xf32>
    %117 = arith.mulf %116, %67 : vector<16x256xf32>
    %118 = math.exp %117 : vector<16x256xf32>
    %cst_70 = arith.constant dense<0.000000e+00> : vector<16x256xf32>
    %119 = tpu.matmul %113, %111, %cst_70 {dimension_numbers = #tpu.dot_dimension_numbers<[0], [0], [1], [1], [0, 1, 1, 1], [], []>} : vector<1x16xf32>, vector<1x256xf32>, vector<16x256xf32> -> vector<16x256xf32>
    %120 = arith.mulf %104, %118 : vector<16x256xf32>
    %121 = arith.addf %120, %119 : vector<16x256xf32>
    %cst_71 = arith.constant dense<0.000000e+00> : vector<1x256xf32>
    %122 = tpu.matmul %115, %121, %cst_71 {dimension_numbers = #tpu.dot_dimension_numbers<[1], [0], [0], [1], [0, 0, 1, 1], [], []>} : vector<1x16xf32>, vector<16x256xf32>, vector<1x256xf32> -> vector<1x256xf32>
    %123 = arith.index_cast %c2_i32 : i32 to index
    %c0_72 = arith.constant 0 : index
    %124 = vector.load %arg19[%123, %c0_72] : memref<8x256xf32, #tpu.memory_space<vmem>>, vector<1x256xf32>
    tpu.vector_store %arg19[%123, %c0_72], %122 {strides = array<i32>} : memref<8x256xf32, #tpu.memory_space<vmem>>, vector<1x256xf32>,
    %c3_i32 = arith.constant 3 : i32
    %125 = arith.index_cast %c3_i32 : i32 to index
    %c0_73 = arith.constant 0 : index
    %126 = vector.load %arg15[%125, %c0_73] : memref<8x256xf32, #tpu.memory_space<vmem>>, vector<1x256xf32>
    %127 = arith.index_cast %c3_i32 : i32 to index
    %c0_74 = arith.constant 0 : index
    %128 = vector.load %arg16[%127, %c0_74] : memref<8x256xf32, #tpu.memory_space<vmem>>, vector<1x256xf32>
    %129 = arith.index_cast %c3_i32 : i32 to index
    %c0_75 = arith.constant 0 : index
    %130 = vector.load %arg17[%129, %c0_75] : memref<8x16xf32, #tpu.memory_space<vmem>>, vector<1x16xf32>
    %131 = arith.index_cast %c3_i32 : i32 to index
    %c0_76 = arith.constant 0 : index
    %132 = vector.load %arg18[%131, %c0_76] : memref<8x16xf32, #tpu.memory_space<vmem>>, vector<1x16xf32>
    %133 = vector.broadcast %126 : vector<1x256xf32> to vector<16x256xf32>
    %134 = arith.mulf %133, %67 : vector<16x256xf32>
    %135 = math.exp %134 : vector<16x256xf32>
    %cst_77 = arith.constant dense<0.000000e+00> : vector<16x256xf32>
    %136 = tpu.matmul %130, %128, %cst_77 {dimension_numbers = #tpu.dot_dimension_numbers<[0], [0], [1], [1], [0, 1, 1, 1], [], []>} : vector<1x16xf32>, vector<1x256xf32>, vector<16x256xf32> -> vector<16x256xf32>
    %137 = arith.mulf %121, %135 : vector<16x256xf32>
    %138 = arith.addf %137, %136 : vector<16x256xf32>
    %cst_78 = arith.constant dense<0.000000e+00> : vector<1x256xf32>
    %139 = tpu.matmul %132, %138, %cst_78 {dimension_numbers = #tpu.dot_dimension_numbers<[1], [0], [0], [1], [0, 0, 1, 1], [], []>} : vector<1x16xf32>, vector<16x256xf32>, vector<1x256xf32> -> vector<1x256xf32>
    %140 = arith.index_cast %c3_i32 : i32 to index
    %c0_79 = arith.constant 0 : index
    %141 = vector.load %arg19[%140, %c0_79] : memref<8x256xf32, #tpu.memory_space<vmem>>, vector<1x256xf32>
    tpu.vector_store %arg19[%140, %c0_79], %139 {strides = array<i32>} : memref<8x256xf32, #tpu.memory_space<vmem>>, vector<1x256xf32>,
    %c4_i32 = arith.constant 4 : i32
    %142 = arith.index_cast %c4_i32 : i32 to index
    %c0_80 = arith.constant 0 : index
    %143 = vector.load %arg15[%142, %c0_80] : memref<8x256xf32, #tpu.memory_space<vmem>>, vector<1x256xf32>
    %144 = arith.index_cast %c4_i32 : i32 to index
    %c0_81 = arith.constant 0 : index
    %145 = vector.load %arg16[%144, %c0_81] : memref<8x256xf32, #tpu.memory_space<vmem>>, vector<1x256xf32>
    %146 = arith.index_cast %c4_i32 : i32 to index
    %c0_82 = arith.constant 0 : index
    %147 = vector.load %arg17[%146, %c0_82] : memref<8x16xf32, #tpu.memory_space<vmem>>, vector<1x16xf32>
    %148 = arith.index_cast %c4_i32 : i32 to index
    %c0_83 = arith.constant 0 : index
    %149 = vector.load %arg18[%148, %c0_83] : memref<8x16xf32, #tpu.memory_space<vmem>>, vector<1x16xf32>
    %150 = vector.broadcast %143 : vector<1x256xf32> to vector<16x256xf32>
    %151 = arith.mulf %150, %67 : vector<16x256xf32>
    %152 = math.exp %151 : vector<16x256xf32>
    %cst_84 = arith.constant dense<0.000000e+00> : vector<16x256xf32>
    %153 = tpu.matmul %147, %145, %cst_84 {dimension_numbers = #tpu.dot_dimension_numbers<[0], [0], [1], [1], [0, 1, 1, 1], [], []>} : vector<1x16xf32>, vector<1x256xf32>, vector<16x256xf32> -> vector<16x256xf32>
    %154 = arith.mulf %138, %152 : vector<16x256xf32>
    %155 = arith.addf %154, %153 : vector<16x256xf32>
    %cst_85 = arith.constant dense<0.000000e+00> : vector<1x256xf32>
    %156 = tpu.matmul %149, %155, %cst_85 {dimension_numbers = #tpu.dot_dimension_numbers<[1], [0], [0], [1], [0, 0, 1, 1], [], []>} : vector<1x16xf32>, vector<16x256xf32>, vector<1x256xf32> -> vector<1x256xf32>
    %157 = arith.index_cast %c4_i32 : i32 to index
    %c0_86 = arith.constant 0 : index
    %158 = vector.load %arg19[%157, %c0_86] : memref<8x256xf32, #tpu.memory_space<vmem>>, vector<1x256xf32>
    tpu.vector_store %arg19[%157, %c0_86], %156 {strides = array<i32>} : memref<8x256xf32, #tpu.memory_space<vmem>>, vector<1x256xf32>,
    %c5_i32 = arith.constant 5 : i32
    %159 = arith.index_cast %c5_i32 : i32 to index
    %c0_87 = arith.constant 0 : index
    %160 = vector.load %arg15[%159, %c0_87] : memref<8x256xf32, #tpu.memory_space<vmem>>, vector<1x256xf32>
    %161 = arith.index_cast %c5_i32 : i32 to index
    %c0_88 = arith.constant 0 : index
    %162 = vector.load %arg16[%161, %c0_88] : memref<8x256xf32, #tpu.memory_space<vmem>>, vector<1x256xf32>
    %163 = arith.index_cast %c5_i32 : i32 to index
    %c0_89 = arith.constant 0 : index
    %164 = vector.load %arg17[%163, %c0_89] : memref<8x16xf32, #tpu.memory_space<vmem>>, vector<1x16xf32>
    %165 = arith.index_cast %c5_i32 : i32 to index
    %c0_90 = arith.constant 0 : index
    %166 = vector.load %arg18[%165, %c0_90] : memref<8x16xf32, #tpu.memory_space<vmem>>, vector<1x16xf32>
    %167 = vector.broadcast %160 : vector<1x256xf32> to vector<16x256xf32>
    %168 = arith.mulf %167, %67 : vector<16x256xf32>
    %169 = math.exp %168 : vector<16x256xf32>
    %cst_91 = arith.constant dense<0.000000e+00> : vector<16x256xf32>
    %170 = tpu.matmul %164, %162, %cst_91 {dimension_numbers = #tpu.dot_dimension_numbers<[0], [0], [1], [1], [0, 1, 1, 1], [], []>} : vector<1x16xf32>, vector<1x256xf32>, vector<16x256xf32> -> vector<16x256xf32>
    %171 = arith.mulf %155, %169 : vector<16x256xf32>
    %172 = arith.addf %171, %170 : vector<16x256xf32>
    %cst_92 = arith.constant dense<0.000000e+00> : vector<1x256xf32>
    %173 = tpu.matmul %166, %172, %cst_92 {dimension_numbers = #tpu.dot_dimension_numbers<[1], [0], [0], [1], [0, 0, 1, 1], [], []>} : vector<1x16xf32>, vector<16x256xf32>, vector<1x256xf32> -> vector<1x256xf32>
    %174 = arith.index_cast %c5_i32 : i32 to index
    %c0_93 = arith.constant 0 : index
    %175 = vector.load %arg19[%174, %c0_93] : memref<8x256xf32, #tpu.memory_space<vmem>>, vector<1x256xf32>
    tpu.vector_store %arg19[%174, %c0_93], %173 {strides = array<i32>} : memref<8x256xf32, #tpu.memory_space<vmem>>, vector<1x256xf32>,
    %c6_i32 = arith.constant 6 : i32
    %176 = arith.index_cast %c6_i32 : i32 to index
    %c0_94 = arith.constant 0 : index
    %177 = vector.load %arg15[%176, %c0_94] : memref<8x256xf32, #tpu.memory_space<vmem>>, vector<1x256xf32>
    %178 = arith.index_cast %c6_i32 : i32 to index
    %c0_95 = arith.constant 0 : index
    %179 = vector.load %arg16[%178, %c0_95] : memref<8x256xf32, #tpu.memory_space<vmem>>, vector<1x256xf32>
    %180 = arith.index_cast %c6_i32 : i32 to index
    %c0_96 = arith.constant 0 : index
    %181 = vector.load %arg17[%180, %c0_96] : memref<8x16xf32, #tpu.memory_space<vmem>>, vector<1x16xf32>
    %182 = arith.index_cast %c6_i32 : i32 to index
    %c0_97 = arith.constant 0 : index
    %183 = vector.load %arg18[%182, %c0_97] : memref<8x16xf32, #tpu.memory_space<vmem>>, vector<1x16xf32>
    %184 = vector.broadcast %177 : vector<1x256xf32> to vector<16x256xf32>
    %185 = arith.mulf %184, %67 : vector<16x256xf32>
    %186 = math.exp %185 : vector<16x256xf32>
    %cst_98 = arith.constant dense<0.000000e+00> : vector<16x256xf32>
    %187 = tpu.matmul %181, %179, %cst_98 {dimension_numbers = #tpu.dot_dimension_numbers<[0], [0], [1], [1], [0, 1, 1, 1], [], []>} : vector<1x16xf32>, vector<1x256xf32>, vector<16x256xf32> -> vector<16x256xf32>
    %188 = arith.mulf %172, %186 : vector<16x256xf32>
    %189 = arith.addf %188, %187 : vector<16x256xf32>
    %cst_99 = arith.constant dense<0.000000e+00> : vector<1x256xf32>
    %190 = tpu.matmul %183, %189, %cst_99 {dimension_numbers = #tpu.dot_dimension_numbers<[1], [0], [0], [1], [0, 0, 1, 1], [], []>} : vector<1x16xf32>, vector<16x256xf32>, vector<1x256xf32> -> vector<1x256xf32>
    %191 = arith.index_cast %c6_i32 : i32 to index
    %c0_100 = arith.constant 0 : index
    %192 = vector.load %arg19[%191, %c0_100] : memref<8x256xf32, #tpu.memory_space<vmem>>, vector<1x256xf32>
    tpu.vector_store %arg19[%191, %c0_100], %190 {strides = array<i32>} : memref<8x256xf32, #tpu.memory_space<vmem>>, vector<1x256xf32>,
    %c7_i32 = arith.constant 7 : i32
    %193 = arith.index_cast %c7_i32 : i32 to index
    %c0_101 = arith.constant 0 : index
    %194 = vector.load %arg15[%193, %c0_101] : memref<8x256xf32, #tpu.memory_space<vmem>>, vector<1x256xf32>
    %195 = arith.index_cast %c7_i32 : i32 to index
    %c0_102 = arith.constant 0 : index
    %196 = vector.load %arg16[%195, %c0_102] : memref<8x256xf32, #tpu.memory_space<vmem>>, vector<1x256xf32>
    %197 = arith.index_cast %c7_i32 : i32 to index
    %c0_103 = arith.constant 0 : index
    %198 = vector.load %arg17[%197, %c0_103] : memref<8x16xf32, #tpu.memory_space<vmem>>, vector<1x16xf32>
    %199 = arith.index_cast %c7_i32 : i32 to index
    %c0_104 = arith.constant 0 : index
    %200 = vector.load %arg18[%199, %c0_104] : memref<8x16xf32, #tpu.memory_space<vmem>>, vector<1x16xf32>
    %201 = vector.broadcast %194 : vector<1x256xf32> to vector<16x256xf32>
    %202 = arith.mulf %201, %67 : vector<16x256xf32>
    %203 = math.exp %202 : vector<16x256xf32>
    %cst_105 = arith.constant dense<0.000000e+00> : vector<16x256xf32>
    %204 = tpu.matmul %198, %196, %cst_105 {dimension_numbers = #tpu.dot_dimension_numbers<[0], [0], [1], [1], [0, 1, 1, 1], [], []>} : vector<1x16xf32>, vector<1x256xf32>, vector<16x256xf32> -> vector<16x256xf32>
    %205 = arith.mulf %189, %203 : vector<16x256xf32>
    %206 = arith.addf %205, %204 : vector<16x256xf32>
    %cst_106 = arith.constant dense<0.000000e+00> : vector<1x256xf32>
    %207 = tpu.matmul %200, %206, %cst_106 {dimension_numbers = #tpu.dot_dimension_numbers<[1], [0], [0], [1], [0, 0, 1, 1], [], []>} : vector<1x16xf32>, vector<16x256xf32>, vector<1x256xf32> -> vector<1x256xf32>
    %208 = arith.index_cast %c7_i32 : i32 to index
    %c0_107 = arith.constant 0 : index
    %209 = vector.load %arg19[%208, %c0_107] : memref<8x256xf32, #tpu.memory_space<vmem>>, vector<1x256xf32>
    tpu.vector_store %arg19[%208, %c0_107], %207 {strides = array<i32>} : memref<8x256xf32, #tpu.memory_space<vmem>>, vector<1x256xf32>,
    %c8_i32 = arith.constant 8 : i32
    %c0_108 = arith.constant 0 : index
    %c0_109 = arith.constant 0 : index
    %210 = vector.load %arg14[%c0_108, %c0_109] : memref<16x256xf32, #tpu.memory_space<vmem>>, vector<16x256xf32>
    tpu.vector_store %arg14[%c0_108, %c0_109], %206 {strides = array<i32>} : memref<16x256xf32, #tpu.memory_space<vmem>>, vector<16x256xf32>,
    %c0_110 = arith.constant 0 : index
    %c0_111 = arith.constant 0 : index
    %211 = vector.load %arg19[%c0_110, %c0_111] : memref<8x256xf32, #tpu.memory_space<vmem>>, vector<8x256xf32>
    %c0_112 = arith.constant 0 : index
    %c0_113 = arith.constant 0 : index
    %212 = vector.load %arg10[%c0_112, %c0_113] : memref<1x256xf32, #tpu.memory_space<vmem>>, vector<1x256xf32>
    %213 = vector.broadcast %212 : vector<1x256xf32> to vector<8x256xf32>
    %214 = arith.mulf %213, %43 : vector<8x256xf32>
    %215 = arith.addf %211, %214 : vector<8x256xf32>
    %cst_114 = arith.constant 0.000000e+00 : f32
    %216 = vector.broadcast %cst_114 : f32 to vector<8x256xf32>
    %217 = arith.subf %216, %6 : vector<8x256xf32>
    %218 = math.exp %217 : vector<8x256xf32>
    %cst_115 = arith.constant 1.000000e+00 : f32
    %219 = vector.broadcast %cst_115 : f32 to vector<8x256xf32>
    %220 = arith.addf %219, %218 : vector<8x256xf32>
    %cst_116 = arith.constant 1.000000e+00 : f32
    %221 = vector.broadcast %cst_116 : f32 to vector<8x256xf32>
    %222 = arith.divf %221, %220 : vector<8x256xf32>
    %223 = arith.mulf %6, %222 : vector<8x256xf32>
    %224 = arith.mulf %215, %223 : vector<8x256xf32>
    %225 = arith.truncf %224 : vector<8x256xf32> to vector<8x256xbf16>
    %c0_117 = arith.constant 0 : index
    %c0_118 = arith.constant 0 : index
    %226 = vector.load %arg11[%c0_117, %c0_118] : memref<128x256xbf16, #tpu.memory_space<vmem>>, vector<128x256xbf16>
    %cst_119 = arith.constant dense<0.000000e+00> : vector<8x128xf32>
    %227 = tpu.matmul %225, %226, %cst_119 {dimension_numbers = #tpu.dot_dimension_numbers<[1], [1], [0], [0], [0, 0, 1, 0], [], []>} : vector<8x256xbf16>, vector<128x256xbf16>, vector<8x128xf32> -> vector<8x128xf32>
    %c0_120 = arith.constant 0 : index
    %c0_121 = arith.constant 0 : index
    %c0_122 = arith.constant 0 : index
    %228 = vector.load %arg12[%c0_120, %c0_121, %c0_122] : memref<1x8x128xf32, #tpu.memory_space<vmem>>, vector<1x8x128xf32>
    %229 = vector.shape_cast %228 : vector<1x8x128xf32> to vector<8x128xf32>
    %230 = vector.shape_cast %227 : vector<8x128xf32> to vector<1x8x128xf32>
    tpu.vector_store %arg12[%c0_120, %c0_121, %c0_122], %230 {strides = array<i32>} : memref<1x8x128xf32, #tpu.memory_space<vmem>>, vector<1x8x128xf32>,
    return
  }
  func.func @transform_0(%arg0: i32, %arg1: i32) -> (i32, i32, i32) {
    %c0_i32 = arith.constant 0 : i32
    %c0_i32_0 = arith.constant 0 : i32
    return %arg0, %arg1, %c0_i32 : i32, i32, i32
  }
  func.func @transform_1(%arg0: i32, %arg1: i32) -> (i32, i32) {
    %c0_i32 = arith.constant 0 : i32
    %c0_i32_0 = arith.constant 0 : i32
    %c0_i32_1 = arith.constant 0 : i32
    return %c0_i32, %c0_i32_0 : i32, i32
  }
  func.func @transform_2(%arg0: i32, %arg1: i32) -> (i32, i32) {
    %c0_i32 = arith.constant 0 : i32
    %c0_i32_0 = arith.constant 0 : i32
    %c0_i32_1 = arith.constant 0 : i32
    return %c0_i32, %c0_i32_0 : i32, i32
  }
  func.func @transform_3(%arg0: i32, %arg1: i32) -> (i32, i32) {
    %c0_i32 = arith.constant 0 : i32
    %c0_i32_0 = arith.constant 0 : i32
    %c0_i32_1 = arith.constant 0 : i32
    return %c0_i32, %c0_i32_0 : i32, i32
  }
  func.func @transform_4(%arg0: i32, %arg1: i32) -> (i32, i32) {
    %c0_i32 = arith.constant 0 : i32
    %c0_i32_0 = arith.constant 0 : i32
    %c0_i32_1 = arith.constant 0 : i32
    return %c0_i32, %c0_i32_0 : i32, i32
  }
  func.func @transform_5(%arg0: i32, %arg1: i32) -> (i32, i32) {
    %c0_i32 = arith.constant 0 : i32
    %c0_i32_0 = arith.constant 0 : i32
    %c0_i32_1 = arith.constant 0 : i32
    return %c0_i32, %c0_i32_0 : i32, i32
  }
  func.func @transform_6(%arg0: i32, %arg1: i32) -> (i32, i32) {
    %c0_i32 = arith.constant 0 : i32
    %c0_i32_0 = arith.constant 0 : i32
    %c0_i32_1 = arith.constant 0 : i32
    return %c0_i32, %c0_i32_0 : i32, i32
  }
  func.func @transform_7(%arg0: i32, %arg1: i32) -> (i32, i32) {
    %c0_i32 = arith.constant 0 : i32
    %c0_i32_0 = arith.constant 0 : i32
    %c0_i32_1 = arith.constant 0 : i32
    return %c0_i32, %c0_i32_0 : i32, i32
  }
  func.func @transform_8(%arg0: i32, %arg1: i32) -> (i32, i32) {
    %c0_i32 = arith.constant 0 : i32
    %c0_i32_0 = arith.constant 0 : i32
    %c0_i32_1 = arith.constant 0 : i32
    return %c0_i32, %c0_i32_0 : i32, i32
  }
  func.func @transform_9(%arg0: i32, %arg1: i32) -> (i32, i32) {
    %c0_i32 = arith.constant 0 : i32
    %c0_i32_0 = arith.constant 0 : i32
    %c0_i32_1 = arith.constant 0 : i32
    return %c0_i32, %c0_i32_0 : i32, i32
  }
  func.func @transform_10(%arg0: i32, %arg1: i32) -> (i32, i32, i32) {
    %c0_i32 = arith.constant 0 : i32
    %c0_i32_0 = arith.constant 0 : i32
    return %arg0, %arg1, %c0_i32 : i32, i32, i32
  }
}

</mosaic_0001>

<llo_original>
// kernel: tpu_custom_call.1
$region0: #{tpu_custom_call.1}
  #allocation0 [shape = 'u32[]', space=smem, size = 0x4, offset = 0x4, fixed_abs, tag = 'smem constant byte address 0x4 - core index']
  #allocation1 [shape = 'u32[144,128]{1,0:T(1,128)}', space=vmem, size = 0x12000, scoped, tag = 'internal scratch']
  #allocation2 [shape = 'f32[11,256]{1,0:T(8,128)}', space=vmem, size = 0x4000, scoped, tag = 'scratch operand']
  #allocation3 [shape = 'f32[16,256]{1,0:T(8,128)}', space=vmem, size = 0x4000, scoped, tag = 'scratch operand']
  #allocation4 [shape = 'f32[8,256]{1,0:T(8,128)}', space=vmem, size = 0x2000, scoped, tag = 'scratch operand']
  #allocation5 [shape = 'f32[8,256]{1,0:T(8,128)}', space=vmem, size = 0x2000, scoped, tag = 'scratch operand']
  #allocation6 [shape = 'f32[8,16]{1,0:T(8,128)}', space=vmem, size = 0x1000, scoped, tag = 'scratch operand']
  #allocation7 [shape = 'f32[8,16]{1,0:T(8,128)}', space=vmem, size = 0x1000, scoped, tag = 'scratch operand']
  #allocation8 [shape = 'f32[8,256]{1,0:T(8,128)}', space=vmem, size = 0x2000, scoped, tag = 'scratch operand']
  %s0 = inlined_call_operand.hbm [shape: f32[2,16,128], index: 0, kind: input, shape index: {}]
  %s1 = inlined_call_operand.hbm [shape: bf16[512,128], index: 1, kind: input, shape index: {}]
  %s2 = inlined_call_operand.vmem [shape: f32[4,256], index: 2, kind: input, shape index: {}]
  %s3 = inlined_call_operand.vmem [shape: f32[1,256], index: 3, kind: input, shape index: {}]
  %s4 = inlined_call_operand.hbm [shape: bf16[40,256], index: 4, kind: input, shape index: {}]
  %s5 = inlined_call_operand.vmem [shape: bf16[256,8], index: 5, kind: input, shape index: {}]
  %s6 = inlined_call_operand.vmem [shape: f32[1,256], index: 6, kind: input, shape index: {}]
  %s7 = inlined_call_operand.hbm [shape: f32[16,256], index: 7, kind: input, shape index: {}]
  %s8 = inlined_call_operand.vmem [shape: f32[1,256], index: 8, kind: input, shape index: {}]
  %s9 = inlined_call_operand.vmem [shape: bf16[128,256], index: 9, kind: input, shape index: {}]
  %s10 = inlined_call_operand.hbm [shape: f32[2,16,128], index: 10, kind: output, shape index: {}]
  %s11 = sld [smem:[#allocation0]]
  $region97: #{tpu_custom_call.1} parent=0
    _
  %s13 = ssub.s32 1, %s11
  %s14 = scalar_select 0, %s13, %s11
  $region1: #{tpu_custom_call.1} parent=0
    #allocation9 [shape = 'u8[8192]{0}', space=vmem, size = 0x2000, scoped, tag = 'input window, operand 0']
    #allocation10 [shape = 's32[2]{0}', space=sflag, size = 0x8, scoped, tag = 'scoped memory for tpu_custom_call.1']
    #allocation11 [shape = 's32[2]{0}', space=sflag, size = 0x8, scoped, tag = 'scoped memory for tpu_custom_call.1']
    #allocation12 [shape = 'u8[131072]{0}', space=vmem, size = 0x20000, scoped, tag = 'input window, operand 1, single buffered']
    #allocation13 [shape = 's32[1]{0}', space=sflag, size = 0x4, scoped, tag = 'scoped memory for tpu_custom_call.1']
    #allocation14 [shape = 'u8[20480]{0}', space=vmem, size = 0x5000, scoped, tag = 'input window, operand 4, single buffered']
    #allocation15 [shape = 'u8[16384]{0}', space=vmem, size = 0x4000, scoped, tag = 'input window, operand 7, single buffered']
    #allocation16 [shape = 's32[1]{0}', space=sflag, size = 0x4, scoped, tag = 'scoped memory for tpu_custom_call.1']
    #allocation17 [shape = 'u8[8192]{0}', space=vmem, size = 0x2000, scoped, tag = 'output window, operand 0']
    %15 = vsyncpa [#allocation10], 0
    %s16 = scalar_lea.sflag [#allocation10], 1
    %17 = vsyncpa %s16, 0
    %18 = vsyncpa [#allocation13], 0
    %19 = vsyncpa [#allocation16], 0
    %20 = vsyncpa [#allocation11], 0
    %s21 = scalar_lea.sflag [#allocation11], 1
    %22 = vsyncpa %s21, 0
    loop: start=0, step=1, limit=6
    $region2: #{tpu_custom_call.1} parent=1 // loop_pre_header
      _
    $region3: #{tpu_custom_call.1} parent=1 // loop_header
      %s24 = sphi 0, %s28
      %p25 = scmp.ge.s32.totalorder %s24, 6
      %s31 = sphi 0, %s43
      %s32 = sphi 0, %s39
      %s33 = sphi 0, %s31
      %s34 = sphi 0, %s32
      %s35 = sphi 0, %s33
      %s36 = sphi 0, %s34
      %s48 = sphi 0, %s50
      %s51 = sphi 0, %s48
      %s52 = sphi 0, %s51
      %s68 = sphi 0, %s52
      %s72 = sphi 0, %s72
      %s74 = sphi 0, %s72
      %s75 = sphi 0, %s74
      %s89 = sphi 0, %s75
      %s93 = sphi 0, %s93
      %s95 = sphi 0, %s93
      %s96 = sphi 0, %s95
      %s110 = sphi 0, %s96
      %s114 = sphi 0, %s114
      %s116 = sphi 0, %s114
      %s117 = sphi 0, %s116
      %s131 = sphi 0, %s117
      %s135 = sphi 0, %s135
      %s137 = sphi 0, %s135
      %s138 = sphi 0, %s137
      %s152 = sphi 0, %s138
      %s156 = sphi 0, %s156
      %s158 = sphi 0, %s156
      %s159 = sphi 0, %s158
      %s173 = sphi 0, %s159
      %s177 = sphi 0, %s177
      %s179 = sphi 0, %s177
      %s180 = sphi 0, %s179
      %s194 = sphi 0, %s180
      %s198 = sphi 0, %s198
      %s200 = sphi 0, %s198
      %s201 = sphi 0, %s200
      %s215 = sphi 0, %s201
      %s219 = sphi 0, %s219
      %s221 = sphi 0, %s219
      %s222 = sphi 0, %s221
      %s236 = sphi 0, %s222
      %s240 = sphi 0, %s240
      %s242 = sphi 0, %s240
      %s243 = sphi 0, %s242
      %s257 = sphi 0, %s243
      %s265 = sphi 0, %s267
      %s268 = sphi 0, %s265
      %s269 = sphi 0, %s268
      %s285 = sphi 0, %s269
    $region4: #{tpu_custom_call.1} parent=1 // loop_header_branch
      %27 = sbr.rel (%p25) target = $region8
    $region5: #{tpu_custom_call.1} parent=1 // loop_body
      %s29 = ssub.s32 %s24, 1
      %s30 = ssub.s32 %s24, 2
      %s37 = sadd.s32 1, %s32
      %p38 = scmp.ge.s32.totalorder %s37, 2
      %s39 = scalar_select %p38, 0, %s37
      %s40 = sadd.s32 1, %s31
      %s41 = scalar_select %p38, %s40, %s31
      %p42 = scmp.ge.s32.totalorder %s41, 2
      %s43 = scalar_select %p42, 0, %s41
      %s44 = ssub.s32 %s31, %s43
      %s45 = ssub.s32 %s32, %s39
      %s46 = sor.u32 %s44, %s45
      %p47 = scmp.eq.s32.totalorder %s46, 0
      %s49 = sadd.s32 %s48, 1
      %s50 = scalar_select %p47, %s48, %s49
      %p53 = pneg %p47
      %p54 = scmp.eq.s32.totalorder %s24, 3
      %p55 = por %p53, %p54
      %p56 = scmp.ne.s32.totalorder %s48, %s51
      %p57 = scmp.eq.s32.totalorder %s24, 0
      %p58 = por %p56, %p57
      %p59 = scmp.ne.s32.totalorder %s48, %s51
      %p60 = scmp.eq.s32.totalorder %s29, 3
      %p61 = por %p59, %p60
      %p62 = scmp.ne.s32.totalorder %s51, %s52
      %p63 = scmp.eq.s32.totalorder %s29, 0
      %p64 = por %p62, %p63
      %p65 = scmp.ne.s32.totalorder %s51, %s52
      %p66 = scmp.eq.s32.totalorder %s30, 3
      %p67 = por %p65, %p66
      %p69 = scmp.ne.s32.totalorder %s52, %s68
      %p70 = scmp.eq.s32.totalorder %s30, 0
      %p71 = por %p69, %p70
      %s73 = sadd.s32 %s72, 1
      %p76 = scmp.eq.s32.totalorder %s24, 3
      %p77 = scmp.ne.s32.totalorder %s72, %s74
      %p78 = scmp.eq.s32.totalorder %s24, 0
      %p79 = por %p77, %p78
      %p80 = scmp.ne.s32.totalorder %s72, %s74
      %p81 = scmp.eq.s32.totalorder %s29, 3
      %p82 = por %p80, %p81
      %p83 = scmp.ne.s32.totalorder %s74, %s75
      %p84 = scmp.eq.s32.totalorder %s29, 0
      %p85 = por %p83, %p84
      %p86 = scmp.ne.s32.totalorder %s74, %s75
      %p87 = scmp.eq.s32.totalorder %s30, 3
      %p88 = por %p86, %p87
      %p90 = scmp.ne.s32.totalorder %s75, %s89
      %p91 = scmp.eq.s32.totalorder %s30, 0
      %p92 = por %p90, %p91
      %s94 = sadd.s32 %s93, 1
      %p97 = scmp.eq.s32.totalorder %s24, 3
      %p98 = scmp.ne.s32.totalorder %s93, %s95
      %p99 = scmp.eq.s32.totalorder %s24, 0
      %p100 = por %p98, %p99
      %p101 = scmp.ne.s32.totalorder %s93, %s95
      %p102 = scmp.eq.s32.totalorder %s29, 3
      %p103 = por %p101, %p102
      %p104 = scmp.ne.s32.totalorder %s95, %s96
      %p105 = scmp.eq.s32.totalorder %s29, 0
      %p106 = por %p104, %p105
      %p107 = scmp.ne.s32.totalorder %s95, %s96
      %p108 = scmp.eq.s32.totalorder %s30, 3
      %p109 = por %p107, %p108
      %p111 = scmp.ne.s32.totalorder %s96, %s110
      %p112 = scmp.eq.s32.totalorder %s30, 0
      %p113 = por %p111, %p112
      %s115 = sadd.s32 %s114, 1
      %p118 = scmp.eq.s32.totalorder %s24, 3
      %p119 = scmp.ne.s32.totalorder %s114, %s116
      %p120 = scmp.eq.s32.totalorder %s24, 0
      %p121 = por %p119, %p120
      %p122 = scmp.ne.s32.totalorder %s114, %s116
      %p123 = scmp.eq.s32.totalorder %s29, 3
      %p124 = por %p122, %p123
      %p125 = scmp.ne.s32.totalorder %s116, %s117
      %p126 = scmp.eq.s32.totalorder %s29, 0
      %p127 = por %p125, %p126
      %p128 = scmp.ne.s32.totalorder %s116, %s117
      %p129 = scmp.eq.s32.totalorder %s30, 3
      %p130 = por %p128, %p129
      %p132 = scmp.ne.s32.totalorder %s117, %s131
      %p133 = scmp.eq.s32.totalorder %s30, 0
      %p134 = por %p132, %p133
      %s136 = sadd.s32 %s135, 1
      %p139 = scmp.eq.s32.totalorder %s24, 3
      %p140 = scmp.ne.s32.totalorder %s135, %s137
      %p141 = scmp.eq.s32.totalorder %s24, 0
      %p142 = por %p140, %p141
      %p143 = scmp.ne.s32.totalorder %s135, %s137
      %p144 = scmp.eq.s32.totalorder %s29, 3
      %p145 = por %p143, %p144
      %p146 = scmp.ne.s32.totalorder %s137, %s138
      %p147 = scmp.eq.s32.totalorder %s29, 0
      %p148 = por %p146, %p147
      %p149 = scmp.ne.s32.totalorder %s137, %s138
      %p150 = scmp.eq.s32.totalorder %s30, 3
      %p151 = por %p149, %p150
      %p153 = scmp.ne.s32.totalorder %s138, %s152
      %p154 = scmp.eq.s32.totalorder %s30, 0
      %p155 = por %p153, %p154
      %s157 = sadd.s32 %s156, 1
      %p160 = scmp.eq.s32.totalorder %s24, 3
      %p161 = scmp.ne.s32.totalorder %s156, %s158
      %p162 = scmp.eq.s32.totalorder %s24, 0
      %p163 = por %p161, %p162
      %p164 = scmp.ne.s32.totalorder %s156, %s158
      %p165 = scmp.eq.s32.totalorder %s29, 3
      %p166 = por %p164, %p165
      %p167 = scmp.ne.s32.totalorder %s158, %s159
      %p168 = scmp.eq.s32.totalorder %s29, 0
      %p169 = por %p167, %p168
      %p170 = scmp.ne.s32.totalorder %s158, %s159
      %p171 = scmp.eq.s32.totalorder %s30, 3
      %p172 = por %p170, %p171
      %p174 = scmp.ne.s32.totalorder %s159, %s173
      %p175 = scmp.eq.s32.totalorder %s30, 0
      %p176 = por %p174, %p175
      %s178 = sadd.s32 %s177, 1
      %p181 = scmp.eq.s32.totalorder %s24, 3
      %p182 = scmp.ne.s32.totalorder %s177, %s179
      %p183 = scmp.eq.s32.totalorder %s24, 0
      %p184 = por %p182, %p183
      %p185 = scmp.ne.s32.totalorder %s177, %s179
      %p186 = scmp.eq.s32.totalorder %s29, 3
      %p187 = por %p185, %p186
      %p188 = scmp.ne.s32.totalorder %s179, %s180
      %p189 = scmp.eq.s32.totalorder %s29, 0
      %p190 = por %p188, %p189
      %p191 = scmp.ne.s32.totalorder %s179, %s180
      %p192 = scmp.eq.s32.totalorder %s30, 3
      %p193 = por %p191, %p192
      %p195 = scmp.ne.s32.totalorder %s180, %s194
      %p196 = scmp.eq.s32.totalorder %s30, 0
      %p197 = por %p195, %p196
      %s199 = sadd.s32 %s198, 1
      %p202 = scmp.eq.s32.totalorder %s24, 3
      %p203 = scmp.ne.s32.totalorder %s198, %s200
      %p204 = scmp.eq.s32.totalorder %s24, 0
      %p205 = por %p203, %p204
      %p206 = scmp.ne.s32.totalorder %s198, %s200
      %p207 = scmp.eq.s32.totalorder %s29, 3
      %p208 = por %p206, %p207
      %p209 = scmp.ne.s32.totalorder %s200, %s201
      %p210 = scmp.eq.s32.totalorder %s29, 0
      %p211 = por %p209, %p210
      %p212 = scmp.ne.s32.totalorder %s200, %s201
      %p213 = scmp.eq.s32.totalorder %s30, 3
      %p214 = por %p212, %p213
      %p216 = scmp.ne.s32.totalorder %s201, %s215
      %p217 = scmp.eq.s32.totalorder %s30, 0
      %p218 = por %p216, %p217
      %s220 = sadd.s32 %s219, 1
      %p223 = scmp.eq.s32.totalorder %s24, 3
      %p224 = scmp.ne.s32.totalorder %s219, %s221
      %p225 = scmp.eq.s32.totalorder %s24, 0
      %p226 = por %p224, %p225
      %p227 = scmp.ne.s32.totalorder %s219, %s221
      %p228 = scmp.eq.s32.totalorder %s29, 3
      %p229 = por %p227, %p228
      %p230 = scmp.ne.s32.totalorder %s221, %s222
      %p231 = scmp.eq.s32.totalorder %s29, 0
      %p232 = por %p230, %p231
      %p233 = scmp.ne.s32.totalorder %s221, %s222
      %p234 = scmp.eq.s32.totalorder %s30, 3
      %p235 = por %p233, %p234
      %p237 = scmp.ne.s32.totalorder %s222, %s236
      %p238 = scmp.eq.s32.totalorder %s30, 0
      %p239 = por %p237, %p238
      %s241 = sadd.s32 %s240, 1
      %p244 = scmp.eq.s32.totalorder %s24, 3
      %p245 = scmp.ne.s32.totalorder %s240, %s242
      %p246 = scmp.eq.s32.totalorder %s24, 0
      %p247 = por %p245, %p246
      %p248 = scmp.ne.s32.totalorder %s240, %s242
      %p249 = scmp.eq.s32.totalorder %s29, 3
      %p250 = por %p248, %p249
      %p251 = scmp.ne.s32.totalorder %s242, %s243
      %p252 = scmp.eq.s32.totalorder %s29, 0
      %p253 = por %p251, %p252
      %p254 = scmp.ne.s32.totalorder %s242, %s243
      %p255 = scmp.eq.s32.totalorder %s30, 3
      %p256 = por %p254, %p255
      %p258 = scmp.ne.s32.totalorder %s243, %s257
      %p259 = scmp.eq.s32.totalorder %s30, 0
      %p260 = por %p258, %p259
      %s261 = ssub.s32 %s31, %s43
      %s262 = ssub.s32 %s32, %s39
      %s263 = sor.u32 %s261, %s262
      %p264 = scmp.eq.s32.totalorder %s263, 0
      %s266 = sadd.s32 %s265, 1
      %s267 = scalar_select %p264, %s265, %s266
      %p270 = pneg %p264
      %p271 = scmp.eq.s32.totalorder %s24, 3
      %p272 = por %p270, %p271
      %p273 = scmp.ne.s32.totalorder %s265, %s268
      %p274 = scmp.eq.s32.totalorder %s24, 0
      %p275 = por %p273, %p274
      %p276 = scmp.ne.s32.totalorder %s265, %s268
      %p277 = scmp.eq.s32.totalorder %s29, 3
      %p278 = por %p276, %p277
      %p279 = scmp.ne.s32.totalorder %s268, %s269
      %p280 = scmp.eq.s32.totalorder %s29, 0
      %p281 = por %p279, %p280
      %p282 = scmp.ne.s32.totalorder %s268, %s269
      %p283 = scmp.eq.s32.totalorder %s30, 3
      %p284 = por %p282, %p283
      %p286 = scmp.ne.s32.totalorder %s269, %s285
      %p287 = scmp.eq.s32.totalorder %s30, 0
      %p288 = por %p286, %p287
      %p289 = scmp.le.s32.totalorder 1, %s24
      %p290 = scmp.lt.s32.totalorder %s24, 5
      %p291 = pnand %p289, %p290
      %p292 = pneg %p291
      // Predicated region
      $region9: #{tpu_custom_call.1} parent=5 // pred_check
        _
      $region10: #{tpu_custom_call.1} parent=5 // pred_check_branch
        %294 = sbr.rel (%p291) target = $region12
      $region11: #{tpu_custom_call.1} parent=5 // pred_region
        %s295 = ssub.s32 %s24, 1
        // Predicated region
        $region13: #{tpu_custom_call.1} parent=11 // pred_check
          %p296 = pneg %p85
        $region14: #{tpu_custom_call.1} parent=11 // pred_check_branch
          %298 = sbr.rel (%p296) target = $region16
        $region15: #{tpu_custom_call.1} parent=11 // pred_region
          %s300 = ssub.s32 4096, 4096
          %301 = vsyncadd [#allocation13], %s300
          %s302 = sshll.u32 [#allocation12], 4
          %s303 = int_to_ptr.vmem [resolvable:$true] %s302
          %308 = dma.hbm_to_vmem [thread:$0]  %s1, 4096, %s303, [#allocation13], 64, 64, 4
        $region16: #{tpu_custom_call.1} parent=11 // pred_fallthru
          _
        // Predicated region
        $region17: #{tpu_custom_call.1} parent=11 // pred_check
          %p309 = pneg %p106
        $region18: #{tpu_custom_call.1} parent=11 // pred_check_branch
          %311 = sbr.rel (%p309) target = $region20
        $region19: #{tpu_custom_call.1} parent=11 // pred_region
          _
        $region20: #{tpu_custom_call.1} parent=11 // pred_fallthru
          _
        // Predicated region
        $region21: #{tpu_custom_call.1} parent=11 // pred_check
          %p312 = pneg %p127
        $region22: #{tpu_custom_call.1} parent=11 // pred_check_branch
          %314 = sbr.rel (%p312) target = $region24
        $region23: #{tpu_custom_call.1} parent=11 // pred_region
          _
        $region24: #{tpu_custom_call.1} parent=11 // pred_fallthru
          _
        // Predicated region
        $region25: #{tpu_custom_call.1} parent=11 // pred_check
          %p315 = pneg %p148
        $region26: #{tpu_custom_call.1} parent=11 // pred_check_branch
          %317 = sbr.rel (%p315) target = $region28
        $region27: #{tpu_custom_call.1} parent=11 // pred_region
          %s319 = ssub.s32 640, 640
          %320 = vsyncadd [#allocation13], %s319
          %s321 = sshll.u32 [#allocation14], 4
          %s322 = int_to_ptr.vmem [resolvable:$true] %s321
          %327 = dma.hbm_to_vmem [thread:$0]  %s4, 640, %s322, [#allocation13], 128, 128, 8
        $region28: #{tpu_custom_call.1} parent=11 // pred_fallthru
          _
        // Predicated region
        $region29: #{tpu_custom_call.1} parent=11 // pred_check
          %p328 = pneg %p169
        $region30: #{tpu_custom_call.1} parent=11 // pred_check_branch
          %330 = sbr.rel (%p328) target = $region32
        $region31: #{tpu_custom_call.1} parent=11 // pred_region
          _
        $region32: #{tpu_custom_call.1} parent=11 // pred_fallthru
          _
        // Predicated region
        $region33: #{tpu_custom_call.1} parent=11 // pred_check
          %p331 = pneg %p190
        $region34: #{tpu_custom_call.1} parent=11 // pred_check_branch
          %333 = sbr.rel (%p331) target = $region36
        $region35: #{tpu_custom_call.1} parent=11 // pred_region
          _
        $region36: #{tpu_custom_call.1} parent=11 // pred_fallthru
          _
        // Predicated region
        $region37: #{tpu_custom_call.1} parent=11 // pred_check
          %p334 = pneg %p211
        $region38: #{tpu_custom_call.1} parent=11 // pred_check_branch
          %336 = sbr.rel (%p334) target = $region40
        $region39: #{tpu_custom_call.1} parent=11 // pred_region
          %s338 = ssub.s32 512, 512
          %339 = vsyncadd [#allocation16], %s338
          %s340 = sshll.u32 [#allocation15], 4
          %s341 = int_to_ptr.vmem [resolvable:$true] %s340
          %346 = dma.hbm_to_vmem [thread:$0]  %s7, 512, %s341, [#allocation16], 256, 256, 16
        $region40: #{tpu_custom_call.1} parent=11 // pred_fallthru
          _
        // Predicated region
        $region41: #{tpu_custom_call.1} parent=11 // pred_check
          %p347 = pneg %p232
        $region42: #{tpu_custom_call.1} parent=11 // pred_check_branch
          %349 = sbr.rel (%p347) target = $region44
        $region43: #{tpu_custom_call.1} parent=11 // pred_region
          _
        $region44: #{tpu_custom_call.1} parent=11 // pred_fallthru
          _
        // Predicated region
        $region45: #{tpu_custom_call.1} parent=11 // pred_check
          %p350 = pneg %p253
        $region46: #{tpu_custom_call.1} parent=11 // pred_check_branch
          %352 = sbr.rel (%p350) target = $region48
        $region47: #{tpu_custom_call.1} parent=11 // pred_region
          _
        $region48: #{tpu_custom_call.1} parent=11 // pred_fallthru
          _
      $region12: #{tpu_custom_call.1} parent=5 // pred_fallthru
        _
      %p353 = scmp.lt.s32.totalorder %s24, 4
      // Predicated region
      $region49: #{tpu_custom_call.1} parent=5 // pred_check
        %p354 = pneg %p353
      $region50: #{tpu_custom_call.1} parent=5 // pred_check_branch
        %356 = sbr.rel (%p354) target = $region52
      $region51: #{tpu_custom_call.1} parent=5 // pred_region
        // Predicated region
        $region53: #{tpu_custom_call.1} parent=51 // pred_check
          %p357 = pneg %p58
        $region54: #{tpu_custom_call.1} parent=51 // pred_check_branch
          %359 = sbr.rel (%p357) target = $region56
        $region55: #{tpu_custom_call.1} parent=51 // pred_region
          %s360 = sand.u32 %s48, 1
          %s361 = scalar_lea.sflag [#allocation10], %s360
          %s362 = sand.u32 %s48, 1
          %s363 = smul.addr %s362, 8
          %s364 = scalar_lea.vmem [#allocation9], %s363
          %s366 = ssub.s32 128, 128
          %367 = vsyncadd %s361, %s366
          %s368 = smul.addr %s31, 2
          %s369 = sadd.s32 %s32, %s368
          %s370 = smul.addr %s369, 128
          %s371 = scalar_lea.hbm %s0, %s370
          %s373 = sshll.u32 %s364, 4
          %s374 = int_to_ptr.vmem [resolvable:$true] %s373
          %376 = dma.hbm_to_vmem [thread:$0]  %s371, 128, %s374, %s361
        $region56: #{tpu_custom_call.1} parent=51 // pred_fallthru
          _
      $region52: #{tpu_custom_call.1} parent=5 // pred_fallthru
        _
      %p377 = scmp.le.s32.totalorder 1, %s24
      %p378 = scmp.lt.s32.totalorder %s24, 5
      %p379 = pnand %p377, %p378
      %p380 = pneg %p379
      // Predicated region
      $region57: #{tpu_custom_call.1} parent=5 // pred_check
        _
      $region58: #{tpu_custom_call.1} parent=5 // pred_check_branch
        %382 = sbr.rel (%p379) target = $region60
      $region59: #{tpu_custom_call.1} parent=5 // pred_region
        %s383 = ssub.s32 %s24, 1
        %s384 = sand.u32 %s51, 1
        %s385 = scalar_lea.sflag [#allocation10], %s384
        %s386 = sand.u32 %s51, 1
        %s387 = smul.addr %s386, 8
        %s388 = scalar_lea.vmem [#allocation9], %s387
        // Predicated region
        $region61: #{tpu_custom_call.1} parent=59 // pred_check
          %p389 = pneg %p64
        $region62: #{tpu_custom_call.1} parent=59 // pred_check_branch
          %391 = sbr.rel (%p389) target = $region64
        $region63: #{tpu_custom_call.1} parent=59 // pred_region
          %392 = dma.done %s385, 128
        $region64: #{tpu_custom_call.1} parent=59 // pred_fallthru
          _
        // Predicated region
        $region65: #{tpu_custom_call.1} parent=59 // pred_check
          %p393 = pneg %p85
        $region66: #{tpu_custom_call.1} parent=59 // pred_check_branch
          %395 = sbr.rel (%p393) target = $region68
        $region67: #{tpu_custom_call.1} parent=59 // pred_region
          %396 = dma.done [#allocation13], 4096
        $region68: #{tpu_custom_call.1} parent=59 // pred_fallthru
          _
        // Predicated region
        $region69: #{tpu_custom_call.1} parent=59 // pred_check
          %p397 = pneg %p148
        $region70: #{tpu_custom_call.1} parent=59 // pred_check_branch
          %399 = sbr.rel (%p397) target = $region72
        $region71: #{tpu_custom_call.1} parent=59 // pred_region
          %400 = dma.done [#allocation13], 640
        $region72: #{tpu_custom_call.1} parent=59 // pred_fallthru
          _
        // Predicated region
        $region73: #{tpu_custom_call.1} parent=59 // pred_check
          %p401 = pneg %p211
        $region74: #{tpu_custom_call.1} parent=59 // pred_check_branch
          %403 = sbr.rel (%p401) target = $region76
        $region75: #{tpu_custom_call.1} parent=59 // pred_region
          %404 = dma.done [#allocation16], 512
        $region76: #{tpu_custom_call.1} parent=59 // pred_fallthru
          _
        %s405 = sand.u32 %s51, 1
        %s406 = scalar_lea.sflag [#allocation10], %s405
        %s407 = sand.u32 %s51, 1
        %s408 = smul.addr %s407, 8
        %s409 = scalar_lea.vmem [#allocation9], %s408
        %p410 = pneg %p64
        %p411 = pneg %p61
        %p412 = pneg %p85
        %p413 = pneg %p82
        %p414 = pneg %p106
        %p415 = pneg %p103
        %p416 = pneg %p127
        %p417 = pneg %p124
        %p418 = pneg %p148
        %p419 = pneg %p145
        %p420 = pneg %p169
        %p421 = pneg %p166
        %p422 = pneg %p190
        %p423 = pneg %p187
        %p424 = pneg %p211
        %p425 = pneg %p208
        %p426 = pneg %p232
        %p427 = pneg %p229
        %p428 = pneg %p253
        %p429 = pneg %p250
        %p430 = pneg %p281
        %p431 = pneg %p278
        %s432 = sand.u32 %s268, 1
        %s433 = scalar_lea.sflag [#allocation11], %s432
        %s434 = sand.u32 %s268, 1
        %s435 = smul.addr %s434, 8
        %s436 = scalar_lea.vmem [#allocation17], %s435
        %v438 = vld [vmem:[%s388] sm:$0xff]
        %v439 = vpack.c.bf16 %v438, %v438
        %v440 = vld [vmem:[#allocation12] sm:$0xf]
        %v441 = vld [vmem:[#allocation12 + $0x4] sm:$0xf]
        %v442 = vld [vmem:[#allocation12 + $0x8] sm:$0xf]
        %v443 = vld [vmem:[#allocation12 + $0xc] sm:$0xf]
        %v444 = vld [vmem:[#allocation12 + $0x10] sm:$0xf]
        %v445 = vld [vmem:[#allocation12 + $0x14] sm:$0xf]
        %v446 = vld [vmem:[#allocation12 + $0x18] sm:$0xf]
        %v447 = vld [vmem:[#allocation12 + $0x1c] sm:$0xf]
        %v448 = vld [vmem:[#allocation12 + $0x20] sm:$0xf]
        %v449 = vld [vmem:[#allocation12 + $0x24] sm:$0xf]
        %v450 = vld [vmem:[#allocation12 + $0x28] sm:$0xf]
        %v451 = vld [vmem:[#allocation12 + $0x2c] sm:$0xf]
        %v452 = vld [vmem:[#allocation12 + $0x30] sm:$0xf]
        %v453 = vld [vmem:[#allocation12 + $0x34] sm:$0xf]
        %v454 = vld [vmem:[#allocation12 + $0x38] sm:$0xf]
        %v455 = vld [vmem:[#allocation12 + $0x3c] sm:$0xf]
        %v456 = vld [vmem:[#allocation12 + $0x40] sm:$0xf]
        %v457 = vld [vmem:[#allocation12 + $0x44] sm:$0xf]
        %v458 = vld [vmem:[#allocation12 + $0x48] sm:$0xf]
        %v459 = vld [vmem:[#allocation12 + $0x4c] sm:$0xf]
        %v460 = vld [vmem:[#allocation12 + $0x50] sm:$0xf]
        %v461 = vld [vmem:[#allocation12 + $0x54] sm:$0xf]
        %v462 = vld [vmem:[#allocation12 + $0x58] sm:$0xf]
        %v463 = vld [vmem:[#allocation12 + $0x5c] sm:$0xf]
        %v464 = vld [vmem:[#allocation12 + $0x60] sm:$0xf]
        %v465 = vld [vmem:[#allocation12 + $0x64] sm:$0xf]
        %v466 = vld [vmem:[#allocation12 + $0x68] sm:$0xf]
        %v467 = vld [vmem:[#allocation12 + $0x6c] sm:$0xf]
        %v468 = vld [vmem:[#allocation12 + $0x70] sm:$0xf]
        %v469 = vld [vmem:[#allocation12 + $0x74] sm:$0xf]
        %v470 = vld [vmem:[#allocation12 + $0x78] sm:$0xf]
        %v471 = vld [vmem:[#allocation12 + $0x7c] sm:$0xf]
        %v472 = vld [vmem:[#allocation12 + $0x80] sm:$0xf]
        %v473 = vld [vmem:[#allocation12 + $0x84] sm:$0xf]
        %v474 = vld [vmem:[#allocation12 + $0x88] sm:$0xf]
        %v475 = vld [vmem:[#allocation12 + $0x8c] sm:$0xf]
        %v476 = vld [vmem:[#allocation12 + $0x90] sm:$0xf]
        %v477 = vld [vmem:[#allocation12 + $0x94] sm:$0xf]
        %v478 = vld [vmem:[#allocation12 + $0x98] sm:$0xf]
        %v479 = vld [vmem:[#allocation12 + $0x9c] sm:$0xf]
        %v480 = vld [vmem:[#allocation12 + $0xa0] sm:$0xf]
        %v481 = vld [vmem:[#allocation12 + $0xa4] sm:$0xf]
        %v482 = vld [vmem:[#allocation12 + $0xa8] sm:$0xf]
        %v483 = vld [vmem:[#allocation12 + $0xac] sm:$0xf]
        %v484 = vld [vmem:[#allocation12 + $0xb0] sm:$0xf]
        %v485 = vld [vmem:[#allocation12 + $0xb4] sm:$0xf]
        %v486 = vld [vmem:[#allocation12 + $0xb8] sm:$0xf]
        %v487 = vld [vmem:[#allocation12 + $0xbc] sm:$0xf]
        %v488 = vld [vmem:[#allocation12 + $0xc0] sm:$0xf]
        %v489 = vld [vmem:[#allocation12 + $0xc4] sm:$0xf]
        %v490 = vld [vmem:[#allocation12 + $0xc8] sm:$0xf]
        %v491 = vld [vmem:[#allocation12 + $0xcc] sm:$0xf]
        %v492 = vld [vmem:[#allocation12 + $0xd0] sm:$0xf]
        %v493 = vld [vmem:[#allocation12 + $0xd4] sm:$0xf]
        %v494 = vld [vmem:[#allocation12 + $0xd8] sm:$0xf]
        %v495 = vld [vmem:[#allocation12 + $0xdc] sm:$0xf]
        %v496 = vld [vmem:[#allocation12 + $0xe0] sm:$0xf]
        %v497 = vld [vmem:[#allocation12 + $0xe4] sm:$0xf]
        %v498 = vld [vmem:[#allocation12 + $0xe8] sm:$0xf]
        %v499 = vld [vmem:[#allocation12 + $0xec] sm:$0xf]
        %v500 = vld [vmem:[#allocation12 + $0xf0] sm:$0xf]
        %v501 = vld [vmem:[#allocation12 + $0xf4] sm:$0xf]
        %v502 = vld [vmem:[#allocation12 + $0xf8] sm:$0xf]
        %v503 = vld [vmem:[#allocation12 + $0xfc] sm:$0xf]
        %v568 = vunpack.c.l.b16 %v440
        %v569 = vunpack.c.l.b16 %v441
        %v570 = vunpack.c.l.b16 %v442
        %v571 = vunpack.c.l.b16 %v443
        %v572 = vunpack.c.l.b16 %v444
        %v573 = vunpack.c.l.b16 %v445
        %v574 = vunpack.c.l.b16 %v446
        %v575 = vunpack.c.l.b16 %v447
        %v576 = vunpack.c.l.b16 %v448
        %v577 = vunpack.c.l.b16 %v449
        %v578 = vunpack.c.l.b16 %v450
        %v579 = vunpack.c.l.b16 %v451
        %v580 = vunpack.c.l.b16 %v452
        %v581 = vunpack.c.l.b16 %v453
        %v582 = vunpack.c.l.b16 %v454
        %v583 = vunpack.c.l.b16 %v455
        %v584 = vunpack.c.l.b16 %v456
        %v585 = vunpack.c.l.b16 %v457
        %v586 = vunpack.c.l.b16 %v458
        %v587 = vunpack.c.l.b16 %v459
        %v588 = vunpack.c.l.b16 %v460
        %v589 = vunpack.c.l.b16 %v461
        %v590 = vunpack.c.l.b16 %v462
        %v591 = vunpack.c.l.b16 %v463
        %v592 = vunpack.c.l.b16 %v464
        %v593 = vunpack.c.l.b16 %v465
        %v594 = vunpack.c.l.b16 %v466
        %v595 = vunpack.c.l.b16 %v467
        %v596 = vunpack.c.l.b16 %v468
        %v597 = vunpack.c.l.b16 %v469
        %v598 = vunpack.c.l.b16 %v470
        %v599 = vunpack.c.l.b16 %v471
        %v600 = vunpack.c.l.b16 %v472
        %v601 = vunpack.c.l.b16 %v473
        %v602 = vunpack.c.l.b16 %v474
        %v603 = vunpack.c.l.b16 %v475
        %v604 = vunpack.c.l.b16 %v476
        %v605 = vunpack.c.l.b16 %v477
        %v606 = vunpack.c.l.b16 %v478
        %v607 = vunpack.c.l.b16 %v479
        %v608 = vunpack.c.l.b16 %v480
        %v609 = vunpack.c.l.b16 %v481
        %v610 = vunpack.c.l.b16 %v482
        %v611 = vunpack.c.l.b16 %v483
        %v612 = vunpack.c.l.b16 %v484
        %v613 = vunpack.c.l.b16 %v485
        %v614 = vunpack.c.l.b16 %v486
        %v615 = vunpack.c.l.b16 %v487
        %v616 = vunpack.c.l.b16 %v488
        %v617 = vunpack.c.l.b16 %v489
        %v618 = vunpack.c.l.b16 %v490
        %v619 = vunpack.c.l.b16 %v491
        %v620 = vunpack.c.l.b16 %v492
        %v621 = vunpack.c.l.b16 %v493
        %v622 = vunpack.c.l.b16 %v494
        %v623 = vunpack.c.l.b16 %v495
        %v624 = vunpack.c.l.b16 %v496
        %v625 = vunpack.c.l.b16 %v497
        %v626 = vunpack.c.l.b16 %v498
        %v627 = vunpack.c.l.b16 %v499
        %v628 = vunpack.c.l.b16 %v500
        %v629 = vunpack.c.l.b16 %v501
        %v630 = vunpack.c.l.b16 %v502
        %v631 = vunpack.c.l.b16 %v503
        %v632 = vpack.c.b16 %v569, %v568
        %v633 = vpack.c.b16 %v571, %v570
        %v634 = vpack.c.b16 %v573, %v572
        %v635 = vpack.c.b16 %v575, %v574
        %v636 = vpack.c.b16 %v577, %v576
        %v637 = vpack.c.b16 %v579, %v578
        %v638 = vpack.c.b16 %v581, %v580
        %v639 = vpack.c.b16 %v583, %v582
        %v640 = vpack.c.b16 %v585, %v584
        %v641 = vpack.c.b16 %v587, %v586
        %v642 = vpack.c.b16 %v589, %v588
        %v643 = vpack.c.b16 %v591, %v590
        %v644 = vpack.c.b16 %v593, %v592
        %v645 = vpack.c.b16 %v595, %v594
        %v646 = vpack.c.b16 %v597, %v596
        %v647 = vpack.c.b16 %v599, %v598
        %v648 = vpack.c.b16 %v601, %v600
        %v649 = vpack.c.b16 %v603, %v602
        %v650 = vpack.c.b16 %v605, %v604
        %v651 = vpack.c.b16 %v607, %v606
        %v652 = vpack.c.b16 %v609, %v608
        %v653 = vpack.c.b16 %v611, %v610
        %v654 = vpack.c.b16 %v613, %v612
        %v655 = vpack.c.b16 %v615, %v614
        %v656 = vpack.c.b16 %v617, %v616
        %v657 = vpack.c.b16 %v619, %v618
        %v658 = vpack.c.b16 %v621, %v620
        %v659 = vpack.c.b16 %v623, %v622
        %v660 = vpack.c.b16 %v625, %v624
        %v661 = vpack.c.b16 %v627, %v626
        %v662 = vpack.c.b16 %v629, %v628
        %v663 = vpack.c.b16 %v631, %v630
        %696 = vmatprep.subr.bf16.mxu0 0
        %697 = vmatpush1.bf16.xpose.msra.mxu0 %v639
        %698 = vmatprep.subr.bf16.mxu0 0
        %699 = vmatpush1.bf16.xpose.msra.mxu0 %v638
        %700 = vmatprep.subr.bf16.mxu0 0
        %701 = vmatpush1.bf16.xpose.msra.mxu0 %v637
        %702 = vmatprep.subr.bf16.mxu0 0
        %703 = vmatpush1.bf16.xpose.msra.mxu0 %v636
        %704 = vmatprep.subr.bf16.mxu0 0
        %705 = vmatpush1.bf16.xpose.msra.mxu0 %v635
        %706 = vmatprep.subr.bf16.mxu0 0
        %707 = vmatpush1.bf16.xpose.msra.mxu0 %v634
        %708 = vmatprep.subr.bf16.mxu0 0
        %709 = vmatpush1.bf16.xpose.msra.mxu0 %v633
        %710 = vmatprep.subr.bf16.mxu0 0
        %711 = vmatpush1.bf16.xpose.msra.mxu0 %v632
        %712 = vmatprep.subr.bf16.mxu0 0
        %713 = vmatpush2.bf16.xpose.msra.mxu0 %v647
        %714 = vmatprep.subr.bf16.mxu0 0
        %715 = vmatpush2.bf16.xpose.msra.mxu0 %v646
        %716 = vmatprep.subr.bf16.mxu0 0
        %717 = vmatpush2.bf16.xpose.msra.mxu0 %v645
        %718 = vmatprep.subr.bf16.mxu0 0
        %719 = vmatpush2.bf16.xpose.msra.mxu0 %v644
        %720 = vmatprep.subr.bf16.mxu0 0
        %721 = vmatpush2.bf16.xpose.msra.mxu0 %v643
        %722 = vmatprep.subr.bf16.mxu0 0
        %723 = vmatpush2.bf16.xpose.msra.mxu0 %v642
        %724 = vmatprep.subr.bf16.mxu0 0
        %725 = vmatpush2.bf16.xpose.msra.mxu0 %v641
        %726 = vmatprep.subr.bf16.mxu0 0
        %727 = vmatpush2.bf16.xpose.msra.mxu0 %v640
        %728 = vmatprep.mubr.bf16.mxu0 0
        %729 = vmatmul.mubr.bf16.gmra.mxu0 %v439
        %v730 = vpop.f32.mrf.mxu0
        %v731 = vadd.f32 0.0, %v730
        %v732 = vpop.f32.mrf.mxu0
        %v733 = vadd.f32 0.0, %v732
        %v734 = vpop.f32.mrf.mxu0
        %v735 = vpop.f32.mrf.mxu0
        %736 = vdwg.mxu0
        %737 = vmatprep.subr.bf16.mxu0 0
        %738 = vmatpush1.bf16.xpose.msra.mxu0 %v655
        %739 = vmatprep.subr.bf16.mxu0 0
        %740 = vmatpush1.bf16.xpose.msra.mxu0 %v654
        %741 = vmatprep.subr.bf16.mxu0 0
        %742 = vmatpush1.bf16.xpose.msra.mxu0 %v653
        %743 = vmatprep.subr.bf16.mxu0 0
        %744 = vmatpush1.bf16.xpose.msra.mxu0 %v652
        %745 = vmatprep.subr.bf16.mxu0 0
        %746 = vmatpush1.bf16.xpose.msra.mxu0 %v651
        %747 = vmatprep.subr.bf16.mxu0 0
        %748 = vmatpush1.bf16.xpose.msra.mxu0 %v650
        %749 = vmatprep.subr.bf16.mxu0 0
        %750 = vmatpush1.bf16.xpose.msra.mxu0 %v649
        %751 = vmatprep.subr.bf16.mxu0 0
        %752 = vmatpush1.bf16.xpose.msra.mxu0 %v648
        %753 = vmatprep.subr.bf16.mxu0 0
        %754 = vmatpush2.bf16.xpose.msra.mxu0 %v663
        %755 = vmatprep.subr.bf16.mxu0 0
        %756 = vmatpush2.bf16.xpose.msra.mxu0 %v662
        %757 = vmatprep.subr.bf16.mxu0 0
        %758 = vmatpush2.bf16.xpose.msra.mxu0 %v661
        %759 = vmatprep.subr.bf16.mxu0 0
        %760 = vmatpush2.bf16.xpose.msra.mxu0 %v660
        %761 = vmatprep.subr.bf16.mxu0 0
        %762 = vmatpush2.bf16.xpose.msra.mxu0 %v659
        %763 = vmatprep.subr.bf16.mxu0 0
        %764 = vmatpush2.bf16.xpose.msra.mxu0 %v658
        %765 = vmatprep.subr.bf16.mxu0 0
        %766 = vmatpush2.bf16.xpose.msra.mxu0 %v657
        %767 = vmatprep.subr.bf16.mxu0 0
        %768 = vmatpush2.bf16.xpose.msra.mxu0 %v656
        %769 = vmatprep.mubr.bf16.mxu0 0
        %770 = vmatmul.mubr.bf16.gmra.mxu0 %v439
        %v771 = vpop.f32.mrf.mxu0
        %v772 = vadd.f32 0.0, %v771
        %v773 = vpop.f32.mrf.mxu0
        %v774 = vadd.f32 0.0, %v773
        %v775 = vpop.f32.mrf.mxu0
        %v776 = vpop.f32.mrf.mxu0
        %777 = vdwg.mxu0
        %p778 = scmp.eq.s32.totalorder %s34, 0
        // Predicated region
        $region77: #{tpu_custom_call.1} parent=59 // pred_check
          %p779 = pneg %p778
        $region78: #{tpu_custom_call.1} parent=59 // pred_check_branch
          %781 = sbr.rel (%p779) target = $region80
        $region79: #{tpu_custom_call.1} parent=59 // pred_region
          %782 = vst [vmem:[#allocation2] sm:$0x7] 0.0
          %783 = vst [vmem:[#allocation2 + $0x8] sm:$0x7] 0.0
          %784 = vst [vmem:[#allocation3] sm:$0xff] 0.0
          %785 = vst [vmem:[#allocation3 + $0x8] sm:$0xff] 0.0
          %786 = vst [vmem:[#allocation3 + $0x10] sm:$0xff] 0.0
          %787 = vst [vmem:[#allocation3 + $0x18] sm:$0xff] 0.0
        $region80: #{tpu_custom_call.1} parent=59 // pred_fallthru
          _
        %p788 = scmp.gt.s32.totalorder %s34, 0
        // Predicated region
        $region81: #{tpu_custom_call.1} parent=59 // pred_check
          %p789 = pneg %p788
        $region82: #{tpu_custom_call.1} parent=59 // pred_check_branch
          %791 = sbr.rel (%p789) target = $region84
        $region83: #{tpu_custom_call.1} parent=59 // pred_region
          %v792 = vld [vmem:[#allocation2 + $0x10] sm:$0x7]
          %v793 = vld [vmem:[#allocation2 + $0x18] sm:$0x7]
          %794 = vst [vmem:[#allocation2] sm:$0x7] %v792
          %795 = vst [vmem:[#allocation2 + $0x8] sm:$0x7] %v793
        $region84: #{tpu_custom_call.1} parent=59 // pred_fallthru
          _
        %v798 = vrot.slane %v731, 5
        %v799 = vrot.slane %v733, 5
        %802 = vst [vmem:[#allocation2] sm:$0xf8] %v798
        %803 = vst [vmem:[#allocation2 + $0x8] sm:$0xf8] %v799
        %804 = vst [vmem:[#allocation2 + $0x10] sm:$0x7] %v798
        %805 = vst [vmem:[#allocation2 + $0x18] sm:$0x7] %v799
        %v806 = vld [vmem:[#allocation2] sm:$0xff]
        %v807 = vld [vmem:[#allocation2 + $0x8] sm:$0xff]
        %v808 = vld [vmem:[%s2] ss:$4 sm:$0x3]
        %v810 = vlaneseq
        %v811 = vshrl.u32 %v810, 7
        %v812 = vsub.s32 0, %v811
        %v813 = vrot.slane %v808, %v812
        %v814 = vlaneseq
        %v815 = vshrl.u32 %v814, 7
        %v816 = vsub.s32 1, %v815
        %v817 = vrot.slane %v808, %v816
        %v820 = vmul.f32 %v806, %v813
        %v821 = vmul.f32 %v807, %v817
        %v822 = vld [vmem:[#allocation2] sm:$0xfe]
        %v823 = vld [vmem:[#allocation2 + $0x8] sm:$0xfe]
        %v824 = vld [vmem:[#allocation2 + $0x10] sm:$0x1]
        %v825 = vld [vmem:[#allocation2 + $0x18] sm:$0x1]
        %s826 = scalar_lea.vmem %s2, 1
        %v827 = vld [vmem:[%s826] ss:$4 sm:$0x3]
        %v829 = vlaneseq
        %v830 = vshrl.u32 %v829, 7
        %v831 = vsub.s32 0, %v830
        %v832 = vrot.slane %v827, %v831
        %v833 = vlaneseq
        %v834 = vshrl.u32 %v833, 7
        %v835 = vsub.s32 1, %v834
        %v836 = vrot.slane %v827, %v835
        %v839 = vmul.f32 %v822, %v832
        %v840 = vmul.f32 %v823, %v836
        %v841 = vmul.f32 %v824, %v832
        %v842 = vmul.f32 %v825, %v836
        %vm847 = vcmask 1046528
        %v848 = vrot.slane %v839, 1
        %v849 = vrot.slane %v841, 1
        %v850 = vsel %vm847, %v848, %v849
        %v851 = vrot.slane %v840, 1
        %v852 = vrot.slane %v842, 1
        %v853 = vsel %vm847, %v851, %v852
        %v856 = vadd.f32 %v820, %v850
        %v857 = vadd.f32 %v821, %v853
        %v858 = vld [vmem:[#allocation2] sm:$0xfc]
        %v859 = vld [vmem:[#allocation2 + $0x8] sm:$0xfc]
        %v860 = vld [vmem:[#allocation2 + $0x10] sm:$0x3]
        %v861 = vld [vmem:[#allocation2 + $0x18] sm:$0x3]
        %s862 = scalar_lea.vmem %s2, 2
        %v863 = vld [vmem:[%s862] ss:$4 sm:$0x3]
        %v865 = vlaneseq
        %v866 = vshrl.u32 %v865, 7
        %v867 = vsub.s32 0, %v866
        %v868 = vrot.slane %v863, %v867
        %v869 = vlaneseq
        %v870 = vshrl.u32 %v869, 7
        %v871 = vsub.s32 1, %v870
        %v872 = vrot.slane %v863, %v871
        %v875 = vmul.f32 %v858, %v868
        %v876 = vmul.f32 %v859, %v872
        %v877 = vmul.f32 %v860, %v868
        %v878 = vmul.f32 %v861, %v872
        %vm883 = vcmask 1045504
        %v884 = vrot.slane %v875, 2
        %v885 = vrot.slane %v877, 2
        %v886 = vsel %vm883, %v884, %v885
        %v887 = vrot.slane %v876, 2
        %v888 = vrot.slane %v878, 2
        %v889 = vsel %vm883, %v887, %v888
        %v892 = vadd.f32 %v856, %v886
        %v893 = vadd.f32 %v857, %v889
        %v894 = vld [vmem:[#allocation2] sm:$0xf8]
        %v895 = vld [vmem:[#allocation2 + $0x8] sm:$0xf8]
        %v896 = vld [vmem:[#allocation2 + $0x10] sm:$0x7]
        %v897 = vld [vmem:[#allocation2 + $0x18] sm:$0x7]
        %s898 = scalar_lea.vmem %s2, 3
        %v899 = vld [vmem:[%s898] ss:$4 sm:$0x3]
        %v901 = vlaneseq
        %v902 = vshrl.u32 %v901, 7
        %v903 = vsub.s32 0, %v902
        %v904 = vrot.slane %v899, %v903
        %v905 = vlaneseq
        %v906 = vshrl.u32 %v905, 7
        %v907 = vsub.s32 1, %v906
        %v908 = vrot.slane %v899, %v907
        %v911 = vmul.f32 %v894, %v904
        %v912 = vmul.f32 %v895, %v908
        %v913 = vmul.f32 %v896, %v904
        %v914 = vmul.f32 %v897, %v908
        %vm919 = vcmask 1044480
        %v920 = vrot.slane %v911, 3
        %v921 = vrot.slane %v913, 3
        %v922 = vsel %vm919, %v920, %v921
        %v923 = vrot.slane %v912, 3
        %v924 = vrot.slane %v914, 3
        %v925 = vsel %vm919, %v923, %v924
        %v928 = vadd.f32 %v892, %v922
        %v929 = vadd.f32 %v893, %v925
        %v930 = vld [vmem:[%s3] sm:$0x3]
        %v932 = vlaneseq
        %v933 = vshrl.u32 %v932, 7
        %v934 = vsub.s32 0, %v933
        %v935 = vrot.slane %v930, %v934
        %v936 = vlaneseq
        %v937 = vshrl.u32 %v936, 7
        %v938 = vsub.s32 1, %v937
        %v939 = vrot.slane %v930, %v938
        %v942 = vadd.f32 %v928, %v935
        %v943 = vadd.f32 %v929, %v939
        %v944 = vsub.f32 0.0, %v942
        %v945 = vsub.f32 0.0, %v943
        %v946 = vmul.f32 %v944, 1.442695
        %v947 = vpow.pop %v946
        %v948 = vmul.f32 %v945, 1.442695
        %v949 = vpow.pop %v948
        %v950 = vadd.f32 %v947, 1.0
        %v951 = vadd.f32 %v949, 1.0
        %v952 = vrcp.pop %v950
        %v953 = vmul.f32 1.0, %v952
        %v954 = vrcp.pop %v951
        %v955 = vmul.f32 1.0, %v954
        %v956 = vmul.f32 %v942, %v953
        %v957 = vmul.f32 %v943, %v955
        %v958 = vpack.c.bf16 %v956, %v956
        %v959 = vpack.c.bf16 %v957, %v957
        %v960 = vld [vmem:[#allocation14] sm:$0xff]
        %v961 = vld [vmem:[#allocation14 + $0x8] sm:$0xff]
        %v962 = vld [vmem:[#allocation14 + $0x10] sm:$0xff]
        %v963 = vld [vmem:[#allocation14 + $0x18] sm:$0xff]
        %v964 = vld [vmem:[#allocation14 + $0x20] sm:$0xff]
        %v970 = vunpack.c.l.b16 %v960
        %v971 = vunpack.c.h.b16 %v960
        %v972 = vunpack.c.l.b16 %v961
        %v973 = vunpack.c.h.b16 %v961
        %v974 = vunpack.c.l.b16 %v962
        %v975 = vunpack.c.h.b16 %v962
        %v976 = vunpack.c.l.b16 %v963
        %v977 = vunpack.c.h.b16 %v963
        %v978 = vunpack.c.l.b16 %v964
        %v979 = vunpack.c.h.b16 %v964
        %v980 = vpack.c.b16 %v972, %v970
        %v981 = vpack.c.b16 %v973, %v971
        %v982 = vpack.c.b16 %v976, %v974
        %v983 = vpack.c.b16 %v977, %v975
        %v984 = vpack.c.b16 %v978, %v978
        %v985 = vpack.c.b16 %v979, %v979
        %992 = vmatprep.subr.bf16.mxu0 0
        %993 = vmatpush1.bf16.xpose.msra.mxu0 0
        %994 = vmatprep.subr.bf16.mxu0 0
        %995 = vmatpush1.bf16.xpose.msra.mxu0 0
        %996 = vmatprep.subr.bf16.mxu0 0
        %997 = vmatpush1.bf16.xpose.msra.mxu0 0
        %998 = vmatprep.subr.bf16.mxu0 0
        %999 = vmatpush1.bf16.xpose.msra.mxu0 0
        %1000 = vmatprep.subr.bf16.mxu0 0
        %1001 = vmatpush1.bf16.xpose.msra.mxu0 0
        %1002 = vmatprep.subr.bf16.mxu0 %v985
        %1003 = vmatpush1.bf16.xpose.msra.mxu0 %v984
        %1004 = vmatprep.subr.bf16.mxu0 %v983
        %1005 = vmatpush1.bf16.xpose.msra.mxu0 %v982
        %1006 = vmatprep.subr.bf16.mxu0 %v981
        %1007 = vmatpush1.bf16.xpose.msra.mxu0 %v980
        %1008 = vmatprep.subr.bf16.mxu0 0
        %1009 = vmatpush2.bf16.xpose.msra.mxu0 0
        %1010 = vmatprep.subr.bf16.mxu0 0
        %1011 = vmatpush2.bf16.xpose.msra.mxu0 0
        %1012 = vmatprep.subr.bf16.mxu0 0
        %1013 = vmatpush2.bf16.xpose.msra.mxu0 0
        %1014 = vmatprep.subr.bf16.mxu0 0
        %1015 = vmatpush2.bf16.xpose.msra.mxu0 0
        %1016 = vmatprep.subr.bf16.mxu0 0
        %1017 = vmatpush2.bf16.xpose.msra.mxu0 0
        %1018 = vmatprep.subr.bf16.mxu0 0
        %1019 = vmatpush2.bf16.xpose.msra.mxu0 0
        %1020 = vmatprep.subr.bf16.mxu0 0
        %1021 = vmatpush2.bf16.xpose.msra.mxu0 0
        %1022 = vmatprep.subr.bf16.mxu0 0
        %1023 = vmatpush2.bf16.xpose.msra.mxu0 0
        %1024 = vmatprep.mubr.bf16.mxu0 %v959
        %1025 = vmatmul.mubr.bf16.gmra.mxu0 %v958
        %v1026 = vpop.f32.mrf.mxu0
        %v1027 = vadd.f32 0.0, %v1026
        %v1028 = vpop.f32.mrf.mxu0
        %v1029 = vpop.f32.mrf.mxu0
        %v1030 = vpop.f32.mrf.mxu0
        %1031 = vdwg.mxu0
        %v1032 = vpack.c.bf16 %v1027, %v1027
        %v1033 = vld [vmem:[%s5] sm:$0xf]
        %v1034 = vld [vmem:[%s5 + $0x4] sm:$0xf]
        %v1035 = vld [vmem:[%s5 + $0x8] sm:$0xf]
        %v1036 = vld [vmem:[%s5 + $0xc] sm:$0xf]
        %v1037 = vld [vmem:[%s5 + $0x10] sm:$0xf]
        %v1038 = vld [vmem:[%s5 + $0x14] sm:$0xf]
        %v1039 = vld [vmem:[%s5 + $0x18] sm:$0xf]
        %v1040 = vld [vmem:[%s5 + $0x1c] sm:$0xf]
        %v1041 = vld [vmem:[%s5 + $0x20] sm:$0xf]
        %v1042 = vld [vmem:[%s5 + $0x24] sm:$0xf]
        %v1043 = vld [vmem:[%s5 + $0x28] sm:$0xf]
        %v1044 = vld [vmem:[%s5 + $0x2c] sm:$0xf]
        %v1045 = vld [vmem:[%s5 + $0x30] sm:$0xf]
        %v1046 = vld [vmem:[%s5 + $0x34] sm:$0xf]
        %v1047 = vld [vmem:[%s5 + $0x38] sm:$0xf]
        %v1048 = vld [vmem:[%s5 + $0x3c] sm:$0xf]
        %v1049 = vld [vmem:[%s5 + $0x40] sm:$0xf]
        %v1050 = vld [vmem:[%s5 + $0x44] sm:$0xf]
        %v1051 = vld [vmem:[%s5 + $0x48] sm:$0xf]
        %v1052 = vld [vmem:[%s5 + $0x4c] sm:$0xf]
        %v1053 = vld [vmem:[%s5 + $0x50] sm:$0xf]
        %v1054 = vld [vmem:[%s5 + $0x54] sm:$0xf]
        %v1055 = vld [vmem:[%s5 + $0x58] sm:$0xf]
        %v1056 = vld [vmem:[%s5 + $0x5c] sm:$0xf]
        %v1057 = vld [vmem:[%s5 + $0x60] sm:$0xf]
        %v1058 = vld [vmem:[%s5 + $0x64] sm:$0xf]
        %v1059 = vld [vmem:[%s5 + $0x68] sm:$0xf]
        %v1060 = vld [vmem:[%s5 + $0x6c] sm:$0xf]
        %v1061 = vld [vmem:[%s5 + $0x70] sm:$0xf]
        %v1062 = vld [vmem:[%s5 + $0x74] sm:$0xf]
        %v1063 = vld [vmem:[%s5 + $0x78] sm:$0xf]
        %v1064 = vld [vmem:[%s5 + $0x7c] sm:$0xf]
        %v1065 = vld [vmem:[%s6] sm:$0x3]
        %v1067 = vlaneseq
        %v1068 = vshrl.u32 %v1067, 7
        %v1069 = vsub.s32 0, %v1068
        %v1070 = vrot.slane %v1065, %v1069
        %v1071 = vlaneseq
        %v1072 = vshrl.u32 %v1071, 7
        %v1073 = vsub.s32 1, %v1072
        %v1074 = vrot.slane %v1065, %v1073
        %v1109 = vunpack.c.l.b16 %v1033
        %v1110 = vunpack.c.l.b16 %v1034
        %v1111 = vunpack.c.l.b16 %v1035
        %v1112 = vunpack.c.l.b16 %v1036
        %v1113 = vunpack.c.l.b16 %v1037
        %v1114 = vunpack.c.l.b16 %v1038
        %v1115 = vunpack.c.l.b16 %v1039
        %v1116 = vunpack.c.l.b16 %v1040
        %v1117 = vunpack.c.l.b16 %v1041
        %v1118 = vunpack.c.l.b16 %v1042
        %v1119 = vunpack.c.l.b16 %v1043
        %v1120 = vunpack.c.l.b16 %v1044
        %v1121 = vunpack.c.l.b16 %v1045
        %v1122 = vunpack.c.l.b16 %v1046
        %v1123 = vunpack.c.l.b16 %v1047
        %v1124 = vunpack.c.l.b16 %v1048
        %v1125 = vunpack.c.l.b16 %v1049
        %v1126 = vunpack.c.l.b16 %v1050
        %v1127 = vunpack.c.l.b16 %v1051
        %v1128 = vunpack.c.l.b16 %v1052
        %v1129 = vunpack.c.l.b16 %v1053
        %v1130 = vunpack.c.l.b16 %v1054
        %v1131 = vunpack.c.l.b16 %v1055
        %v1132 = vunpack.c.l.b16 %v1056
        %v1133 = vunpack.c.l.b16 %v1057
        %v1134 = vunpack.c.l.b16 %v1058
        %v1135 = vunpack.c.l.b16 %v1059
        %v1136 = vunpack.c.l.b16 %v1060
        %v1137 = vunpack.c.l.b16 %v1061
        %v1138 = vunpack.c.l.b16 %v1062
        %v1139 = vunpack.c.l.b16 %v1063
        %v1140 = vunpack.c.l.b16 %v1064
        %v1141 = vpack.c.b16 %v1110, %v1109
        %v1142 = vpack.c.b16 %v1112, %v1111
        %v1143 = vpack.c.b16 %v1114, %v1113
        %v1144 = vpack.c.b16 %v1116, %v1115
        %v1145 = vpack.c.b16 %v1118, %v1117
        %v1146 = vpack.c.b16 %v1120, %v1119
        %v1147 = vpack.c.b16 %v1122, %v1121
        %v1148 = vpack.c.b16 %v1124, %v1123
        %v1149 = vpack.c.b16 %v1126, %v1125
        %v1150 = vpack.c.b16 %v1128, %v1127
        %v1151 = vpack.c.b16 %v1130, %v1129
        %v1152 = vpack.c.b16 %v1132, %v1131
        %v1153 = vpack.c.b16 %v1134, %v1133
        %v1154 = vpack.c.b16 %v1136, %v1135
        %v1155 = vpack.c.b16 %v1138, %v1137
        %v1156 = vpack.c.b16 %v1140, %v1139
        %vm1157 = vcmask 64512
        %v1159 = vsel %vm1157, %v1032, 0
        %v1162 = vsel %vm1157, %v1141, 0
        %v1165 = vsel %vm1157, %v1142, 0
        %v1168 = vsel %vm1157, %v1143, 0
        %v1171 = vsel %vm1157, %v1144, 0
        %v1174 = vsel %vm1157, %v1145, 0
        %v1177 = vsel %vm1157, %v1146, 0
        %v1180 = vsel %vm1157, %v1147, 0
        %v1183 = vsel %vm1157, %v1148, 0
        %v1186 = vsel %vm1157, %v1149, 0
        %v1189 = vsel %vm1157, %v1150, 0
        %v1192 = vsel %vm1157, %v1151, 0
        %v1195 = vsel %vm1157, %v1152, 0
        %v1198 = vsel %vm1157, %v1153, 0
        %v1201 = vsel %vm1157, %v1154, 0
        %v1204 = vsel %vm1157, %v1155, 0
        %v1207 = vsel %vm1157, %v1156, 0
        %1209 = vmatprep.subr.bf16.mxu0 0
        %1210 = vmatpush1.bf16.xpose.msra.mxu0 %v1183
        %1211 = vmatprep.subr.bf16.mxu0 0
        %1212 = vmatpush1.bf16.xpose.msra.mxu0 %v1180
        %1213 = vmatprep.subr.bf16.mxu0 0
        %1214 = vmatpush1.bf16.xpose.msra.mxu0 %v1177
        %1215 = vmatprep.subr.bf16.mxu0 0
        %1216 = vmatpush1.bf16.xpose.msra.mxu0 %v1174
        %1217 = vmatprep.subr.bf16.mxu0 0
        %1218 = vmatpush1.bf16.xpose.msra.mxu0 %v1171
        %1219 = vmatprep.subr.bf16.mxu0 0
        %1220 = vmatpush1.bf16.xpose.msra.mxu0 %v1168
        %1221 = vmatprep.subr.bf16.mxu0 0
        %1222 = vmatpush1.bf16.xpose.msra.mxu0 %v1165
        %1223 = vmatprep.subr.bf16.mxu0 0
        %1224 = vmatpush1.bf16.xpose.msra.mxu0 %v1162
        %1225 = vmatprep.subr.bf16.mxu0 0
        %1226 = vmatpush2.bf16.xpose.msra.mxu0 %v1207
        %1227 = vmatprep.subr.bf16.mxu0 0
        %1228 = vmatpush2.bf16.xpose.msra.mxu0 %v1204
        %1229 = vmatprep.subr.bf16.mxu0 0
        %1230 = vmatpush2.bf16.xpose.msra.mxu0 %v1201
        %1231 = vmatprep.subr.bf16.mxu0 0
        %1232 = vmatpush2.bf16.xpose.msra.mxu0 %v1198
        %1233 = vmatprep.subr.bf16.mxu0 0
        %1234 = vmatpush2.bf16.xpose.msra.mxu0 %v1195
        %1235 = vmatprep.subr.bf16.mxu0 0
        %1236 = vmatpush2.bf16.xpose.msra.mxu0 %v1192
        %1237 = vmatprep.subr.bf16.mxu0 0
        %1238 = vmatpush2.bf16.xpose.msra.mxu0 %v1189
        %1239 = vmatprep.subr.bf16.mxu0 0
        %1240 = vmatpush2.bf16.xpose.msra.mxu0 %v1186
        %1241 = vmatprep.mubr.bf16.mxu0 0
        %1242 = vmatmul.mubr.bf16.gmra.mxu0 %v1159
        %v1243 = vpop.f32.mrf.mxu0
        %v1244 = vadd.f32 %v1070, %v1243
        %v1245 = vpop.f32.mrf.mxu0
        %v1246 = vadd.f32 %v1074, %v1245
        %v1247 = vpop.f32.mrf.mxu0
        %v1248 = vpop.f32.mrf.mxu0
        %1249 = vdwg.mxu0
        %vm1250 = vcmp.gt.f32.partialorder %v1244, 20.0
        %vm1251 = vcmp.gt.f32.partialorder %v1246, 20.0
        %v1252 = vsel %vm1250, 0.0, %v1244
        %v1253 = vsel %vm1251, 0.0, %v1246
        %v1254 = vmul.f32 %v1252, 1.442695
        %v1255 = vpow.pop %v1254
        %v1256 = vmul.f32 %v1253, 1.442695
        %v1257 = vpow.pop %v1256
        %v1258 = vadd.f32 %v1255, 1.0
        %v1259 = vadd.f32 %v1257, 1.0
        %v1260 = vlog2.pop %v1258
        %v1261 = vmul.f32 %v1260, 0.6931472
        %v1262 = vlog2.pop %v1259
        %v1263 = vmul.f32 %v1262, 0.6931472
        %v1264 = vsel %vm1250, %v1244, %v1261
        %v1265 = vsel %vm1251, %v1246, %v1263
        %v1266 = vld [vmem:[#allocation15] sm:$0xff]
        %v1267 = vld [vmem:[#allocation15 + $0x8] sm:$0xff]
        %v1268 = vld [vmem:[#allocation15 + $0x10] sm:$0xff]
        %v1269 = vld [vmem:[#allocation15 + $0x18] sm:$0xff]
        %1270 = vst [vmem:[#allocation4] sm:$0xff] %v1264
        %1271 = vst [vmem:[#allocation4 + $0x8] sm:$0xff] %v1265
        %v1272 = vmul.f32 %v1264, %v956
        %v1273 = vmul.f32 %v1265, %v957
        %1274 = vst [vmem:[#allocation5] sm:$0xff] %v1272
        %1275 = vst [vmem:[#allocation5 + $0x8] sm:$0xff] %v1273
        %1277 = vrot.lane.b32.xlu0 %v1027, 120
        %v1278 = vpop.permute.xlu0 %1277
        %vm1280 = vcmask 130048
        %1281 = vst.msk [vmem:[#allocation6] sm:$0xff] %vm1280, %v1278
        %1282 = vrot.lane.b32.xlu0 %v1027, 104
        %v1283 = vpop.permute.xlu0 %1282
        %1285 = vst.msk [vmem:[#allocation7] sm:$0xff] %vm1280, %v1283
        %v1286 = vld [vmem:[#allocation3] sm:$0xff]
        %v1287 = vld [vmem:[#allocation3 + $0x8] sm:$0xff]
        %v1288 = vld [vmem:[#allocation3 + $0x10] sm:$0xff]
        %v1289 = vld [vmem:[#allocation3 + $0x18] sm:$0xff]
        %v1290 = vld [vmem:[#allocation4] ss:$8 sm:$0x3]
        %v1291 = vld [vmem:[#allocation5] ss:$8 sm:$0x3]
        %v1292 = vld [vmem:[#allocation6] sm:$0x1]
        %v1293 = vld [vmem:[#allocation7] sm:$0x1]
        %v1295 = vlaneseq
        %v1296 = vshrl.u32 %v1295, 7
        %v1297 = vsub.s32 0, %v1296
        %v1298 = vrot.slane %v1290, %v1297
        %v1299 = vlaneseq
        %v1300 = vshrl.u32 %v1299, 7
        %v1301 = vsub.s32 1, %v1300
        %v1302 = vrot.slane %v1290, %v1301
        %v1305 = vmul.f32 %v1298, %v1266
        %v1306 = vmul.f32 %v1302, %v1267
        %v1307 = vmul.f32 %v1298, %v1268
        %v1308 = vmul.f32 %v1302, %v1269
        %v1309 = vmul.f32 %v1305, 1.442695
        %v1310 = vpow.pop %v1309
        %v1311 = vmul.f32 %v1306, 1.442695
        %v1312 = vpow.pop %v1311
        %v1313 = vmul.f32 %v1307, 1.442695
        %v1314 = vpow.pop %v1313
        %v1315 = vmul.f32 %v1308, 1.442695
        %v1316 = vpow.pop %v1315
        %1317 = vxpose.xlu0.b32.start [1/16] %v1292, 128
        %1318 = vxpose.xlu0.b32.cont [2/16] 0.0, 128
        %1319 = vxpose.xlu0.b32.cont [3/16] 0.0, 128
        %1320 = vxpose.xlu0.b32.cont [4/16] 0.0, 128
        %1321 = vxpose.xlu0.b32.cont [5/16] 0.0, 128
        %1322 = vxpose.xlu0.b32.cont [6/16] 0.0, 128
        %1323 = vxpose.xlu0.b32.cont [7/16] 0.0, 128
        %1324 = vxpose.xlu0.b32.cont [8/16] 0.0, 128
        %1325 = vxpose.xlu0.b32.cont [9/16] 0.0, 128
        %1326 = vxpose.xlu0.b32.cont [10/16] 0.0, 128
        %1327 = vxpose.xlu0.b32.cont [11/16] 0.0, 128
        %1328 = vxpose.xlu0.b32.cont [12/16] 0.0, 128
        %1329 = vxpose.xlu0.b32.cont [13/16] 0.0, 128
        %1330 = vxpose.xlu0.b32.cont [14/16] 0.0, 128
        %1331 = vxpose.xlu0.b32.cont [15/16] 0.0, 128
        %1332 = vxpose.xlu0.b32.end [16/16] 0.0, 128
        %v1333 = vpop.trf.xlu0
        %v1334 = vpop.trf.xlu0
        %v1335 = vpop.trf.xlu0
        %v1336 = vpop.trf.xlu0
        %v1337 = vpop.trf.xlu0
        %v1338 = vpop.trf.xlu0
        %v1339 = vpop.trf.xlu0
        %v1340 = vpop.trf.xlu0
        %v1341 = vpop.trf.xlu0
        %v1342 = vpop.trf.xlu0
        %v1343 = vpop.trf.xlu0
        %v1344 = vpop.trf.xlu0
        %v1345 = vpop.trf.xlu0
        %v1346 = vpop.trf.xlu0
        %v1347 = vpop.trf.xlu0
        %v1348 = vpop.trf.xlu0
        %v1350 = vlaneseq
        %v1351 = vshrl.u32 %v1350, 7
        %v1352 = vsub.s32 0, %v1351
        %v1353 = vrot.slane %v1291, %v1352
        %v1354 = vlaneseq
        %v1355 = vshrl.u32 %v1354, 7
        %v1356 = vsub.s32 1, %v1355
        %v1357 = vrot.slane %v1291, %v1356
        %vm1358 = vcmask 7168
        %v1360 = vsel %vm1358, %v1333, 0
        %v1363 = vsel %vm1358, %v1334, 0
        %vm1365 = vcmask 1040384
        %v1366 = vsel %vm1365, %v1353, 0
        %v1368 = vsel %vm1365, %v1357, 0
        %1370 = vmatprep.subr.mxu0 0.0
        %1371 = vmatpush1.msra.mxu0 0.0
        %1372 = vmatprep.subr.mxu0 0.0
        %1373 = vmatpush1.msra.mxu0 0.0
        %1374 = vmatprep.subr.mxu0 0.0
        %1375 = vmatpush1.msra.mxu0 0.0
        %1376 = vmatprep.subr.mxu0 0.0
        %1377 = vmatpush1.msra.mxu0 0.0
        %1378 = vmatprep.subr.mxu0 0.0
        %1379 = vmatpush1.msra.mxu0 0.0
        %1380 = vmatprep.subr.mxu0 0.0
        %1381 = vmatpush1.msra.mxu0 0.0
        %1382 = vmatprep.subr.mxu0 0.0
        %1383 = vmatpush1.msra.mxu0 0.0
        %1384 = vmatprep.subr.mxu0 0.0
        %1385 = vmatpush1.msra.mxu0 0.0
        %1386 = vmatprep.subr.mxu0 0.0
        %1387 = vmatpush1.msra.mxu0 0.0
        %1388 = vmatprep.subr.mxu0 0.0
        %1389 = vmatpush1.msra.mxu0 0.0
        %1390 = vmatprep.subr.mxu0 0.0
        %1391 = vmatpush1.msra.mxu0 0.0
        %1392 = vmatprep.subr.mxu0 0.0
        %1393 = vmatpush1.msra.mxu0 0.0
        %1394 = vmatprep.subr.mxu0 0.0
        %1395 = vmatpush1.msra.mxu0 0.0
        %1396 = vmatprep.subr.mxu0 0.0
        %1397 = vmatpush1.msra.mxu0 0.0
        %1398 = vmatprep.subr.mxu0 0.0
        %1399 = vmatpush1.msra.mxu0 0.0
        %1400 = vmatprep.subr.mxu0 %v1368
        %1401 = vmatpush1.msra.mxu0 %v1366
        %1402 = vmatprep.subr.mxu0 0.0
        %1403 = vmatpush2.msra.mxu0 0.0
        %1404 = vmatprep.subr.mxu0 0.0
        %1405 = vmatpush2.msra.mxu0 0.0
        %1406 = vmatprep.subr.mxu0 0.0
        %1407 = vmatpush2.msra.mxu0 0.0
        %1408 = vmatprep.subr.mxu0 0.0
        %1409 = vmatpush2.msra.mxu0 0.0
        %1410 = vmatprep.subr.mxu0 0.0
        %1411 = vmatpush2.msra.mxu0 0.0
        %1412 = vmatprep.subr.mxu0 0.0
        %1413 = vmatpush2.msra.mxu0 0.0
        %1414 = vmatprep.subr.mxu0 0.0
        %1415 = vmatpush2.msra.mxu0 0.0
        %1416 = vmatprep.subr.mxu0 0.0
        %1417 = vmatpush2.msra.mxu0 0.0
        %1418 = vmatprep.subr.mxu0 0.0
        %1419 = vmatpush2.msra.mxu0 0.0
        %1420 = vmatprep.subr.mxu0 0.0
        %1421 = vmatpush2.msra.mxu0 0.0
        %1422 = vmatprep.subr.mxu0 0.0
        %1423 = vmatpush2.msra.mxu0 0.0
        %1424 = vmatprep.subr.mxu0 0.0
        %1425 = vmatpush2.msra.mxu0 0.0
        %1426 = vmatprep.subr.mxu0 0.0
        %1427 = vmatpush2.msra.mxu0 0.0
        %1428 = vmatprep.subr.mxu0 0.0
        %1429 = vmatpush2.msra.mxu0 0.0
        %1430 = vmatprep.subr.mxu0 0.0
        %1431 = vmatpush2.msra.mxu0 0.0
        %1432 = vmatprep.subr.mxu0 0.0
        %1433 = vmatpush2.msra.mxu0 0.0
        %1434 = vmatprep.mubr.f32.mxu0 0.0
        %1435 = vmatmul.mubr.f32.gmra.mxu0 %v1360
        %v1436 = vpop.f32.mrf.mxu0
        %v1437 = vadd.f32 0.0, %v1436
        %v1438 = vpop.f32.mrf.mxu0
        %v1439 = vadd.f32 0.0, %v1438
        %1440 = vmatprep.mubr.f32.mxu0 0.0
        %1441 = vmatmul.mubr.f32.gmra.mxu0 %v1363
        %v1442 = vpop.f32.mrf.mxu0
        %v1443 = vadd.f32 0.0, %v1442
        %v1444 = vpop.f32.mrf.mxu0
        %v1445 = vadd.f32 0.0, %v1444
        %1446 = vdwg.mxu0
        %v1447 = vmul.f32 %v1286, %v1310
        %v1448 = vmul.f32 %v1287, %v1312
        %v1449 = vmul.f32 %v1288, %v1314
        %v1450 = vmul.f32 %v1289, %v1316
        %v1451 = vadd.f32 %v1447, %v1437
        %v1452 = vadd.f32 %v1448, %v1439
        %v1453 = vadd.f32 %v1449, %v1443
        %v1454 = vadd.f32 %v1450, %v1445
        %v1456 = vsel %vm1280, %v1293, 0
        %1458 = vmatprep.subr.mxu0 0.0
        %1459 = vmatpush1.msra.mxu0 0.0
        %1460 = vmatprep.subr.mxu0 0.0
        %1461 = vmatpush1.msra.mxu0 0.0
        %1462 = vmatprep.subr.mxu0 0.0
        %1463 = vmatpush1.msra.mxu0 0.0
        %1464 = vmatprep.subr.mxu0 0.0
        %1465 = vmatpush1.msra.mxu0 0.0
        %1466 = vmatprep.subr.mxu0 0.0
        %1467 = vmatpush1.msra.mxu0 0.0
        %1468 = vmatprep.subr.mxu0 0.0
        %1469 = vmatpush1.msra.mxu0 0.0
        %1470 = vmatprep.subr.mxu0 0.0
        %1471 = vmatpush1.msra.mxu0 0.0
        %1472 = vmatprep.subr.mxu0 0.0
        %1473 = vmatpush1.msra.mxu0 0.0
        %1474 = vmatprep.subr.mxu0 0.0
        %1475 = vmatpush1.msra.mxu0 0.0
        %1476 = vmatprep.subr.mxu0 0.0
        %1477 = vmatpush1.msra.mxu0 0.0
        %1478 = vmatprep.subr.mxu0 0.0
        %1479 = vmatpush1.msra.mxu0 0.0
        %1480 = vmatprep.subr.mxu0 0.0
        %1481 = vmatpush1.msra.mxu0 0.0
        %1482 = vmatprep.subr.mxu0 0.0
        %1483 = vmatpush1.msra.mxu0 0.0
        %1484 = vmatprep.subr.mxu0 0.0
        %1485 = vmatpush1.msra.mxu0 0.0
        %1486 = vmatprep.subr.mxu0 %v1454
        %1487 = vmatpush1.msra.mxu0 %v1453
        %1488 = vmatprep.subr.mxu0 %v1452
        %1489 = vmatpush1.msra.mxu0 %v1451
        %1490 = vmatprep.subr.mxu0 0.0
        %1491 = vmatpush2.msra.mxu0 0.0
        %1492 = vmatprep.subr.mxu0 0.0
        %1493 = vmatpush2.msra.mxu0 0.0
        %1494 = vmatprep.subr.mxu0 0.0
        %1495 = vmatpush2.msra.mxu0 0.0
        %1496 = vmatprep.subr.mxu0 0.0
        %1497 = vmatpush2.msra.mxu0 0.0
        %1498 = vmatprep.subr.mxu0 0.0
        %1499 = vmatpush2.msra.mxu0 0.0
        %1500 = vmatprep.subr.mxu0 0.0
        %1501 = vmatpush2.msra.mxu0 0.0
        %1502 = vmatprep.subr.mxu0 0.0
        %1503 = vmatpush2.msra.mxu0 0.0
        %1504 = vmatprep.subr.mxu0 0.0
        %1505 = vmatpush2.msra.mxu0 0.0
        %1506 = vmatprep.subr.mxu0 0.0
        %1507 = vmatpush2.msra.mxu0 0.0
        %1508 = vmatprep.subr.mxu0 0.0
        %1509 = vmatpush2.msra.mxu0 0.0
        %1510 = vmatprep.subr.mxu0 0.0
        %1511 = vmatpush2.msra.mxu0 0.0
        %1512 = vmatprep.subr.mxu0 0.0
        %1513 = vmatpush2.msra.mxu0 0.0
        %1514 = vmatprep.subr.mxu0 0.0
        %1515 = vmatpush2.msra.mxu0 0.0
        %1516 = vmatprep.subr.mxu0 0.0
        %1517 = vmatpush2.msra.mxu0 0.0
        %1518 = vmatprep.subr.mxu0 0.0
        %1519 = vmatpush2.msra.mxu0 0.0
        %1520 = vmatprep.subr.mxu0 0.0
        %1521 = vmatpush2.msra.mxu0 0.0
        %1522 = vmatprep.mubr.f32.mxu0 0.0
        %1523 = vmatmul.mubr.f32.gmra.mxu0 %v1456
        %v1524 = vpop.f32.mrf.mxu0
        %v1525 = vadd.f32 0.0, %v1524
        %v1526 = vpop.f32.mrf.mxu0
        %v1527 = vadd.f32 0.0, %v1526
        %1528 = vdwg.mxu0
        %v1531 = vcombine.low %v1525, %v1527
        %v1533 = vunpack.c.l.s4 1966171168
        %v1534 = vunpack.c.0.s8 %v1533
        %v1535 = vlaneseq
        %v1536 = vshrl.u32 %v1535, 7
        %v1537 = vsub.s32 %v1534, %v1536
        %v1538 = vrot.slane %v1531, %v1537
        %v1540 = vunpack.c.l.s4 1966171168
        %v1541 = vunpack.c.0.s8 %v1540
        %v1542 = vlaneseq
        %v1543 = vshrl.u32 %v1542, 7
        %v1544 = vsub.s32 %v1541, %v1543
        %v1545 = vrot.slane %v1538, %v1544
        %v1547 = vlaneseq
        %vm1548 = vcmp.ge.s32.totalorder %v1547, 0
        %vm1549 = vcmp.lt.s32.totalorder %v1547, 256
        %vm1550 = vmand %vm1548, %vm1549
        %1551 = vst.msk [vmem:[#allocation8] ss:$8 sm:$0x3] %vm1550, %v1545
        %1552 = vst.msk [vmem:[#allocation8] ss:$8 sm:$0x0] %vm1550, %v1545
        %s1553 = scalar_lea.vmem [#allocation4], 1
        %v1554 = vld [vmem:[%s1553] ss:$8 sm:$0x3]
        %s1555 = scalar_lea.vmem [#allocation5], 1
        %v1556 = vld [vmem:[%s1555] ss:$8 sm:$0x3]
        %v1557 = vld [vmem:[#allocation6 + $0x1] sm:$0x1]
        %v1558 = vld [vmem:[#allocation7 + $0x1] sm:$0x1]
        %v1560 = vlaneseq
        %v1561 = vshrl.u32 %v1560, 7
        %v1562 = vsub.s32 0, %v1561
        %v1563 = vrot.slane %v1554, %v1562
        %v1564 = vlaneseq
        %v1565 = vshrl.u32 %v1564, 7
        %v1566 = vsub.s32 1, %v1565
        %v1567 = vrot.slane %v1554, %v1566
        %v1570 = vmul.f32 %v1563, %v1266
        %v1571 = vmul.f32 %v1567, %v1267
        %v1572 = vmul.f32 %v1563, %v1268
        %v1573 = vmul.f32 %v1567, %v1269
        %v1574 = vmul.f32 %v1570, 1.442695
        %v1575 = vpow.pop %v1574
        %v1576 = vmul.f32 %v1571, 1.442695
        %v1577 = vpow.pop %v1576
        %v1578 = vmul.f32 %v1572, 1.442695
        %v1579 = vpow.pop %v1578
        %v1580 = vmul.f32 %v1573, 1.442695
        %v1581 = vpow.pop %v1580
        %1582 = vxpose.xlu0.b32.start [1/16] %v1557, 128
        %1583 = vxpose.xlu0.b32.cont [2/16] 0.0, 128
        %1584 = vxpose.xlu0.b32.cont [3/16] 0.0, 128
        %1585 = vxpose.xlu0.b32.cont [4/16] 0.0, 128
        %1586 = vxpose.xlu0.b32.cont [5/16] 0.0, 128
        %1587 = vxpose.xlu0.b32.cont [6/16] 0.0, 128
        %1588 = vxpose.xlu0.b32.cont [7/16] 0.0, 128
        %1589 = vxpose.xlu0.b32.cont [8/16] 0.0, 128
        %1590 = vxpose.xlu0.b32.cont [9/16] 0.0, 128
        %1591 = vxpose.xlu0.b32.cont [10/16] 0.0, 128
        %1592 = vxpose.xlu0.b32.cont [11/16] 0.0, 128
        %1593 = vxpose.xlu0.b32.cont [12/16] 0.0, 128
        %1594 = vxpose.xlu0.b32.cont [13/16] 0.0, 128
        %1595 = vxpose.xlu0.b32.cont [14/16] 0.0, 128
        %1596 = vxpose.xlu0.b32.cont [15/16] 0.0, 128
        %1597 = vxpose.xlu0.b32.end [16/16] 0.0, 128
        %v1598 = vpop.trf.xlu0
        %v1599 = vpop.trf.xlu0
        %v1600 = vpop.trf.xlu0
        %v1601 = vpop.trf.xlu0
        %v1602 = vpop.trf.xlu0
        %v1603 = vpop.trf.xlu0
        %v1604 = vpop.trf.xlu0
        %v1605 = vpop.trf.xlu0
        %v1606 = vpop.trf.xlu0
        %v1607 = vpop.trf.xlu0
        %v1608 = vpop.trf.xlu0
        %v1609 = vpop.trf.xlu0
        %v1610 = vpop.trf.xlu0
        %v1611 = vpop.trf.xlu0
        %v1612 = vpop.trf.xlu0
        %v1613 = vpop.trf.xlu0
        %v1615 = vlaneseq
        %v1616 = vshrl.u32 %v1615, 7
        %v1617 = vsub.s32 0, %v1616
        %v1618 = vrot.slane %v1556, %v1617
        %v1619 = vlaneseq
        %v1620 = vshrl.u32 %v1619, 7
        %v1621 = vsub.s32 1, %v1620
        %v1622 = vrot.slane %v1556, %v1621
        %v1624 = vsel %vm1358, %v1598, 0
        %v1627 = vsel %vm1358, %v1599, 0
        %v1629 = vsel %vm1365, %v1618, 0
        %v1631 = vsel %vm1365, %v1622, 0
        %1633 = vmatprep.subr.mxu0 0.0
        %1634 = vmatpush1.msra.mxu0 0.0
        %1635 = vmatprep.subr.mxu0 0.0
        %1636 = vmatpush1.msra.mxu0 0.0
        %1637 = vmatprep.subr.mxu0 0.0
        %1638 = vmatpush1.msra.mxu0 0.0
        %1639 = vmatprep.subr.mxu0 0.0
        %1640 = vmatpush1.msra.mxu0 0.0
        %1641 = vmatprep.subr.mxu0 0.0
        %1642 = vmatpush1.msra.mxu0 0.0
        %1643 = vmatprep.subr.mxu0 0.0
        %1644 = vmatpush1.msra.mxu0 0.0
        %1645 = vmatprep.subr.mxu0 0.0
        %1646 = vmatpush1.msra.mxu0 0.0
        %1647 = vmatprep.subr.mxu0 0.0
        %1648 = vmatpush1.msra.mxu0 0.0
        %1649 = vmatprep.subr.mxu0 0.0
        %1650 = vmatpush1.msra.mxu0 0.0
        %1651 = vmatprep.subr.mxu0 0.0
        %1652 = vmatpush1.msra.mxu0 0.0
        %1653 = vmatprep.subr.mxu0 0.0
        %1654 = vmatpush1.msra.mxu0 0.0
        %1655 = vmatprep.subr.mxu0 0.0
        %1656 = vmatpush1.msra.mxu0 0.0
        %1657 = vmatprep.subr.mxu0 0.0
        %1658 = vmatpush1.msra.mxu0 0.0
        %1659 = vmatprep.subr.mxu0 0.0
        %1660 = vmatpush1.msra.mxu0 0.0
        %1661 = vmatprep.subr.mxu0 0.0
        %1662 = vmatpush1.msra.mxu0 0.0
        %1663 = vmatprep.subr.mxu0 %v1631
        %1664 = vmatpush1.msra.mxu0 %v1629
        %1665 = vmatprep.subr.mxu0 0.0
        %1666 = vmatpush2.msra.mxu0 0.0
        %1667 = vmatprep.subr.mxu0 0.0
        %1668 = vmatpush2.msra.mxu0 0.0
        %1669 = vmatprep.subr.mxu0 0.0
        %1670 = vmatpush2.msra.mxu0 0.0
        %1671 = vmatprep.subr.mxu0 0.0
        %1672 = vmatpush2.msra.mxu0 0.0
        %1673 = vmatprep.subr.mxu0 0.0
        %1674 = vmatpush2.msra.mxu0 0.0
        %1675 = vmatprep.subr.mxu0 0.0
        %1676 = vmatpush2.msra.mxu0 0.0
        %1677 = vmatprep.subr.mxu0 0.0
        %1678 = vmatpush2.msra.mxu0 0.0
        %1679 = vmatprep.subr.mxu0 0.0
        %1680 = vmatpush2.msra.mxu0 0.0
        %1681 = vmatprep.subr.mxu0 0.0
        %1682 = vmatpush2.msra.mxu0 0.0
        %1683 = vmatprep.subr.mxu0 0.0
        %1684 = vmatpush2.msra.mxu0 0.0
        %1685 = vmatprep.subr.mxu0 0.0
        %1686 = vmatpush2.msra.mxu0 0.0
        %1687 = vmatprep.subr.mxu0 0.0
        %1688 = vmatpush2.msra.mxu0 0.0
        %1689 = vmatprep.subr.mxu0 0.0
        %1690 = vmatpush2.msra.mxu0 0.0
        %1691 = vmatprep.subr.mxu0 0.0
        %1692 = vmatpush2.msra.mxu0 0.0
        %1693 = vmatprep.subr.mxu0 0.0
        %1694 = vmatpush2.msra.mxu0 0.0
        %1695 = vmatprep.subr.mxu0 0.0
        %1696 = vmatpush2.msra.mxu0 0.0
        %1697 = vmatprep.mubr.f32.mxu0 0.0
        %1698 = vmatmul.mubr.f32.gmra.mxu0 %v1624
        %v1699 = vpop.f32.mrf.mxu0
        %v1700 = vadd.f32 0.0, %v1699
        %v1701 = vpop.f32.mrf.mxu0
        %v1702 = vadd.f32 0.0, %v1701
        %1703 = vmatprep.mubr.f32.mxu0 0.0
        %1704 = vmatmul.mubr.f32.gmra.mxu0 %v1627
        %v1705 = vpop.f32.mrf.mxu0
        %v1706 = vadd.f32 0.0, %v1705
        %v1707 = vpop.f32.mrf.mxu0
        %v1708 = vadd.f32 0.0, %v1707
        %1709 = vdwg.mxu0
        %v1710 = vmul.f32 %v1451, %v1575
        %v1711 = vmul.f32 %v1452, %v1577
        %v1712 = vmul.f32 %v1453, %v1579
        %v1713 = vmul.f32 %v1454, %v1581
        %v1714 = vadd.f32 %v1710, %v1700
        %v1715 = vadd.f32 %v1711, %v1702
        %v1716 = vadd.f32 %v1712, %v1706
        %v1717 = vadd.f32 %v1713, %v1708
        %v1719 = vsel %vm1280, %v1558, 0
        %1721 = vmatprep.subr.mxu0 0.0
        %1722 = vmatpush1.msra.mxu0 0.0
        %1723 = vmatprep.subr.mxu0 0.0
        %1724 = vmatpush1.msra.mxu0 0.0
        %1725 = vmatprep.subr.mxu0 0.0
        %1726 = vmatpush1.msra.mxu0 0.0
        %1727 = vmatprep.subr.mxu0 0.0
        %1728 = vmatpush1.msra.mxu0 0.0
        %1729 = vmatprep.subr.mxu0 0.0
        %1730 = vmatpush1.msra.mxu0 0.0
        %1731 = vmatprep.subr.mxu0 0.0
        %1732 = vmatpush1.msra.mxu0 0.0
        %1733 = vmatprep.subr.mxu0 0.0
        %1734 = vmatpush1.msra.mxu0 0.0
        %1735 = vmatprep.subr.mxu0 0.0
        %1736 = vmatpush1.msra.mxu0 0.0
        %1737 = vmatprep.subr.mxu0 0.0
        %1738 = vmatpush1.msra.mxu0 0.0
        %1739 = vmatprep.subr.mxu0 0.0
        %1740 = vmatpush1.msra.mxu0 0.0
        %1741 = vmatprep.subr.mxu0 0.0
        %1742 = vmatpush1.msra.mxu0 0.0
        %1743 = vmatprep.subr.mxu0 0.0
        %1744 = vmatpush1.msra.mxu0 0.0
        %1745 = vmatprep.subr.mxu0 0.0
        %1746 = vmatpush1.msra.mxu0 0.0
        %1747 = vmatprep.subr.mxu0 0.0
        %1748 = vmatpush1.msra.mxu0 0.0
        %1749 = vmatprep.subr.mxu0 %v1717
        %1750 = vmatpush1.msra.mxu0 %v1716
        %1751 = vmatprep.subr.mxu0 %v1715
        %1752 = vmatpush1.msra.mxu0 %v1714
        %1753 = vmatprep.subr.mxu0 0.0
        %1754 = vmatpush2.msra.mxu0 0.0
        %1755 = vmatprep.subr.mxu0 0.0
        %1756 = vmatpush2.msra.mxu0 0.0
        %1757 = vmatprep.subr.mxu0 0.0
        %1758 = vmatpush2.msra.mxu0 0.0
        %1759 = vmatprep.subr.mxu0 0.0
        %1760 = vmatpush2.msra.mxu0 0.0
        %1761 = vmatprep.subr.mxu0 0.0
        %1762 = vmatpush2.msra.mxu0 0.0
        %1763 = vmatprep.subr.mxu0 0.0
        %1764 = vmatpush2.msra.mxu0 0.0
        %1765 = vmatprep.subr.mxu0 0.0
        %1766 = vmatpush2.msra.mxu0 0.0
        %1767 = vmatprep.subr.mxu0 0.0
        %1768 = vmatpush2.msra.mxu0 0.0
        %1769 = vmatprep.subr.mxu0 0.0
        %1770 = vmatpush2.msra.mxu0 0.0
        %1771 = vmatprep.subr.mxu0 0.0
        %1772 = vmatpush2.msra.mxu0 0.0
        %1773 = vmatprep.subr.mxu0 0.0
        %1774 = vmatpush2.msra.mxu0 0.0
        %1775 = vmatprep.subr.mxu0 0.0
        %1776 = vmatpush2.msra.mxu0 0.0
        %1777 = vmatprep.subr.mxu0 0.0
        %1778 = vmatpush2.msra.mxu0 0.0
        %1779 = vmatprep.subr.mxu0 0.0
        %1780 = vmatpush2.msra.mxu0 0.0
        %1781 = vmatprep.subr.mxu0 0.0
        %1782 = vmatpush2.msra.mxu0 0.0
        %1783 = vmatprep.subr.mxu0 0.0
        %1784 = vmatpush2.msra.mxu0 0.0
        %1785 = vmatprep.mubr.f32.mxu0 0.0
        %1786 = vmatmul.mubr.f32.gmra.mxu0 %v1719
        %v1787 = vpop.f32.mrf.mxu0
        %v1788 = vadd.f32 0.0, %v1787
        %v1789 = vpop.f32.mrf.mxu0
        %v1790 = vadd.f32 0.0, %v1789
        %1791 = vdwg.mxu0
        %v1794 = vcombine.low %v1788, %v1790
        %v1796 = vunpack.c.l.s4 1966171168
        %v1797 = vunpack.c.0.s8 %v1796
        %v1798 = vlaneseq
        %v1799 = vshrl.u32 %v1798, 7
        %v1800 = vsub.s32 %v1797, %v1799
        %v1801 = vrot.slane %v1794, %v1800
        %v1803 = vunpack.c.l.s4 1966171168
        %v1804 = vunpack.c.0.s8 %v1803
        %v1805 = vlaneseq
        %v1806 = vshrl.u32 %v1805, 7
        %v1807 = vsub.s32 %v1804, %v1806
        %v1808 = vrot.slane %v1801, %v1807
        %s1810 = scalar_lea.vmem [#allocation8], 1
        %1811 = vst.msk [vmem:[%s1810] ss:$8 sm:$0x3] %vm1550, %v1808
        %1812 = vst.msk [vmem:[%s1810] ss:$8 sm:$0x0] %vm1550, %v1808
        %s1813 = scalar_lea.vmem [#allocation4], 2
        %v1814 = vld [vmem:[%s1813] ss:$8 sm:$0x3]
        %s1815 = scalar_lea.vmem [#allocation5], 2
        %v1816 = vld [vmem:[%s1815] ss:$8 sm:$0x3]
        %v1817 = vld [vmem:[#allocation6 + $0x2] sm:$0x1]
        %v1818 = vld [vmem:[#allocation7 + $0x2] sm:$0x1]
        %v1820 = vlaneseq
        %v1821 = vshrl.u32 %v1820, 7
        %v1822 = vsub.s32 0, %v1821
        %v1823 = vrot.slane %v1814, %v1822
        %v1824 = vlaneseq
        %v1825 = vshrl.u32 %v1824, 7
        %v1826 = vsub.s32 1, %v1825
        %v1827 = vrot.slane %v1814, %v1826
        %v1830 = vmul.f32 %v1823, %v1266
        %v1831 = vmul.f32 %v1827, %v1267
        %v1832 = vmul.f32 %v1823, %v1268
        %v1833 = vmul.f32 %v1827, %v1269
        %v1834 = vmul.f32 %v1830, 1.442695
        %v1835 = vpow.pop %v1834
        %v1836 = vmul.f32 %v1831, 1.442695
        %v1837 = vpow.pop %v1836
        %v1838 = vmul.f32 %v1832, 1.442695
        %v1839 = vpow.pop %v1838
        %v1840 = vmul.f32 %v1833, 1.442695
        %v1841 = vpow.pop %v1840
        %1842 = vxpose.xlu0.b32.start [1/16] %v1817, 128
        %1843 = vxpose.xlu0.b32.cont [2/16] 0.0, 128
        %1844 = vxpose.xlu0.b32.cont [3/16] 0.0, 128
        %1845 = vxpose.xlu0.b32.cont [4/16] 0.0, 128
        %1846 = vxpose.xlu0.b32.cont [5/16] 0.0, 128
        %1847 = vxpose.xlu0.b32.cont [6/16] 0.0, 128
        %1848 = vxpose.xlu0.b32.cont [7/16] 0.0, 128
        %1849 = vxpose.xlu0.b32.cont [8/16] 0.0, 128
        %1850 = vxpose.xlu0.b32.cont [9/16] 0.0, 128
        %1851 = vxpose.xlu0.b32.cont [10/16] 0.0, 128
        %1852 = vxpose.xlu0.b32.cont [11/16] 0.0, 128
        %1853 = vxpose.xlu0.b32.cont [12/16] 0.0, 128
        %1854 = vxpose.xlu0.b32.cont [13/16] 0.0, 128
        %1855 = vxpose.xlu0.b32.cont [14/16] 0.0, 128
        %1856 = vxpose.xlu0.b32.cont [15/16] 0.0, 128
        %1857 = vxpose.xlu0.b32.end [16/16] 0.0, 128
        %v1858 = vpop.trf.xlu0
        %v1859 = vpop.trf.xlu0
        %v1860 = vpop.trf.xlu0
        %v1861 = vpop.trf.xlu0
        %v1862 = vpop.trf.xlu0
        %v1863 = vpop.trf.xlu0
        %v1864 = vpop.trf.xlu0
        %v1865 = vpop.trf.xlu0
        %v1866 = vpop.trf.xlu0
        %v1867 = vpop.trf.xlu0
        %v1868 = vpop.trf.xlu0
        %v1869 = vpop.trf.xlu0
        %v1870 = vpop.trf.xlu0
        %v1871 = vpop.trf.xlu0
        %v1872 = vpop.trf.xlu0
        %v1873 = vpop.trf.xlu0
        %v1875 = vlaneseq
        %v1876 = vshrl.u32 %v1875, 7
        %v1877 = vsub.s32 0, %v1876
        %v1878 = vrot.slane %v1816, %v1877
        %v1879 = vlaneseq
        %v1880 = vshrl.u32 %v1879, 7
        %v1881 = vsub.s32 1, %v1880
        %v1882 = vrot.slane %v1816, %v1881
        %v1884 = vsel %vm1358, %v1858, 0
        %v1887 = vsel %vm1358, %v1859, 0
        %v1889 = vsel %vm1365, %v1878, 0
        %v1891 = vsel %vm1365, %v1882, 0
        %1893 = vmatprep.subr.mxu0 0.0
        %1894 = vmatpush1.msra.mxu0 0.0
        %1895 = vmatprep.subr.mxu0 0.0
        %1896 = vmatpush1.msra.mxu0 0.0
        %1897 = vmatprep.subr.mxu0 0.0
        %1898 = vmatpush1.msra.mxu0 0.0
        %1899 = vmatprep.subr.mxu0 0.0
        %1900 = vmatpush1.msra.mxu0 0.0
        %1901 = vmatprep.subr.mxu0 0.0
        %1902 = vmatpush1.msra.mxu0 0.0
        %1903 = vmatprep.subr.mxu0 0.0
        %1904 = vmatpush1.msra.mxu0 0.0
        %1905 = vmatprep.subr.mxu0 0.0
        %1906 = vmatpush1.msra.mxu0 0.0
        %1907 = vmatprep.subr.mxu0 0.0
        %1908 = vmatpush1.msra.mxu0 0.0
        %1909 = vmatprep.subr.mxu0 0.0
        %1910 = vmatpush1.msra.mxu0 0.0
        %1911 = vmatprep.subr.mxu0 0.0
        %1912 = vmatpush1.msra.mxu0 0.0
        %1913 = vmatprep.subr.mxu0 0.0
        %1914 = vmatpush1.msra.mxu0 0.0
        %1915 = vmatprep.subr.mxu0 0.0
        %1916 = vmatpush1.msra.mxu0 0.0
        %1917 = vmatprep.subr.mxu0 0.0
        %1918 = vmatpush1.msra.mxu0 0.0
        %1919 = vmatprep.subr.mxu0 0.0
        %1920 = vmatpush1.msra.mxu0 0.0
        %1921 = vmatprep.subr.mxu0 0.0
        %1922 = vmatpush1.msra.mxu0 0.0
        %1923 = vmatprep.subr.mxu0 %v1891
        %1924 = vmatpush1.msra.mxu0 %v1889
        %1925 = vmatprep.subr.mxu0 0.0
        %1926 = vmatpush2.msra.mxu0 0.0
        %1927 = vmatprep.subr.mxu0 0.0
        %1928 = vmatpush2.msra.mxu0 0.0
        %1929 = vmatprep.subr.mxu0 0.0
        %1930 = vmatpush2.msra.mxu0 0.0
        %1931 = vmatprep.subr.mxu0 0.0
        %1932 = vmatpush2.msra.mxu0 0.0
        %1933 = vmatprep.subr.mxu0 0.0
        %1934 = vmatpush2.msra.mxu0 0.0
        %1935 = vmatprep.subr.mxu0 0.0
        %1936 = vmatpush2.msra.mxu0 0.0
        %1937 = vmatprep.subr.mxu0 0.0
        %1938 = vmatpush2.msra.mxu0 0.0
        %1939 = vmatprep.subr.mxu0 0.0
        %1940 = vmatpush2.msra.mxu0 0.0
        %1941 = vmatprep.subr.mxu0 0.0
        %1942 = vmatpush2.msra.mxu0 0.0
        %1943 = vmatprep.subr.mxu0 0.0
        %1944 = vmatpush2.msra.mxu0 0.0
        %1945 = vmatprep.subr.mxu0 0.0
        %1946 = vmatpush2.msra.mxu0 0.0
        %1947 = vmatprep.subr.mxu0 0.0
        %1948 = vmatpush2.msra.mxu0 0.0
        %1949 = vmatprep.subr.mxu0 0.0
        %1950 = vmatpush2.msra.mxu0 0.0
        %1951 = vmatprep.subr.mxu0 0.0
        %1952 = vmatpush2.msra.mxu0 0.0
        %1953 = vmatprep.subr.mxu0 0.0
        %1954 = vmatpush2.msra.mxu0 0.0
        %1955 = vmatprep.subr.mxu0 0.0
        %1956 = vmatpush2.msra.mxu0 0.0
        %1957 = vmatprep.mubr.f32.mxu0 0.0
        %1958 = vmatmul.mubr.f32.gmra.mxu0 %v1884
        %v1959 = vpop.f32.mrf.mxu0
        %v1960 = vadd.f32 0.0, %v1959
        %v1961 = vpop.f32.mrf.mxu0
        %v1962 = vadd.f32 0.0, %v1961
        %1963 = vmatprep.mubr.f32.mxu0 0.0
        %1964 = vmatmul.mubr.f32.gmra.mxu0 %v1887
        %v1965 = vpop.f32.mrf.mxu0
        %v1966 = vadd.f32 0.0, %v1965
        %v1967 = vpop.f32.mrf.mxu0
        %v1968 = vadd.f32 0.0, %v1967
        %1969 = vdwg.mxu0
        %v1970 = vmul.f32 %v1714, %v1835
        %v1971 = vmul.f32 %v1715, %v1837
        %v1972 = vmul.f32 %v1716, %v1839
        %v1973 = vmul.f32 %v1717, %v1841
        %v1974 = vadd.f32 %v1970, %v1960
        %v1975 = vadd.f32 %v1971, %v1962
        %v1976 = vadd.f32 %v1972, %v1966
        %v1977 = vadd.f32 %v1973, %v1968
        %v1979 = vsel %vm1280, %v1818, 0
        %1981 = vmatprep.subr.mxu0 0.0
        %1982 = vmatpush1.msra.mxu0 0.0
        %1983 = vmatprep.subr.mxu0 0.0
        %1984 = vmatpush1.msra.mxu0 0.0
        %1985 = vmatprep.subr.mxu0 0.0
        %1986 = vmatpush1.msra.mxu0 0.0
        %1987 = vmatprep.subr.mxu0 0.0
        %1988 = vmatpush1.msra.mxu0 0.0
        %1989 = vmatprep.subr.mxu0 0.0
        %1990 = vmatpush1.msra.mxu0 0.0
        %1991 = vmatprep.subr.mxu0 0.0
        %1992 = vmatpush1.msra.mxu0 0.0
        %1993 = vmatprep.subr.mxu0 0.0
        %1994 = vmatpush1.msra.mxu0 0.0
        %1995 = vmatprep.subr.mxu0 0.0
        %1996 = vmatpush1.msra.mxu0 0.0
        %1997 = vmatprep.subr.mxu0 0.0
        %1998 = vmatpush1.msra.mxu0 0.0
        %1999 = vmatprep.subr.mxu0 0.0
        %2000 = vmatpush1.msra.mxu0 0.0
        %2001 = vmatprep.subr.mxu0 0.0
        %2002 = vmatpush1.msra.mxu0 0.0
        %2003 = vmatprep.subr.mxu0 0.0
        %2004 = vmatpush1.msra.mxu0 0.0
        %2005 = vmatprep.subr.mxu0 0.0
        %2006 = vmatpush1.msra.mxu0 0.0
        %2007 = vmatprep.subr.mxu0 0.0
        %2008 = vmatpush1.msra.mxu0 0.0
        %2009 = vmatprep.subr.mxu0 %v1977
        %2010 = vmatpush1.msra.mxu0 %v1976
        %2011 = vmatprep.subr.mxu0 %v1975
        %2012 = vmatpush1.msra.mxu0 %v1974
        %2013 = vmatprep.subr.mxu0 0.0
        %2014 = vmatpush2.msra.mxu0 0.0
        %2015 = vmatprep.subr.mxu0 0.0
        %2016 = vmatpush2.msra.mxu0 0.0
        %2017 = vmatprep.subr.mxu0 0.0
        %2018 = vmatpush2.msra.mxu0 0.0
        %2019 = vmatprep.subr.mxu0 0.0
        %2020 = vmatpush2.msra.mxu0 0.0
        %2021 = vmatprep.subr.mxu0 0.0
        %2022 = vmatpush2.msra.mxu0 0.0
        %2023 = vmatprep.subr.mxu0 0.0
        %2024 = vmatpush2.msra.mxu0 0.0
        %2025 = vmatprep.subr.mxu0 0.0
        %2026 = vmatpush2.msra.mxu0 0.0
        %2027 = vmatprep.subr.mxu0 0.0
        %2028 = vmatpush2.msra.mxu0 0.0
        %2029 = vmatprep.subr.mxu0 0.0
        %2030 = vmatpush2.msra.mxu0 0.0
        %2031 = vmatprep.subr.mxu0 0.0
        %2032 = vmatpush2.msra.mxu0 0.0
        %2033 = vmatprep.subr.mxu0 0.0
        %2034 = vmatpush2.msra.mxu0 0.0
        %2035 = vmatprep.subr.mxu0 0.0
        %2036 = vmatpush2.msra.mxu0 0.0
        %2037 = vmatprep.subr.mxu0 0.0
        %2038 = vmatpush2.msra.mxu0 0.0
        %2039 = vmatprep.subr.mxu0 0.0
        %2040 = vmatpush2.msra.mxu0 0.0
        %2041 = vmatprep.subr.mxu0 0.0
        %2042 = vmatpush2.msra.mxu0 0.0
        %2043 = vmatprep.subr.mxu0 0.0
        %2044 = vmatpush2.msra.mxu0 0.0
        %2045 = vmatprep.mubr.f32.mxu0 0.0
        %2046 = vmatmul.mubr.f32.gmra.mxu0 %v1979
        %v2047 = vpop.f32.mrf.mxu0
        %v2048 = vadd.f32 0.0, %v2047
        %v2049 = vpop.f32.mrf.mxu0
        %v2050 = vadd.f32 0.0, %v2049
        %2051 = vdwg.mxu0
        %v2054 = vcombine.low %v2048, %v2050
        %v2056 = vunpack.c.l.s4 1966171168
        %v2057 = vunpack.c.0.s8 %v2056
        %v2058 = vlaneseq
        %v2059 = vshrl.u32 %v2058, 7
        %v2060 = vsub.s32 %v2057, %v2059
        %v2061 = vrot.slane %v2054, %v2060
        %v2063 = vunpack.c.l.s4 1966171168
        %v2064 = vunpack.c.0.s8 %v2063
        %v2065 = vlaneseq
        %v2066 = vshrl.u32 %v2065, 7
        %v2067 = vsub.s32 %v2064, %v2066
        %v2068 = vrot.slane %v2061, %v2067
        %s2070 = scalar_lea.vmem [#allocation8], 2
        %2071 = vst.msk [vmem:[%s2070] ss:$8 sm:$0x3] %vm1550, %v2068
        %2072 = vst.msk [vmem:[%s2070] ss:$8 sm:$0x0] %vm1550, %v2068
        %s2073 = scalar_lea.vmem [#allocation4], 3
        %v2074 = vld [vmem:[%s2073] ss:$8 sm:$0x3]
        %s2075 = scalar_lea.vmem [#allocation5], 3
        %v2076 = vld [vmem:[%s2075] ss:$8 sm:$0x3]
        %v2077 = vld [vmem:[#allocation6 + $0x3] sm:$0x1]
        %v2078 = vld [vmem:[#allocation7 + $0x3] sm:$0x1]
        %v2080 = vlaneseq
        %v2081 = vshrl.u32 %v2080, 7
        %v2082 = vsub.s32 0, %v2081
        %v2083 = vrot.slane %v2074, %v2082
        %v2084 = vlaneseq
        %v2085 = vshrl.u32 %v2084, 7
        %v2086 = vsub.s32 1, %v2085
        %v2087 = vrot.slane %v2074, %v2086
        %v2090 = vmul.f32 %v2083, %v1266
        %v2091 = vmul.f32 %v2087, %v1267
        %v2092 = vmul.f32 %v2083, %v1268
        %v2093 = vmul.f32 %v2087, %v1269
        %v2094 = vmul.f32 %v2090, 1.442695
        %v2095 = vpow.pop %v2094
        %v2096 = vmul.f32 %v2091, 1.442695
        %v2097 = vpow.pop %v2096
        %v2098 = vmul.f32 %v2092, 1.442695
        %v2099 = vpow.pop %v2098
        %v2100 = vmul.f32 %v2093, 1.442695
        %v2101 = vpow.pop %v2100
        %2102 = vxpose.xlu0.b32.start [1/16] %v2077, 128
        %2103 = vxpose.xlu0.b32.cont [2/16] 0.0, 128
        %2104 = vxpose.xlu0.b32.cont [3/16] 0.0, 128
        %2105 = vxpose.xlu0.b32.cont [4/16] 0.0, 128
        %2106 = vxpose.xlu0.b32.cont [5/16] 0.0, 128
        %2107 = vxpose.xlu0.b32.cont [6/16] 0.0, 128
        %2108 = vxpose.xlu0.b32.cont [7/16] 0.0, 128
        %2109 = vxpose.xlu0.b32.cont [8/16] 0.0, 128
        %2110 = vxpose.xlu0.b32.cont [9/16] 0.0, 128
        %2111 = vxpose.xlu0.b32.cont [10/16] 0.0, 128
        %2112 = vxpose.xlu0.b32.cont [11/16] 0.0, 128
        %2113 = vxpose.xlu0.b32.cont [12/16] 0.0, 128
        %2114 = vxpose.xlu0.b32.cont [13/16] 0.0, 128
        %2115 = vxpose.xlu0.b32.cont [14/16] 0.0, 128
        %2116 = vxpose.xlu0.b32.cont [15/16] 0.0, 128
        %2117 = vxpose.xlu0.b32.end [16/16] 0.0, 128
        %v2118 = vpop.trf.xlu0
        %v2119 = vpop.trf.xlu0
        %v2120 = vpop.trf.xlu0
        %v2121 = vpop.trf.xlu0
        %v2122 = vpop.trf.xlu0
        %v2123 = vpop.trf.xlu0
        %v2124 = vpop.trf.xlu0
        %v2125 = vpop.trf.xlu0
        %v2126 = vpop.trf.xlu0
        %v2127 = vpop.trf.xlu0
        %v2128 = vpop.trf.xlu0
        %v2129 = vpop.trf.xlu0
        %v2130 = vpop.trf.xlu0
        %v2131 = vpop.trf.xlu0
        %v2132 = vpop.trf.xlu0
        %v2133 = vpop.trf.xlu0
        %v2135 = vlaneseq
        %v2136 = vshrl.u32 %v2135, 7
        %v2137 = vsub.s32 0, %v2136
        %v2138 = vrot.slane %v2076, %v2137
        %v2139 = vlaneseq
        %v2140 = vshrl.u32 %v2139, 7
        %v2141 = vsub.s32 1, %v2140
        %v2142 = vrot.slane %v2076, %v2141
        %v2144 = vsel %vm1358, %v2118, 0
        %v2147 = vsel %vm1358, %v2119, 0
        %v2149 = vsel %vm1365, %v2138, 0
        %v2151 = vsel %vm1365, %v2142, 0
        %2153 = vmatprep.subr.mxu0 0.0
        %2154 = vmatpush1.msra.mxu0 0.0
        %2155 = vmatprep.subr.mxu0 0.0
        %2156 = vmatpush1.msra.mxu0 0.0
        %2157 = vmatprep.subr.mxu0 0.0
        %2158 = vmatpush1.msra.mxu0 0.0
        %2159 = vmatprep.subr.mxu0 0.0
        %2160 = vmatpush1.msra.mxu0 0.0
        %2161 = vmatprep.subr.mxu0 0.0
        %2162 = vmatpush1.msra.mxu0 0.0
        %2163 = vmatprep.subr.mxu0 0.0
        %2164 = vmatpush1.msra.mxu0 0.0
        %2165 = vmatprep.subr.mxu0 0.0
        %2166 = vmatpush1.msra.mxu0 0.0
        %2167 = vmatprep.subr.mxu0 0.0
        %2168 = vmatpush1.msra.mxu0 0.0
        %2169 = vmatprep.subr.mxu0 0.0
        %2170 = vmatpush1.msra.mxu0 0.0
        %2171 = vmatprep.subr.mxu0 0.0
        %2172 = vmatpush1.msra.mxu0 0.0
        %2173 = vmatprep.subr.mxu0 0.0
        %2174 = vmatpush1.msra.mxu0 0.0
        %2175 = vmatprep.subr.mxu0 0.0
        %2176 = vmatpush1.msra.mxu0 0.0
        %2177 = vmatprep.subr.mxu0 0.0
        %2178 = vmatpush1.msra.mxu0 0.0
        %2179 = vmatprep.subr.mxu0 0.0
        %2180 = vmatpush1.msra.mxu0 0.0
        %2181 = vmatprep.subr.mxu0 0.0
        %2182 = vmatpush1.msra.mxu0 0.0
        %2183 = vmatprep.subr.mxu0 %v2151
        %2184 = vmatpush1.msra.mxu0 %v2149
        %2185 = vmatprep.subr.mxu0 0.0
        %2186 = vmatpush2.msra.mxu0 0.0
        %2187 = vmatprep.subr.mxu0 0.0
        %2188 = vmatpush2.msra.mxu0 0.0
        %2189 = vmatprep.subr.mxu0 0.0
        %2190 = vmatpush2.msra.mxu0 0.0
        %2191 = vmatprep.subr.mxu0 0.0
        %2192 = vmatpush2.msra.mxu0 0.0
        %2193 = vmatprep.subr.mxu0 0.0
        %2194 = vmatpush2.msra.mxu0 0.0
        %2195 = vmatprep.subr.mxu0 0.0
        %2196 = vmatpush2.msra.mxu0 0.0
        %2197 = vmatprep.subr.mxu0 0.0
        %2198 = vmatpush2.msra.mxu0 0.0
        %2199 = vmatprep.subr.mxu0 0.0
        %2200 = vmatpush2.msra.mxu0 0.0
        %2201 = vmatprep.subr.mxu0 0.0
        %2202 = vmatpush2.msra.mxu0 0.0
        %2203 = vmatprep.subr.mxu0 0.0
        %2204 = vmatpush2.msra.mxu0 0.0
        %2205 = vmatprep.subr.mxu0 0.0
        %2206 = vmatpush2.msra.mxu0 0.0
        %2207 = vmatprep.subr.mxu0 0.0
        %2208 = vmatpush2.msra.mxu0 0.0
        %2209 = vmatprep.subr.mxu0 0.0
        %2210 = vmatpush2.msra.mxu0 0.0
        %2211 = vmatprep.subr.mxu0 0.0
        %2212 = vmatpush2.msra.mxu0 0.0
        %2213 = vmatprep.subr.mxu0 0.0
        %2214 = vmatpush2.msra.mxu0 0.0
        %2215 = vmatprep.subr.mxu0 0.0
        %2216 = vmatpush2.msra.mxu0 0.0
        %2217 = vmatprep.mubr.f32.mxu0 0.0
        %2218 = vmatmul.mubr.f32.gmra.mxu0 %v2144
        %v2219 = vpop.f32.mrf.mxu0
        %v2220 = vadd.f32 0.0, %v2219
        %v2221 = vpop.f32.mrf.mxu0
        %v2222 = vadd.f32 0.0, %v2221
        %2223 = vmatprep.mubr.f32.mxu0 0.0
        %2224 = vmatmul.mubr.f32.gmra.mxu0 %v2147
        %v2225 = vpop.f32.mrf.mxu0
        %v2226 = vadd.f32 0.0, %v2225
        %v2227 = vpop.f32.mrf.mxu0
        %v2228 = vadd.f32 0.0, %v2227
        %2229 = vdwg.mxu0
        %v2230 = vmul.f32 %v1974, %v2095
        %v2231 = vmul.f32 %v1975, %v2097
        %v2232 = vmul.f32 %v1976, %v2099
        %v2233 = vmul.f32 %v1977, %v2101
        %v2234 = vadd.f32 %v2230, %v2220
        %v2235 = vadd.f32 %v2231, %v2222
        %v2236 = vadd.f32 %v2232, %v2226
        %v2237 = vadd.f32 %v2233, %v2228
        %v2239 = vsel %vm1280, %v2078, 0
        %2241 = vmatprep.subr.mxu0 0.0
        %2242 = vmatpush1.msra.mxu0 0.0
        %2243 = vmatprep.subr.mxu0 0.0
        %2244 = vmatpush1.msra.mxu0 0.0
        %2245 = vmatprep.subr.mxu0 0.0
        %2246 = vmatpush1.msra.mxu0 0.0
        %2247 = vmatprep.subr.mxu0 0.0
        %2248 = vmatpush1.msra.mxu0 0.0
        %2249 = vmatprep.subr.mxu0 0.0
        %2250 = vmatpush1.msra.mxu0 0.0
        %2251 = vmatprep.subr.mxu0 0.0
        %2252 = vmatpush1.msra.mxu0 0.0
        %2253 = vmatprep.subr.mxu0 0.0
        %2254 = vmatpush1.msra.mxu0 0.0
        %2255 = vmatprep.subr.mxu0 0.0
        %2256 = vmatpush1.msra.mxu0 0.0
        %2257 = vmatprep.subr.mxu0 0.0
        %2258 = vmatpush1.msra.mxu0 0.0
        %2259 = vmatprep.subr.mxu0 0.0
        %2260 = vmatpush1.msra.mxu0 0.0
        %2261 = vmatprep.subr.mxu0 0.0
        %2262 = vmatpush1.msra.mxu0 0.0
        %2263 = vmatprep.subr.mxu0 0.0
        %2264 = vmatpush1.msra.mxu0 0.0
        %2265 = vmatprep.subr.mxu0 0.0
        %2266 = vmatpush1.msra.mxu0 0.0
        %2267 = vmatprep.subr.mxu0 0.0
        %2268 = vmatpush1.msra.mxu0 0.0
        %2269 = vmatprep.subr.mxu0 %v2237
        %2270 = vmatpush1.msra.mxu0 %v2236
        %2271 = vmatprep.subr.mxu0 %v2235
        %2272 = vmatpush1.msra.mxu0 %v2234
        %2273 = vmatprep.subr.mxu0 0.0
        %2274 = vmatpush2.msra.mxu0 0.0
        %2275 = vmatprep.subr.mxu0 0.0
        %2276 = vmatpush2.msra.mxu0 0.0
        %2277 = vmatprep.subr.mxu0 0.0
        %2278 = vmatpush2.msra.mxu0 0.0
        %2279 = vmatprep.subr.mxu0 0.0
        %2280 = vmatpush2.msra.mxu0 0.0
        %2281 = vmatprep.subr.mxu0 0.0
        %2282 = vmatpush2.msra.mxu0 0.0
        %2283 = vmatprep.subr.mxu0 0.0
        %2284 = vmatpush2.msra.mxu0 0.0
        %2285 = vmatprep.subr.mxu0 0.0
        %2286 = vmatpush2.msra.mxu0 0.0
        %2287 = vmatprep.subr.mxu0 0.0
        %2288 = vmatpush2.msra.mxu0 0.0
        %2289 = vmatprep.subr.mxu0 0.0
        %2290 = vmatpush2.msra.mxu0 0.0
        %2291 = vmatprep.subr.mxu0 0.0
        %2292 = vmatpush2.msra.mxu0 0.0
        %2293 = vmatprep.subr.mxu0 0.0
        %2294 = vmatpush2.msra.mxu0 0.0
        %2295 = vmatprep.subr.mxu0 0.0
        %2296 = vmatpush2.msra.mxu0 0.0
        %2297 = vmatprep.subr.mxu0 0.0
        %2298 = vmatpush2.msra.mxu0 0.0
        %2299 = vmatprep.subr.mxu0 0.0
        %2300 = vmatpush2.msra.mxu0 0.0
        %2301 = vmatprep.subr.mxu0 0.0
        %2302 = vmatpush2.msra.mxu0 0.0
        %2303 = vmatprep.subr.mxu0 0.0
        %2304 = vmatpush2.msra.mxu0 0.0
        %2305 = vmatprep.mubr.f32.mxu0 0.0
        %2306 = vmatmul.mubr.f32.gmra.mxu0 %v2239
        %v2307 = vpop.f32.mrf.mxu0
        %v2308 = vadd.f32 0.0, %v2307
        %v2309 = vpop.f32.mrf.mxu0
        %v2310 = vadd.f32 0.0, %v2309
        %2311 = vdwg.mxu0
        %v2314 = vcombine.low %v2308, %v2310
        %v2316 = vunpack.c.l.s4 1966171168
        %v2317 = vunpack.c.0.s8 %v2316
        %v2318 = vlaneseq
        %v2319 = vshrl.u32 %v2318, 7
        %v2320 = vsub.s32 %v2317, %v2319
        %v2321 = vrot.slane %v2314, %v2320
        %v2323 = vunpack.c.l.s4 1966171168
        %v2324 = vunpack.c.0.s8 %v2323
        %v2325 = vlaneseq
        %v2326 = vshrl.u32 %v2325, 7
        %v2327 = vsub.s32 %v2324, %v2326
        %v2328 = vrot.slane %v2321, %v2327
        %s2330 = scalar_lea.vmem [#allocation8], 3
        %2331 = vst.msk [vmem:[%s2330] ss:$8 sm:$0x3] %vm1550, %v2328
        %2332 = vst.msk [vmem:[%s2330] ss:$8 sm:$0x0] %vm1550, %v2328
        %s2333 = scalar_lea.vmem [#allocation4], 4
        %v2334 = vld [vmem:[%s2333] ss:$8 sm:$0x3]
        %s2335 = scalar_lea.vmem [#allocation5], 4
        %v2336 = vld [vmem:[%s2335] ss:$8 sm:$0x3]
        %v2337 = vld [vmem:[#allocation6 + $0x4] sm:$0x1]
        %v2338 = vld [vmem:[#allocation7 + $0x4] sm:$0x1]
        %v2340 = vlaneseq
        %v2341 = vshrl.u32 %v2340, 7
        %v2342 = vsub.s32 0, %v2341
        %v2343 = vrot.slane %v2334, %v2342
        %v2344 = vlaneseq
        %v2345 = vshrl.u32 %v2344, 7
        %v2346 = vsub.s32 1, %v2345
        %v2347 = vrot.slane %v2334, %v2346
        %v2350 = vmul.f32 %v2343, %v1266
        %v2351 = vmul.f32 %v2347, %v1267
        %v2352 = vmul.f32 %v2343, %v1268
        %v2353 = vmul.f32 %v2347, %v1269
        %v2354 = vmul.f32 %v2350, 1.442695
        %v2355 = vpow.pop %v2354
        %v2356 = vmul.f32 %v2351, 1.442695
        %v2357 = vpow.pop %v2356
        %v2358 = vmul.f32 %v2352, 1.442695
        %v2359 = vpow.pop %v2358
        %v2360 = vmul.f32 %v2353, 1.442695
        %v2361 = vpow.pop %v2360
        %2362 = vxpose.xlu0.b32.start [1/16] %v2337, 128
        %2363 = vxpose.xlu0.b32.cont [2/16] 0.0, 128
        %2364 = vxpose.xlu0.b32.cont [3/16] 0.0, 128
        %2365 = vxpose.xlu0.b32.cont [4/16] 0.0, 128
        %2366 = vxpose.xlu0.b32.cont [5/16] 0.0, 128
        %2367 = vxpose.xlu0.b32.cont [6/16] 0.0, 128
        %2368 = vxpose.xlu0.b32.cont [7/16] 0.0, 128
        %2369 = vxpose.xlu0.b32.cont [8/16] 0.0, 128
        %2370 = vxpose.xlu0.b32.cont [9/16] 0.0, 128
        %2371 = vxpose.xlu0.b32.cont [10/16] 0.0, 128
        %2372 = vxpose.xlu0.b32.cont [11/16] 0.0, 128
        %2373 = vxpose.xlu0.b32.cont [12/16] 0.0, 128
        %2374 = vxpose.xlu0.b32.cont [13/16] 0.0, 128
        %2375 = vxpose.xlu0.b32.cont [14/16] 0.0, 128
        %2376 = vxpose.xlu0.b32.cont [15/16] 0.0, 128
        %2377 = vxpose.xlu0.b32.end [16/16] 0.0, 128
        %v2378 = vpop.trf.xlu0
        %v2379 = vpop.trf.xlu0
        %v2380 = vpop.trf.xlu0
        %v2381 = vpop.trf.xlu0
        %v2382 = vpop.trf.xlu0
        %v2383 = vpop.trf.xlu0
        %v2384 = vpop.trf.xlu0
        %v2385 = vpop.trf.xlu0
        %v2386 = vpop.trf.xlu0
        %v2387 = vpop.trf.xlu0
        %v2388 = vpop.trf.xlu0
        %v2389 = vpop.trf.xlu0
        %v2390 = vpop.trf.xlu0
        %v2391 = vpop.trf.xlu0
        %v2392 = vpop.trf.xlu0
        %v2393 = vpop.trf.xlu0
        %v2395 = vlaneseq
        %v2396 = vshrl.u32 %v2395, 7
        %v2397 = vsub.s32 0, %v2396
        %v2398 = vrot.slane %v2336, %v2397
        %v2399 = vlaneseq
        %v2400 = vshrl.u32 %v2399, 7
        %v2401 = vsub.s32 1, %v2400
        %v2402 = vrot.slane %v2336, %v2401
        %v2404 = vsel %vm1358, %v2378, 0
        %v2407 = vsel %vm1358, %v2379, 0
        %v2409 = vsel %vm1365, %v2398, 0
        %v2411 = vsel %vm1365, %v2402, 0
        %2413 = vmatprep.subr.mxu0 0.0
        %2414 = vmatpush1.msra.mxu0 0.0
        %2415 = vmatprep.subr.mxu0 0.0
        %2416 = vmatpush1.msra.mxu0 0.0
        %2417 = vmatprep.subr.mxu0 0.0
        %2418 = vmatpush1.msra.mxu0 0.0
        %2419 = vmatprep.subr.mxu0 0.0
        %2420 = vmatpush1.msra.mxu0 0.0
        %2421 = vmatprep.subr.mxu0 0.0
        %2422 = vmatpush1.msra.mxu0 0.0
        %2423 = vmatprep.subr.mxu0 0.0
        %2424 = vmatpush1.msra.mxu0 0.0
        %2425 = vmatprep.subr.mxu0 0.0
        %2426 = vmatpush1.msra.mxu0 0.0
        %2427 = vmatprep.subr.mxu0 0.0
        %2428 = vmatpush1.msra.mxu0 0.0
        %2429 = vmatprep.subr.mxu0 0.0
        %2430 = vmatpush1.msra.mxu0 0.0
        %2431 = vmatprep.subr.mxu0 0.0
        %2432 = vmatpush1.msra.mxu0 0.0
        %2433 = vmatprep.subr.mxu0 0.0
        %2434 = vmatpush1.msra.mxu0 0.0
        %2435 = vmatprep.subr.mxu0 0.0
        %2436 = vmatpush1.msra.mxu0 0.0
        %2437 = vmatprep.subr.mxu0 0.0
        %2438 = vmatpush1.msra.mxu0 0.0
        %2439 = vmatprep.subr.mxu0 0.0
        %2440 = vmatpush1.msra.mxu0 0.0
        %2441 = vmatprep.subr.mxu0 0.0
        %2442 = vmatpush1.msra.mxu0 0.0
        %2443 = vmatprep.subr.mxu0 %v2411
        %2444 = vmatpush1.msra.mxu0 %v2409
        %2445 = vmatprep.subr.mxu0 0.0
        %2446 = vmatpush2.msra.mxu0 0.0
        %2447 = vmatprep.subr.mxu0 0.0
        %2448 = vmatpush2.msra.mxu0 0.0
        %2449 = vmatprep.subr.mxu0 0.0
        %2450 = vmatpush2.msra.mxu0 0.0
        %2451 = vmatprep.subr.mxu0 0.0
        %2452 = vmatpush2.msra.mxu0 0.0
        %2453 = vmatprep.subr.mxu0 0.0
        %2454 = vmatpush2.msra.mxu0 0.0
        %2455 = vmatprep.subr.mxu0 0.0
        %2456 = vmatpush2.msra.mxu0 0.0
        %2457 = vmatprep.subr.mxu0 0.0
        %2458 = vmatpush2.msra.mxu0 0.0
        %2459 = vmatprep.subr.mxu0 0.0
        %2460 = vmatpush2.msra.mxu0 0.0
        %2461 = vmatprep.subr.mxu0 0.0
        %2462 = vmatpush2.msra.mxu0 0.0
        %2463 = vmatprep.subr.mxu0 0.0
        %2464 = vmatpush2.msra.mxu0 0.0
        %2465 = vmatprep.subr.mxu0 0.0
        %2466 = vmatpush2.msra.mxu0 0.0
        %2467 = vmatprep.subr.mxu0 0.0
        %2468 = vmatpush2.msra.mxu0 0.0
        %2469 = vmatprep.subr.mxu0 0.0
        %2470 = vmatpush2.msra.mxu0 0.0
        %2471 = vmatprep.subr.mxu0 0.0
        %2472 = vmatpush2.msra.mxu0 0.0
        %2473 = vmatprep.subr.mxu0 0.0
        %2474 = vmatpush2.msra.mxu0 0.0
        %2475 = vmatprep.subr.mxu0 0.0
        %2476 = vmatpush2.msra.mxu0 0.0
        %2477 = vmatprep.mubr.f32.mxu0 0.0
        %2478 = vmatmul.mubr.f32.gmra.mxu0 %v2404
        %v2479 = vpop.f32.mrf.mxu0
        %v2480 = vadd.f32 0.0, %v2479
        %v2481 = vpop.f32.mrf.mxu0
        %v2482 = vadd.f32 0.0, %v2481
        %2483 = vmatprep.mubr.f32.mxu0 0.0
        %2484 = vmatmul.mubr.f32.gmra.mxu0 %v2407
        %v2485 = vpop.f32.mrf.mxu0
        %v2486 = vadd.f32 0.0, %v2485
        %v2487 = vpop.f32.mrf.mxu0
        %v2488 = vadd.f32 0.0, %v2487
        %2489 = vdwg.mxu0
        %v2490 = vmul.f32 %v2234, %v2355
        %v2491 = vmul.f32 %v2235, %v2357
        %v2492 = vmul.f32 %v2236, %v2359
        %v2493 = vmul.f32 %v2237, %v2361
        %v2494 = vadd.f32 %v2490, %v2480
        %v2495 = vadd.f32 %v2491, %v2482
        %v2496 = vadd.f32 %v2492, %v2486
        %v2497 = vadd.f32 %v2493, %v2488
        %v2499 = vsel %vm1280, %v2338, 0
        %2501 = vmatprep.subr.mxu0 0.0
        %2502 = vmatpush1.msra.mxu0 0.0
        %2503 = vmatprep.subr.mxu0 0.0
        %2504 = vmatpush1.msra.mxu0 0.0
        %2505 = vmatprep.subr.mxu0 0.0
        %2506 = vmatpush1.msra.mxu0 0.0
        %2507 = vmatprep.subr.mxu0 0.0
        %2508 = vmatpush1.msra.mxu0 0.0
        %2509 = vmatprep.subr.mxu0 0.0
        %2510 = vmatpush1.msra.mxu0 0.0
        %2511 = vmatprep.subr.mxu0 0.0
        %2512 = vmatpush1.msra.mxu0 0.0
        %2513 = vmatprep.subr.mxu0 0.0
        %2514 = vmatpush1.msra.mxu0 0.0
        %2515 = vmatprep.subr.mxu0 0.0
        %2516 = vmatpush1.msra.mxu0 0.0
        %2517 = vmatprep.subr.mxu0 0.0
        %2518 = vmatpush1.msra.mxu0 0.0
        %2519 = vmatprep.subr.mxu0 0.0
        %2520 = vmatpush1.msra.mxu0 0.0
        %2521 = vmatprep.subr.mxu0 0.0
        %2522 = vmatpush1.msra.mxu0 0.0
        %2523 = vmatprep.subr.mxu0 0.0
        %2524 = vmatpush1.msra.mxu0 0.0
        %2525 = vmatprep.subr.mxu0 0.0
        %2526 = vmatpush1.msra.mxu0 0.0
        %2527 = vmatprep.subr.mxu0 0.0
        %2528 = vmatpush1.msra.mxu0 0.0
        %2529 = vmatprep.subr.mxu0 %v2497
        %2530 = vmatpush1.msra.mxu0 %v2496
        %2531 = vmatprep.subr.mxu0 %v2495
        %2532 = vmatpush1.msra.mxu0 %v2494
        %2533 = vmatprep.subr.mxu0 0.0
        %2534 = vmatpush2.msra.mxu0 0.0
        %2535 = vmatprep.subr.mxu0 0.0
        %2536 = vmatpush2.msra.mxu0 0.0
        %2537 = vmatprep.subr.mxu0 0.0
        %2538 = vmatpush2.msra.mxu0 0.0
        %2539 = vmatprep.subr.mxu0 0.0
        %2540 = vmatpush2.msra.mxu0 0.0
        %2541 = vmatprep.subr.mxu0 0.0
        %2542 = vmatpush2.msra.mxu0 0.0
        %2543 = vmatprep.subr.mxu0 0.0
        %2544 = vmatpush2.msra.mxu0 0.0
        %2545 = vmatprep.subr.mxu0 0.0
        %2546 = vmatpush2.msra.mxu0 0.0
        %2547 = vmatprep.subr.mxu0 0.0
        %2548 = vmatpush2.msra.mxu0 0.0
        %2549 = vmatprep.subr.mxu0 0.0
        %2550 = vmatpush2.msra.mxu0 0.0
        %2551 = vmatprep.subr.mxu0 0.0
        %2552 = vmatpush2.msra.mxu0 0.0
        %2553 = vmatprep.subr.mxu0 0.0
        %2554 = vmatpush2.msra.mxu0 0.0
        %2555 = vmatprep.subr.mxu0 0.0
        %2556 = vmatpush2.msra.mxu0 0.0
        %2557 = vmatprep.subr.mxu0 0.0
        %2558 = vmatpush2.msra.mxu0 0.0
        %2559 = vmatprep.subr.mxu0 0.0
        %2560 = vmatpush2.msra.mxu0 0.0
        %2561 = vmatprep.subr.mxu0 0.0
        %2562 = vmatpush2.msra.mxu0 0.0
        %2563 = vmatprep.subr.mxu0 0.0
        %2564 = vmatpush2.msra.mxu0 0.0
        %2565 = vmatprep.mubr.f32.mxu0 0.0
        %2566 = vmatmul.mubr.f32.gmra.mxu0 %v2499
        %v2567 = vpop.f32.mrf.mxu0
        %v2568 = vadd.f32 0.0, %v2567
        %v2569 = vpop.f32.mrf.mxu0
        %v2570 = vadd.f32 0.0, %v2569
        %2571 = vdwg.mxu0
        %v2574 = vcombine.low %v2568, %v2570
        %v2576 = vunpack.c.l.s4 1966171168
        %v2577 = vunpack.c.0.s8 %v2576
        %v2578 = vlaneseq
        %v2579 = vshrl.u32 %v2578, 7
        %v2580 = vsub.s32 %v2577, %v2579
        %v2581 = vrot.slane %v2574, %v2580
        %v2583 = vunpack.c.l.s4 1966171168
        %v2584 = vunpack.c.0.s8 %v2583
        %v2585 = vlaneseq
        %v2586 = vshrl.u32 %v2585, 7
        %v2587 = vsub.s32 %v2584, %v2586
        %v2588 = vrot.slane %v2581, %v2587
        %s2590 = scalar_lea.vmem [#allocation8], 4
        %2591 = vst.msk [vmem:[%s2590] ss:$8 sm:$0x3] %vm1550, %v2588
        %2592 = vst.msk [vmem:[%s2590] ss:$8 sm:$0x0] %vm1550, %v2588
        %s2593 = scalar_lea.vmem [#allocation4], 5
        %v2594 = vld [vmem:[%s2593] ss:$8 sm:$0x3]
        %s2595 = scalar_lea.vmem [#allocation5], 5
        %v2596 = vld [vmem:[%s2595] ss:$8 sm:$0x3]
        %v2597 = vld [vmem:[#allocation6 + $0x5] sm:$0x1]
        %v2598 = vld [vmem:[#allocation7 + $0x5] sm:$0x1]
        %v2600 = vlaneseq
        %v2601 = vshrl.u32 %v2600, 7
        %v2602 = vsub.s32 0, %v2601
        %v2603 = vrot.slane %v2594, %v2602
        %v2604 = vlaneseq
        %v2605 = vshrl.u32 %v2604, 7
        %v2606 = vsub.s32 1, %v2605
        %v2607 = vrot.slane %v2594, %v2606
        %v2610 = vmul.f32 %v2603, %v1266
        %v2611 = vmul.f32 %v2607, %v1267
        %v2612 = vmul.f32 %v2603, %v1268
        %v2613 = vmul.f32 %v2607, %v1269
        %v2614 = vmul.f32 %v2610, 1.442695
        %v2615 = vpow.pop %v2614
        %v2616 = vmul.f32 %v2611, 1.442695
        %v2617 = vpow.pop %v2616
        %v2618 = vmul.f32 %v2612, 1.442695
        %v2619 = vpow.pop %v2618
        %v2620 = vmul.f32 %v2613, 1.442695
        %v2621 = vpow.pop %v2620
        %2622 = vxpose.xlu0.b32.start [1/16] %v2597, 128
        %2623 = vxpose.xlu0.b32.cont [2/16] 0.0, 128
        %2624 = vxpose.xlu0.b32.cont [3/16] 0.0, 128
        %2625 = vxpose.xlu0.b32.cont [4/16] 0.0, 128
        %2626 = vxpose.xlu0.b32.cont [5/16] 0.0, 128
        %2627 = vxpose.xlu0.b32.cont [6/16] 0.0, 128
        %2628 = vxpose.xlu0.b32.cont [7/16] 0.0, 128
        %2629 = vxpose.xlu0.b32.cont [8/16] 0.0, 128
        %2630 = vxpose.xlu0.b32.cont [9/16] 0.0, 128
        %2631 = vxpose.xlu0.b32.cont [10/16] 0.0, 128
        %2632 = vxpose.xlu0.b32.cont [11/16] 0.0, 128
        %2633 = vxpose.xlu0.b32.cont [12/16] 0.0, 128
        %2634 = vxpose.xlu0.b32.cont [13/16] 0.0, 128
        %2635 = vxpose.xlu0.b32.cont [14/16] 0.0, 128
        %2636 = vxpose.xlu0.b32.cont [15/16] 0.0, 128
        %2637 = vxpose.xlu0.b32.end [16/16] 0.0, 128
        %v2638 = vpop.trf.xlu0
        %v2639 = vpop.trf.xlu0
        %v2640 = vpop.trf.xlu0
        %v2641 = vpop.trf.xlu0
        %v2642 = vpop.trf.xlu0
        %v2643 = vpop.trf.xlu0
        %v2644 = vpop.trf.xlu0
        %v2645 = vpop.trf.xlu0
        %v2646 = vpop.trf.xlu0
        %v2647 = vpop.trf.xlu0
        %v2648 = vpop.trf.xlu0
        %v2649 = vpop.trf.xlu0
        %v2650 = vpop.trf.xlu0
        %v2651 = vpop.trf.xlu0
        %v2652 = vpop.trf.xlu0
        %v2653 = vpop.trf.xlu0
        %v2655 = vlaneseq
        %v2656 = vshrl.u32 %v2655, 7
        %v2657 = vsub.s32 0, %v2656
        %v2658 = vrot.slane %v2596, %v2657
        %v2659 = vlaneseq
        %v2660 = vshrl.u32 %v2659, 7
        %v2661 = vsub.s32 1, %v2660
        %v2662 = vrot.slane %v2596, %v2661
        %v2664 = vsel %vm1358, %v2638, 0
        %v2667 = vsel %vm1358, %v2639, 0
        %v2669 = vsel %vm1365, %v2658, 0
        %v2671 = vsel %vm1365, %v2662, 0
        %2673 = vmatprep.subr.mxu0 0.0
        %2674 = vmatpush1.msra.mxu0 0.0
        %2675 = vmatprep.subr.mxu0 0.0
        %2676 = vmatpush1.msra.mxu0 0.0
        %2677 = vmatprep.subr.mxu0 0.0
        %2678 = vmatpush1.msra.mxu0 0.0
        %2679 = vmatprep.subr.mxu0 0.0
        %2680 = vmatpush1.msra.mxu0 0.0
        %2681 = vmatprep.subr.mxu0 0.0
        %2682 = vmatpush1.msra.mxu0 0.0
        %2683 = vmatprep.subr.mxu0 0.0
        %2684 = vmatpush1.msra.mxu0 0.0
        %2685 = vmatprep.subr.mxu0 0.0
        %2686 = vmatpush1.msra.mxu0 0.0
        %2687 = vmatprep.subr.mxu0 0.0
        %2688 = vmatpush1.msra.mxu0 0.0
        %2689 = vmatprep.subr.mxu0 0.0
        %2690 = vmatpush1.msra.mxu0 0.0
        %2691 = vmatprep.subr.mxu0 0.0
        %2692 = vmatpush1.msra.mxu0 0.0
        %2693 = vmatprep.subr.mxu0 0.0
        %2694 = vmatpush1.msra.mxu0 0.0
        %2695 = vmatprep.subr.mxu0 0.0
        %2696 = vmatpush1.msra.mxu0 0.0
        %2697 = vmatprep.subr.mxu0 0.0
        %2698 = vmatpush1.msra.mxu0 0.0
        %2699 = vmatprep.subr.mxu0 0.0
        %2700 = vmatpush1.msra.mxu0 0.0
        %2701 = vmatprep.subr.mxu0 0.0
        %2702 = vmatpush1.msra.mxu0 0.0
        %2703 = vmatprep.subr.mxu0 %v2671
        %2704 = vmatpush1.msra.mxu0 %v2669
        %2705 = vmatprep.subr.mxu0 0.0
        %2706 = vmatpush2.msra.mxu0 0.0
        %2707 = vmatprep.subr.mxu0 0.0
        %2708 = vmatpush2.msra.mxu0 0.0
        %2709 = vmatprep.subr.mxu0 0.0
        %2710 = vmatpush2.msra.mxu0 0.0
        %2711 = vmatprep.subr.mxu0 0.0
        %2712 = vmatpush2.msra.mxu0 0.0
        %2713 = vmatprep.subr.mxu0 0.0
        %2714 = vmatpush2.msra.mxu0 0.0
        %2715 = vmatprep.subr.mxu0 0.0
        %2716 = vmatpush2.msra.mxu0 0.0
        %2717 = vmatprep.subr.mxu0 0.0
        %2718 = vmatpush2.msra.mxu0 0.0
        %2719 = vmatprep.subr.mxu0 0.0
        %2720 = vmatpush2.msra.mxu0 0.0
        %2721 = vmatprep.subr.mxu0 0.0
        %2722 = vmatpush2.msra.mxu0 0.0
        %2723 = vmatprep.subr.mxu0 0.0
        %2724 = vmatpush2.msra.mxu0 0.0
        %2725 = vmatprep.subr.mxu0 0.0
        %2726 = vmatpush2.msra.mxu0 0.0
        %2727 = vmatprep.subr.mxu0 0.0
        %2728 = vmatpush2.msra.mxu0 0.0
        %2729 = vmatprep.subr.mxu0 0.0
        %2730 = vmatpush2.msra.mxu0 0.0
        %2731 = vmatprep.subr.mxu0 0.0
        %2732 = vmatpush2.msra.mxu0 0.0
        %2733 = vmatprep.subr.mxu0 0.0
        %2734 = vmatpush2.msra.mxu0 0.0
        %2735 = vmatprep.subr.mxu0 0.0
        %2736 = vmatpush2.msra.mxu0 0.0
        %2737 = vmatprep.mubr.f32.mxu0 0.0
        %2738 = vmatmul.mubr.f32.gmra.mxu0 %v2664
        %v2739 = vpop.f32.mrf.mxu0
        %v2740 = vadd.f32 0.0, %v2739
        %v2741 = vpop.f32.mrf.mxu0
        %v2742 = vadd.f32 0.0, %v2741
        %2743 = vmatprep.mubr.f32.mxu0 0.0
        %2744 = vmatmul.mubr.f32.gmra.mxu0 %v2667
        %v2745 = vpop.f32.mrf.mxu0
        %v2746 = vadd.f32 0.0, %v2745
        %v2747 = vpop.f32.mrf.mxu0
        %v2748 = vadd.f32 0.0, %v2747
        %2749 = vdwg.mxu0
        %v2750 = vmul.f32 %v2494, %v2615
        %v2751 = vmul.f32 %v2495, %v2617
        %v2752 = vmul.f32 %v2496, %v2619
        %v2753 = vmul.f32 %v2497, %v2621
        %v2754 = vadd.f32 %v2750, %v2740
        %v2755 = vadd.f32 %v2751, %v2742
        %v2756 = vadd.f32 %v2752, %v2746
        %v2757 = vadd.f32 %v2753, %v2748
        %v2759 = vsel %vm1280, %v2598, 0
        %2761 = vmatprep.subr.mxu0 0.0
        %2762 = vmatpush1.msra.mxu0 0.0
        %2763 = vmatprep.subr.mxu0 0.0
        %2764 = vmatpush1.msra.mxu0 0.0
        %2765 = vmatprep.subr.mxu0 0.0
        %2766 = vmatpush1.msra.mxu0 0.0
        %2767 = vmatprep.subr.mxu0 0.0
        %2768 = vmatpush1.msra.mxu0 0.0
        %2769 = vmatprep.subr.mxu0 0.0
        %2770 = vmatpush1.msra.mxu0 0.0
        %2771 = vmatprep.subr.mxu0 0.0
        %2772 = vmatpush1.msra.mxu0 0.0
        %2773 = vmatprep.subr.mxu0 0.0
        %2774 = vmatpush1.msra.mxu0 0.0
        %2775 = vmatprep.subr.mxu0 0.0
        %2776 = vmatpush1.msra.mxu0 0.0
        %2777 = vmatprep.subr.mxu0 0.0
        %2778 = vmatpush1.msra.mxu0 0.0
        %2779 = vmatprep.subr.mxu0 0.0
        %2780 = vmatpush1.msra.mxu0 0.0
        %2781 = vmatprep.subr.mxu0 0.0
        %2782 = vmatpush1.msra.mxu0 0.0
        %2783 = vmatprep.subr.mxu0 0.0
        %2784 = vmatpush1.msra.mxu0 0.0
        %2785 = vmatprep.subr.mxu0 0.0
        %2786 = vmatpush1.msra.mxu0 0.0
        %2787 = vmatprep.subr.mxu0 0.0
        %2788 = vmatpush1.msra.mxu0 0.0
        %2789 = vmatprep.subr.mxu0 %v2757
        %2790 = vmatpush1.msra.mxu0 %v2756
        %2791 = vmatprep.subr.mxu0 %v2755
        %2792 = vmatpush1.msra.mxu0 %v2754
        %2793 = vmatprep.subr.mxu0 0.0
        %2794 = vmatpush2.msra.mxu0 0.0
        %2795 = vmatprep.subr.mxu0 0.0
        %2796 = vmatpush2.msra.mxu0 0.0
        %2797 = vmatprep.subr.mxu0 0.0
        %2798 = vmatpush2.msra.mxu0 0.0
        %2799 = vmatprep.subr.mxu0 0.0
        %2800 = vmatpush2.msra.mxu0 0.0
        %2801 = vmatprep.subr.mxu0 0.0
        %2802 = vmatpush2.msra.mxu0 0.0
        %2803 = vmatprep.subr.mxu0 0.0
        %2804 = vmatpush2.msra.mxu0 0.0
        %2805 = vmatprep.subr.mxu0 0.0
        %2806 = vmatpush2.msra.mxu0 0.0
        %2807 = vmatprep.subr.mxu0 0.0
        %2808 = vmatpush2.msra.mxu0 0.0
        %2809 = vmatprep.subr.mxu0 0.0
        %2810 = vmatpush2.msra.mxu0 0.0
        %2811 = vmatprep.subr.mxu0 0.0
        %2812 = vmatpush2.msra.mxu0 0.0
        %2813 = vmatprep.subr.mxu0 0.0
        %2814 = vmatpush2.msra.mxu0 0.0
        %2815 = vmatprep.subr.mxu0 0.0
        %2816 = vmatpush2.msra.mxu0 0.0
        %2817 = vmatprep.subr.mxu0 0.0
        %2818 = vmatpush2.msra.mxu0 0.0
        %2819 = vmatprep.subr.mxu0 0.0
        %2820 = vmatpush2.msra.mxu0 0.0
        %2821 = vmatprep.subr.mxu0 0.0
        %2822 = vmatpush2.msra.mxu0 0.0
        %2823 = vmatprep.subr.mxu0 0.0
        %2824 = vmatpush2.msra.mxu0 0.0
        %2825 = vmatprep.mubr.f32.mxu0 0.0
        %2826 = vmatmul.mubr.f32.gmra.mxu0 %v2759
        %v2827 = vpop.f32.mrf.mxu0
        %v2828 = vadd.f32 0.0, %v2827
        %v2829 = vpop.f32.mrf.mxu0
        %v2830 = vadd.f32 0.0, %v2829
        %2831 = vdwg.mxu0
        %v2834 = vcombine.low %v2828, %v2830
        %v2836 = vunpack.c.l.s4 1966171168
        %v2837 = vunpack.c.0.s8 %v2836
        %v2838 = vlaneseq
        %v2839 = vshrl.u32 %v2838, 7
        %v2840 = vsub.s32 %v2837, %v2839
        %v2841 = vrot.slane %v2834, %v2840
        %v2843 = vunpack.c.l.s4 1966171168
        %v2844 = vunpack.c.0.s8 %v2843
        %v2845 = vlaneseq
        %v2846 = vshrl.u32 %v2845, 7
        %v2847 = vsub.s32 %v2844, %v2846
        %v2848 = vrot.slane %v2841, %v2847
        %s2850 = scalar_lea.vmem [#allocation8], 5
        %2851 = vst.msk [vmem:[%s2850] ss:$8 sm:$0x3] %vm1550, %v2848
        %2852 = vst.msk [vmem:[%s2850] ss:$8 sm:$0x0] %vm1550, %v2848
        %s2853 = scalar_lea.vmem [#allocation4], 6
        %v2854 = vld [vmem:[%s2853] ss:$8 sm:$0x3]
        %s2855 = scalar_lea.vmem [#allocation5], 6
        %v2856 = vld [vmem:[%s2855] ss:$8 sm:$0x3]
        %v2857 = vld [vmem:[#allocation6 + $0x6] sm:$0x1]
        %v2858 = vld [vmem:[#allocation7 + $0x6] sm:$0x1]
        %v2860 = vlaneseq
        %v2861 = vshrl.u32 %v2860, 7
        %v2862 = vsub.s32 0, %v2861
        %v2863 = vrot.slane %v2854, %v2862
        %v2864 = vlaneseq
        %v2865 = vshrl.u32 %v2864, 7
        %v2866 = vsub.s32 1, %v2865
        %v2867 = vrot.slane %v2854, %v2866
        %v2870 = vmul.f32 %v2863, %v1266
        %v2871 = vmul.f32 %v2867, %v1267
        %v2872 = vmul.f32 %v2863, %v1268
        %v2873 = vmul.f32 %v2867, %v1269
        %v2874 = vmul.f32 %v2870, 1.442695
        %v2875 = vpow.pop %v2874
        %v2876 = vmul.f32 %v2871, 1.442695
        %v2877 = vpow.pop %v2876
        %v2878 = vmul.f32 %v2872, 1.442695
        %v2879 = vpow.pop %v2878
        %v2880 = vmul.f32 %v2873, 1.442695
        %v2881 = vpow.pop %v2880
        %2882 = vxpose.xlu0.b32.start [1/16] %v2857, 128
        %2883 = vxpose.xlu0.b32.cont [2/16] 0.0, 128
        %2884 = vxpose.xlu0.b32.cont [3/16] 0.0, 128
        %2885 = vxpose.xlu0.b32.cont [4/16] 0.0, 128
        %2886 = vxpose.xlu0.b32.cont [5/16] 0.0, 128
        %2887 = vxpose.xlu0.b32.cont [6/16] 0.0, 128
        %2888 = vxpose.xlu0.b32.cont [7/16] 0.0, 128
        %2889 = vxpose.xlu0.b32.cont [8/16] 0.0, 128
        %2890 = vxpose.xlu0.b32.cont [9/16] 0.0, 128
        %2891 = vxpose.xlu0.b32.cont [10/16] 0.0, 128
        %2892 = vxpose.xlu0.b32.cont [11/16] 0.0, 128
        %2893 = vxpose.xlu0.b32.cont [12/16] 0.0, 128
        %2894 = vxpose.xlu0.b32.cont [13/16] 0.0, 128
        %2895 = vxpose.xlu0.b32.cont [14/16] 0.0, 128
        %2896 = vxpose.xlu0.b32.cont [15/16] 0.0, 128
        %2897 = vxpose.xlu0.b32.end [16/16] 0.0, 128
        %v2898 = vpop.trf.xlu0
        %v2899 = vpop.trf.xlu0
        %v2900 = vpop.trf.xlu0
        %v2901 = vpop.trf.xlu0
        %v2902 = vpop.trf.xlu0
        %v2903 = vpop.trf.xlu0
        %v2904 = vpop.trf.xlu0
        %v2905 = vpop.trf.xlu0
        %v2906 = vpop.trf.xlu0
        %v2907 = vpop.trf.xlu0
        %v2908 = vpop.trf.xlu0
        %v2909 = vpop.trf.xlu0
        %v2910 = vpop.trf.xlu0
        %v2911 = vpop.trf.xlu0
        %v2912 = vpop.trf.xlu0
        %v2913 = vpop.trf.xlu0
        %v2915 = vlaneseq
        %v2916 = vshrl.u32 %v2915, 7
        %v2917 = vsub.s32 0, %v2916
        %v2918 = vrot.slane %v2856, %v2917
        %v2919 = vlaneseq
        %v2920 = vshrl.u32 %v2919, 7
        %v2921 = vsub.s32 1, %v2920
        %v2922 = vrot.slane %v2856, %v2921
        %v2924 = vsel %vm1358, %v2898, 0
        %v2927 = vsel %vm1358, %v2899, 0
        %v2929 = vsel %vm1365, %v2918, 0
        %v2931 = vsel %vm1365, %v2922, 0
        %2933 = vmatprep.subr.mxu0 0.0
        %2934 = vmatpush1.msra.mxu0 0.0
        %2935 = vmatprep.subr.mxu0 0.0
        %2936 = vmatpush1.msra.mxu0 0.0
        %2937 = vmatprep.subr.mxu0 0.0
        %2938 = vmatpush1.msra.mxu0 0.0
        %2939 = vmatprep.subr.mxu0 0.0
        %2940 = vmatpush1.msra.mxu0 0.0
        %2941 = vmatprep.subr.mxu0 0.0
        %2942 = vmatpush1.msra.mxu0 0.0
        %2943 = vmatprep.subr.mxu0 0.0
        %2944 = vmatpush1.msra.mxu0 0.0
        %2945 = vmatprep.subr.mxu0 0.0
        %2946 = vmatpush1.msra.mxu0 0.0
        %2947 = vmatprep.subr.mxu0 0.0
        %2948 = vmatpush1.msra.mxu0 0.0
        %2949 = vmatprep.subr.mxu0 0.0
        %2950 = vmatpush1.msra.mxu0 0.0
        %2951 = vmatprep.subr.mxu0 0.0
        %2952 = vmatpush1.msra.mxu0 0.0
        %2953 = vmatprep.subr.mxu0 0.0
        %2954 = vmatpush1.msra.mxu0 0.0
        %2955 = vmatprep.subr.mxu0 0.0
        %2956 = vmatpush1.msra.mxu0 0.0
        %2957 = vmatprep.subr.mxu0 0.0
        %2958 = vmatpush1.msra.mxu0 0.0
        %2959 = vmatprep.subr.mxu0 0.0
        %2960 = vmatpush1.msra.mxu0 0.0
        %2961 = vmatprep.subr.mxu0 0.0
        %2962 = vmatpush1.msra.mxu0 0.0
        %2963 = vmatprep.subr.mxu0 %v2931
        %2964 = vmatpush1.msra.mxu0 %v2929
        %2965 = vmatprep.subr.mxu0 0.0
        %2966 = vmatpush2.msra.mxu0 0.0
        %2967 = vmatprep.subr.mxu0 0.0
        %2968 = vmatpush2.msra.mxu0 0.0
        %2969 = vmatprep.subr.mxu0 0.0
        %2970 = vmatpush2.msra.mxu0 0.0
        %2971 = vmatprep.subr.mxu0 0.0
        %2972 = vmatpush2.msra.mxu0 0.0
        %2973 = vmatprep.subr.mxu0 0.0
        %2974 = vmatpush2.msra.mxu0 0.0
        %2975 = vmatprep.subr.mxu0 0.0
        %2976 = vmatpush2.msra.mxu0 0.0
        %2977 = vmatprep.subr.mxu0 0.0
        %2978 = vmatpush2.msra.mxu0 0.0
        %2979 = vmatprep.subr.mxu0 0.0
        %2980 = vmatpush2.msra.mxu0 0.0
        %2981 = vmatprep.subr.mxu0 0.0
        %2982 = vmatpush2.msra.mxu0 0.0
        %2983 = vmatprep.subr.mxu0 0.0
        %2984 = vmatpush2.msra.mxu0 0.0
        %2985 = vmatprep.subr.mxu0 0.0
        %2986 = vmatpush2.msra.mxu0 0.0
        %2987 = vmatprep.subr.mxu0 0.0
        %2988 = vmatpush2.msra.mxu0 0.0
        %2989 = vmatprep.subr.mxu0 0.0
        %2990 = vmatpush2.msra.mxu0 0.0
        %2991 = vmatprep.subr.mxu0 0.0
        %2992 = vmatpush2.msra.mxu0 0.0
        %2993 = vmatprep.subr.mxu0 0.0
        %2994 = vmatpush2.msra.mxu0 0.0
        %2995 = vmatprep.subr.mxu0 0.0
        %2996 = vmatpush2.msra.mxu0 0.0
        %2997 = vmatprep.mubr.f32.mxu0 0.0
        %2998 = vmatmul.mubr.f32.gmra.mxu0 %v2924
        %v2999 = vpop.f32.mrf.mxu0
        %v3000 = vadd.f32 0.0, %v2999
        %v3001 = vpop.f32.mrf.mxu0
        %v3002 = vadd.f32 0.0, %v3001
        %3003 = vmatprep.mubr.f32.mxu0 0.0
        %3004 = vmatmul.mubr.f32.gmra.mxu0 %v2927
        %v3005 = vpop.f32.mrf.mxu0
        %v3006 = vadd.f32 0.0, %v3005
        %v3007 = vpop.f32.mrf.mxu0
        %v3008 = vadd.f32 0.0, %v3007
        %3009 = vdwg.mxu0
        %v3010 = vmul.f32 %v2754, %v2875
        %v3011 = vmul.f32 %v2755, %v2877
        %v3012 = vmul.f32 %v2756, %v2879
        %v3013 = vmul.f32 %v2757, %v2881
        %v3014 = vadd.f32 %v3010, %v3000
        %v3015 = vadd.f32 %v3011, %v3002
        %v3016 = vadd.f32 %v3012, %v3006
        %v3017 = vadd.f32 %v3013, %v3008
        %v3019 = vsel %vm1280, %v2858, 0
        %3021 = vmatprep.subr.mxu0 0.0
        %3022 = vmatpush1.msra.mxu0 0.0
        %3023 = vmatprep.subr.mxu0 0.0
        %3024 = vmatpush1.msra.mxu0 0.0
        %3025 = vmatprep.subr.mxu0 0.0
        %3026 = vmatpush1.msra.mxu0 0.0
        %3027 = vmatprep.subr.mxu0 0.0
        %3028 = vmatpush1.msra.mxu0 0.0
        %3029 = vmatprep.subr.mxu0 0.0
        %3030 = vmatpush1.msra.mxu0 0.0
        %3031 = vmatprep.subr.mxu0 0.0
        %3032 = vmatpush1.msra.mxu0 0.0
        %3033 = vmatprep.subr.mxu0 0.0
        %3034 = vmatpush1.msra.mxu0 0.0
        %3035 = vmatprep.subr.mxu0 0.0
        %3036 = vmatpush1.msra.mxu0 0.0
        %3037 = vmatprep.subr.mxu0 0.0
        %3038 = vmatpush1.msra.mxu0 0.0
        %3039 = vmatprep.subr.mxu0 0.0
        %3040 = vmatpush1.msra.mxu0 0.0
        %3041 = vmatprep.subr.mxu0 0.0
        %3042 = vmatpush1.msra.mxu0 0.0
        %3043 = vmatprep.subr.mxu0 0.0
        %3044 = vmatpush1.msra.mxu0 0.0
        %3045 = vmatprep.subr.mxu0 0.0
        %3046 = vmatpush1.msra.mxu0 0.0
        %3047 = vmatprep.subr.mxu0 0.0
        %3048 = vmatpush1.msra.mxu0 0.0
        %3049 = vmatprep.subr.mxu0 %v3017
        %3050 = vmatpush1.msra.mxu0 %v3016
        %3051 = vmatprep.subr.mxu0 %v3015
        %3052 = vmatpush1.msra.mxu0 %v3014
        %3053 = vmatprep.subr.mxu0 0.0
        %3054 = vmatpush2.msra.mxu0 0.0
        %3055 = vmatprep.subr.mxu0 0.0
        %3056 = vmatpush2.msra.mxu0 0.0
        %3057 = vmatprep.subr.mxu0 0.0
        %3058 = vmatpush2.msra.mxu0 0.0
        %3059 = vmatprep.subr.mxu0 0.0
        %3060 = vmatpush2.msra.mxu0 0.0
        %3061 = vmatprep.subr.mxu0 0.0
        %3062 = vmatpush2.msra.mxu0 0.0
        %3063 = vmatprep.subr.mxu0 0.0
        %3064 = vmatpush2.msra.mxu0 0.0
        %3065 = vmatprep.subr.mxu0 0.0
        %3066 = vmatpush2.msra.mxu0 0.0
        %3067 = vmatprep.subr.mxu0 0.0
        %3068 = vmatpush2.msra.mxu0 0.0
        %3069 = vmatprep.subr.mxu0 0.0
        %3070 = vmatpush2.msra.mxu0 0.0
        %3071 = vmatprep.subr.mxu0 0.0
        %3072 = vmatpush2.msra.mxu0 0.0
        %3073 = vmatprep.subr.mxu0 0.0
        %3074 = vmatpush2.msra.mxu0 0.0
        %3075 = vmatprep.subr.mxu0 0.0
        %3076 = vmatpush2.msra.mxu0 0.0
        %3077 = vmatprep.subr.mxu0 0.0
        %3078 = vmatpush2.msra.mxu0 0.0
        %3079 = vmatprep.subr.mxu0 0.0
        %3080 = vmatpush2.msra.mxu0 0.0
        %3081 = vmatprep.subr.mxu0 0.0
        %3082 = vmatpush2.msra.mxu0 0.0
        %3083 = vmatprep.subr.mxu0 0.0
        %3084 = vmatpush2.msra.mxu0 0.0
        %3085 = vmatprep.mubr.f32.mxu0 0.0
        %3086 = vmatmul.mubr.f32.gmra.mxu0 %v3019
        %v3087 = vpop.f32.mrf.mxu0
        %v3088 = vadd.f32 0.0, %v3087
        %v3089 = vpop.f32.mrf.mxu0
        %v3090 = vadd.f32 0.0, %v3089
        %3091 = vdwg.mxu0
        %v3094 = vcombine.low %v3088, %v3090
        %v3096 = vunpack.c.l.s4 1966171168
        %v3097 = vunpack.c.0.s8 %v3096
        %v3098 = vlaneseq
        %v3099 = vshrl.u32 %v3098, 7
        %v3100 = vsub.s32 %v3097, %v3099
        %v3101 = vrot.slane %v3094, %v3100
        %v3103 = vunpack.c.l.s4 1966171168
        %v3104 = vunpack.c.0.s8 %v3103
        %v3105 = vlaneseq
        %v3106 = vshrl.u32 %v3105, 7
        %v3107 = vsub.s32 %v3104, %v3106
        %v3108 = vrot.slane %v3101, %v3107
        %s3110 = scalar_lea.vmem [#allocation8], 6
        %3111 = vst.msk [vmem:[%s3110] ss:$8 sm:$0x3] %vm1550, %v3108
        %3112 = vst.msk [vmem:[%s3110] ss:$8 sm:$0x0] %vm1550, %v3108
        %s3113 = scalar_lea.vmem [#allocation4], 7
        %v3114 = vld [vmem:[%s3113] ss:$8 sm:$0x3]
        %s3115 = scalar_lea.vmem [#allocation5], 7
        %v3116 = vld [vmem:[%s3115] ss:$8 sm:$0x3]
        %v3117 = vld [vmem:[#allocation6 + $0x7] sm:$0x1]
        %v3118 = vld [vmem:[#allocation7 + $0x7] sm:$0x1]
        %v3120 = vlaneseq
        %v3121 = vshrl.u32 %v3120, 7
        %v3122 = vsub.s32 0, %v3121
        %v3123 = vrot.slane %v3114, %v3122
        %v3124 = vlaneseq
        %v3125 = vshrl.u32 %v3124, 7
        %v3126 = vsub.s32 1, %v3125
        %v3127 = vrot.slane %v3114, %v3126
        %v3130 = vmul.f32 %v3123, %v1266
        %v3131 = vmul.f32 %v3127, %v1267
        %v3132 = vmul.f32 %v3123, %v1268
        %v3133 = vmul.f32 %v3127, %v1269
        %v3134 = vmul.f32 %v3130, 1.442695
        %v3135 = vpow.pop %v3134
        %v3136 = vmul.f32 %v3131, 1.442695
        %v3137 = vpow.pop %v3136
        %v3138 = vmul.f32 %v3132, 1.442695
        %v3139 = vpow.pop %v3138
        %v3140 = vmul.f32 %v3133, 1.442695
        %v3141 = vpow.pop %v3140
        %3142 = vxpose.xlu0.b32.start [1/16] %v3117, 128
        %3143 = vxpose.xlu0.b32.cont [2/16] 0.0, 128
        %3144 = vxpose.xlu0.b32.cont [3/16] 0.0, 128
        %3145 = vxpose.xlu0.b32.cont [4/16] 0.0, 128
        %3146 = vxpose.xlu0.b32.cont [5/16] 0.0, 128
        %3147 = vxpose.xlu0.b32.cont [6/16] 0.0, 128
        %3148 = vxpose.xlu0.b32.cont [7/16] 0.0, 128
        %3149 = vxpose.xlu0.b32.cont [8/16] 0.0, 128
        %3150 = vxpose.xlu0.b32.cont [9/16] 0.0, 128
        %3151 = vxpose.xlu0.b32.cont [10/16] 0.0, 128
        %3152 = vxpose.xlu0.b32.cont [11/16] 0.0, 128
        %3153 = vxpose.xlu0.b32.cont [12/16] 0.0, 128
        %3154 = vxpose.xlu0.b32.cont [13/16] 0.0, 128
        %3155 = vxpose.xlu0.b32.cont [14/16] 0.0, 128
        %3156 = vxpose.xlu0.b32.cont [15/16] 0.0, 128
        %3157 = vxpose.xlu0.b32.end [16/16] 0.0, 128
        %v3158 = vpop.trf.xlu0
        %v3159 = vpop.trf.xlu0
        %v3160 = vpop.trf.xlu0
        %v3161 = vpop.trf.xlu0
        %v3162 = vpop.trf.xlu0
        %v3163 = vpop.trf.xlu0
        %v3164 = vpop.trf.xlu0
        %v3165 = vpop.trf.xlu0
        %v3166 = vpop.trf.xlu0
        %v3167 = vpop.trf.xlu0
        %v3168 = vpop.trf.xlu0
        %v3169 = vpop.trf.xlu0
        %v3170 = vpop.trf.xlu0
        %v3171 = vpop.trf.xlu0
        %v3172 = vpop.trf.xlu0
        %v3173 = vpop.trf.xlu0
        %v3175 = vlaneseq
        %v3176 = vshrl.u32 %v3175, 7
        %v3177 = vsub.s32 0, %v3176
        %v3178 = vrot.slane %v3116, %v3177
        %v3179 = vlaneseq
        %v3180 = vshrl.u32 %v3179, 7
        %v3181 = vsub.s32 1, %v3180
        %v3182 = vrot.slane %v3116, %v3181
        %v3184 = vsel %vm1358, %v3158, 0
        %v3187 = vsel %vm1358, %v3159, 0
        %v3189 = vsel %vm1365, %v3178, 0
        %v3191 = vsel %vm1365, %v3182, 0
        %3193 = vmatprep.subr.mxu0 0.0
        %3194 = vmatpush1.msra.mxu0 0.0
        %3195 = vmatprep.subr.mxu0 0.0
        %3196 = vmatpush1.msra.mxu0 0.0
        %3197 = vmatprep.subr.mxu0 0.0
        %3198 = vmatpush1.msra.mxu0 0.0
        %3199 = vmatprep.subr.mxu0 0.0
        %3200 = vmatpush1.msra.mxu0 0.0
        %3201 = vmatprep.subr.mxu0 0.0
        %3202 = vmatpush1.msra.mxu0 0.0
        %3203 = vmatprep.subr.mxu0 0.0
        %3204 = vmatpush1.msra.mxu0 0.0
        %3205 = vmatprep.subr.mxu0 0.0
        %3206 = vmatpush1.msra.mxu0 0.0
        %3207 = vmatprep.subr.mxu0 0.0
        %3208 = vmatpush1.msra.mxu0 0.0
        %3209 = vmatprep.subr.mxu0 0.0
        %3210 = vmatpush1.msra.mxu0 0.0
        %3211 = vmatprep.subr.mxu0 0.0
        %3212 = vmatpush1.msra.mxu0 0.0
        %3213 = vmatprep.subr.mxu0 0.0
        %3214 = vmatpush1.msra.mxu0 0.0
        %3215 = vmatprep.subr.mxu0 0.0
        %3216 = vmatpush1.msra.mxu0 0.0
        %3217 = vmatprep.subr.mxu0 0.0
        %3218 = vmatpush1.msra.mxu0 0.0
        %3219 = vmatprep.subr.mxu0 0.0
        %3220 = vmatpush1.msra.mxu0 0.0
        %3221 = vmatprep.subr.mxu0 0.0
        %3222 = vmatpush1.msra.mxu0 0.0
        %3223 = vmatprep.subr.mxu0 %v3191
        %3224 = vmatpush1.msra.mxu0 %v3189
        %3225 = vmatprep.subr.mxu0 0.0
        %3226 = vmatpush2.msra.mxu0 0.0
        %3227 = vmatprep.subr.mxu0 0.0
        %3228 = vmatpush2.msra.mxu0 0.0
        %3229 = vmatprep.subr.mxu0 0.0
        %3230 = vmatpush2.msra.mxu0 0.0
        %3231 = vmatprep.subr.mxu0 0.0
        %3232 = vmatpush2.msra.mxu0 0.0
        %3233 = vmatprep.subr.mxu0 0.0
        %3234 = vmatpush2.msra.mxu0 0.0
        %3235 = vmatprep.subr.mxu0 0.0
        %3236 = vmatpush2.msra.mxu0 0.0
        %3237 = vmatprep.subr.mxu0 0.0
        %3238 = vmatpush2.msra.mxu0 0.0
        %3239 = vmatprep.subr.mxu0 0.0
        %3240 = vmatpush2.msra.mxu0 0.0
        %3241 = vmatprep.subr.mxu0 0.0
        %3242 = vmatpush2.msra.mxu0 0.0
        %3243 = vmatprep.subr.mxu0 0.0
        %3244 = vmatpush2.msra.mxu0 0.0
        %3245 = vmatprep.subr.mxu0 0.0
        %3246 = vmatpush2.msra.mxu0 0.0
        %3247 = vmatprep.subr.mxu0 0.0
        %3248 = vmatpush2.msra.mxu0 0.0
        %3249 = vmatprep.subr.mxu0 0.0
        %3250 = vmatpush2.msra.mxu0 0.0
        %3251 = vmatprep.subr.mxu0 0.0
        %3252 = vmatpush2.msra.mxu0 0.0
        %3253 = vmatprep.subr.mxu0 0.0
        %3254 = vmatpush2.msra.mxu0 0.0
        %3255 = vmatprep.subr.mxu0 0.0
        %3256 = vmatpush2.msra.mxu0 0.0
        %3257 = vmatprep.mubr.f32.mxu0 0.0
        %3258 = vmatmul.mubr.f32.gmra.mxu0 %v3184
        %v3259 = vpop.f32.mrf.mxu0
        %v3260 = vadd.f32 0.0, %v3259
        %v3261 = vpop.f32.mrf.mxu0
        %v3262 = vadd.f32 0.0, %v3261
        %3263 = vmatprep.mubr.f32.mxu0 0.0
        %3264 = vmatmul.mubr.f32.gmra.mxu0 %v3187
        %v3265 = vpop.f32.mrf.mxu0
        %v3266 = vadd.f32 0.0, %v3265
        %v3267 = vpop.f32.mrf.mxu0
        %v3268 = vadd.f32 0.0, %v3267
        %3269 = vdwg.mxu0
        %v3270 = vmul.f32 %v3014, %v3135
        %v3271 = vmul.f32 %v3015, %v3137
        %v3272 = vmul.f32 %v3016, %v3139
        %v3273 = vmul.f32 %v3017, %v3141
        %v3274 = vadd.f32 %v3270, %v3260
        %v3275 = vadd.f32 %v3271, %v3262
        %v3276 = vadd.f32 %v3272, %v3266
        %v3277 = vadd.f32 %v3273, %v3268
        %v3279 = vsel %vm1280, %v3118, 0
        %3281 = vmatprep.subr.mxu0 0.0
        %3282 = vmatpush1.msra.mxu0 0.0
        %3283 = vmatprep.subr.mxu0 0.0
        %3284 = vmatpush1.msra.mxu0 0.0
        %3285 = vmatprep.subr.mxu0 0.0
        %3286 = vmatpush1.msra.mxu0 0.0
        %3287 = vmatprep.subr.mxu0 0.0
        %3288 = vmatpush1.msra.mxu0 0.0
        %3289 = vmatprep.subr.mxu0 0.0
        %3290 = vmatpush1.msra.mxu0 0.0
        %3291 = vmatprep.subr.mxu0 0.0
        %3292 = vmatpush1.msra.mxu0 0.0
        %3293 = vmatprep.subr.mxu0 0.0
        %3294 = vmatpush1.msra.mxu0 0.0
        %3295 = vmatprep.subr.mxu0 0.0
        %3296 = vmatpush1.msra.mxu0 0.0
        %3297 = vmatprep.subr.mxu0 0.0
        %3298 = vmatpush1.msra.mxu0 0.0
        %3299 = vmatprep.subr.mxu0 0.0
        %3300 = vmatpush1.msra.mxu0 0.0
        %3301 = vmatprep.subr.mxu0 0.0
        %3302 = vmatpush1.msra.mxu0 0.0
        %3303 = vmatprep.subr.mxu0 0.0
        %3304 = vmatpush1.msra.mxu0 0.0
        %3305 = vmatprep.subr.mxu0 0.0
        %3306 = vmatpush1.msra.mxu0 0.0
        %3307 = vmatprep.subr.mxu0 0.0
        %3308 = vmatpush1.msra.mxu0 0.0
        %3309 = vmatprep.subr.mxu0 %v3277
        %3310 = vmatpush1.msra.mxu0 %v3276
        %3311 = vmatprep.subr.mxu0 %v3275
        %3312 = vmatpush1.msra.mxu0 %v3274
        %3313 = vmatprep.subr.mxu0 0.0
        %3314 = vmatpush2.msra.mxu0 0.0
        %3315 = vmatprep.subr.mxu0 0.0
        %3316 = vmatpush2.msra.mxu0 0.0
        %3317 = vmatprep.subr.mxu0 0.0
        %3318 = vmatpush2.msra.mxu0 0.0
        %3319 = vmatprep.subr.mxu0 0.0
        %3320 = vmatpush2.msra.mxu0 0.0
        %3321 = vmatprep.subr.mxu0 0.0
        %3322 = vmatpush2.msra.mxu0 0.0
        %3323 = vmatprep.subr.mxu0 0.0
        %3324 = vmatpush2.msra.mxu0 0.0
        %3325 = vmatprep.subr.mxu0 0.0
        %3326 = vmatpush2.msra.mxu0 0.0
        %3327 = vmatprep.subr.mxu0 0.0
        %3328 = vmatpush2.msra.mxu0 0.0
        %3329 = vmatprep.subr.mxu0 0.0
        %3330 = vmatpush2.msra.mxu0 0.0
        %3331 = vmatprep.subr.mxu0 0.0
        %3332 = vmatpush2.msra.mxu0 0.0
        %3333 = vmatprep.subr.mxu0 0.0
        %3334 = vmatpush2.msra.mxu0 0.0
        %3335 = vmatprep.subr.mxu0 0.0
        %3336 = vmatpush2.msra.mxu0 0.0
        %3337 = vmatprep.subr.mxu0 0.0
        %3338 = vmatpush2.msra.mxu0 0.0
        %3339 = vmatprep.subr.mxu0 0.0
        %3340 = vmatpush2.msra.mxu0 0.0
        %3341 = vmatprep.subr.mxu0 0.0
        %3342 = vmatpush2.msra.mxu0 0.0
        %3343 = vmatprep.subr.mxu0 0.0
        %3344 = vmatpush2.msra.mxu0 0.0
        %3345 = vmatprep.mubr.f32.mxu0 0.0
        %3346 = vmatmul.mubr.f32.gmra.mxu0 %v3279
        %v3347 = vpop.f32.mrf.mxu0
        %v3348 = vadd.f32 0.0, %v3347
        %v3349 = vpop.f32.mrf.mxu0
        %v3350 = vadd.f32 0.0, %v3349
        %3351 = vdwg.mxu0
        %v3354 = vcombine.low %v3348, %v3350
        %v3356 = vunpack.c.l.s4 1966171168
        %v3357 = vunpack.c.0.s8 %v3356
        %v3358 = vlaneseq
        %v3359 = vshrl.u32 %v3358, 7
        %v3360 = vsub.s32 %v3357, %v3359
        %v3361 = vrot.slane %v3354, %v3360
        %v3363 = vunpack.c.l.s4 1966171168
        %v3364 = vunpack.c.0.s8 %v3363
        %v3365 = vlaneseq
        %v3366 = vshrl.u32 %v3365, 7
        %v3367 = vsub.s32 %v3364, %v3366
        %v3368 = vrot.slane %v3361, %v3367
        %s3370 = scalar_lea.vmem [#allocation8], 7
        %3371 = vst.msk [vmem:[%s3370] ss:$8 sm:$0x3] %vm1550, %v3368
        %3372 = vst.msk [vmem:[%s3370] ss:$8 sm:$0x0] %vm1550, %v3368
        %3373 = vst [vmem:[#allocation3] sm:$0xff] %v3274
        %3374 = vst [vmem:[#allocation3 + $0x8] sm:$0xff] %v3275
        %3375 = vst [vmem:[#allocation3 + $0x10] sm:$0xff] %v3276
        %3376 = vst [vmem:[#allocation3 + $0x18] sm:$0xff] %v3277
        %v3377 = vld [vmem:[#allocation8] sm:$0xff]
        %v3378 = vld [vmem:[#allocation8 + $0x8] sm:$0xff]
        %v3379 = vld [vmem:[%s8] sm:$0x3]
        %v3381 = vlaneseq
        %v3382 = vshrl.u32 %v3381, 7
        %v3383 = vsub.s32 0, %v3382
        %v3384 = vrot.slane %v3379, %v3383
        %v3385 = vlaneseq
        %v3386 = vshrl.u32 %v3385, 7
        %v3387 = vsub.s32 1, %v3386
        %v3388 = vrot.slane %v3379, %v3387
        %v3391 = vmul.f32 %v3384, %v956
        %v3392 = vmul.f32 %v3388, %v957
        %v3393 = vadd.f32 %v3377, %v3391
        %v3394 = vadd.f32 %v3378, %v3392
        %v3395 = vsub.f32 0.0, %v772
        %v3396 = vsub.f32 0.0, %v774
        %v3397 = vmul.f32 %v3395, 1.442695
        %v3398 = vpow.pop %v3397
        %v3399 = vmul.f32 %v3396, 1.442695
        %v3400 = vpow.pop %v3399
        %v3401 = vadd.f32 %v3398, 1.0
        %v3402 = vadd.f32 %v3400, 1.0
        %v3403 = vrcp.pop %v3401
        %v3404 = vmul.f32 1.0, %v3403
        %v3405 = vrcp.pop %v3402
        %v3406 = vmul.f32 1.0, %v3405
        %v3407 = vmul.f32 %v772, %v3404
        %v3408 = vmul.f32 %v774, %v3406
        %v3409 = vmul.f32 %v3393, %v3407
        %v3410 = vmul.f32 %v3394, %v3408
        %v3411 = vpack.c.bf16 %v3409, %v3409
        %v3412 = vpack.c.bf16 %v3410, %v3410
        %v3413 = vld [vmem:[%s9] sm:$0xff]
        %v3414 = vld [vmem:[%s9 + $0x8] sm:$0xff]
        %v3415 = vld [vmem:[%s9 + $0x10] sm:$0xff]
        %v3416 = vld [vmem:[%s9 + $0x18] sm:$0xff]
        %v3417 = vld [vmem:[%s9 + $0x20] sm:$0xff]
        %v3418 = vld [vmem:[%s9 + $0x28] sm:$0xff]
        %v3419 = vld [vmem:[%s9 + $0x30] sm:$0xff]
        %v3420 = vld [vmem:[%s9 + $0x38] sm:$0xff]
        %v3421 = vld [vmem:[%s9 + $0x40] sm:$0xff]
        %v3422 = vld [vmem:[%s9 + $0x48] sm:$0xff]
        %v3423 = vld [vmem:[%s9 + $0x50] sm:$0xff]
        %v3424 = vld [vmem:[%s9 + $0x58] sm:$0xff]
        %v3425 = vld [vmem:[%s9 + $0x60] sm:$0xff]
        %v3426 = vld [vmem:[%s9 + $0x68] sm:$0xff]
        %v3427 = vld [vmem:[%s9 + $0x70] sm:$0xff]
        %v3428 = vld [vmem:[%s9 + $0x78] sm:$0xff]
        %v3445 = vunpack.c.l.b16 %v3413
        %v3446 = vunpack.c.h.b16 %v3413
        %v3447 = vunpack.c.l.b16 %v3414
        %v3448 = vunpack.c.h.b16 %v3414
        %v3449 = vunpack.c.l.b16 %v3415
        %v3450 = vunpack.c.h.b16 %v3415
        %v3451 = vunpack.c.l.b16 %v3416
        %v3452 = vunpack.c.h.b16 %v3416
        %v3453 = vunpack.c.l.b16 %v3417
        %v3454 = vunpack.c.h.b16 %v3417
        %v3455 = vunpack.c.l.b16 %v3418
        %v3456 = vunpack.c.h.b16 %v3418
        %v3457 = vunpack.c.l.b16 %v3419
        %v3458 = vunpack.c.h.b16 %v3419
        %v3459 = vunpack.c.l.b16 %v3420
        %v3460 = vunpack.c.h.b16 %v3420
        %v3461 = vunpack.c.l.b16 %v3421
        %v3462 = vunpack.c.h.b16 %v3421
        %v3463 = vunpack.c.l.b16 %v3422
        %v3464 = vunpack.c.h.b16 %v3422
        %v3465 = vunpack.c.l.b16 %v3423
        %v3466 = vunpack.c.h.b16 %v3423
        %v3467 = vunpack.c.l.b16 %v3424
        %v3468 = vunpack.c.h.b16 %v3424
        %v3469 = vunpack.c.l.b16 %v3425
        %v3470 = vunpack.c.h.b16 %v3425
        %v3471 = vunpack.c.l.b16 %v3426
        %v3472 = vunpack.c.h.b16 %v3426
        %v3473 = vunpack.c.l.b16 %v3427
        %v3474 = vunpack.c.h.b16 %v3427
        %v3475 = vunpack.c.l.b16 %v3428
        %v3476 = vunpack.c.h.b16 %v3428
        %v3477 = vpack.c.b16 %v3447, %v3445
        %v3478 = vpack.c.b16 %v3448, %v3446
        %v3479 = vpack.c.b16 %v3451, %v3449
        %v3480 = vpack.c.b16 %v3452, %v3450
        %v3481 = vpack.c.b16 %v3455, %v3453
        %v3482 = vpack.c.b16 %v3456, %v3454
        %v3483 = vpack.c.b16 %v3459, %v3457
        %v3484 = vpack.c.b16 %v3460, %v3458
        %v3485 = vpack.c.b16 %v3463, %v3461
        %v3486 = vpack.c.b16 %v3464, %v3462
        %v3487 = vpack.c.b16 %v3467, %v3465
        %v3488 = vpack.c.b16 %v3468, %v3466
        %v3489 = vpack.c.b16 %v3471, %v3469
        %v3490 = vpack.c.b16 %v3472, %v3470
        %v3491 = vpack.c.b16 %v3475, %v3473
        %v3492 = vpack.c.b16 %v3476, %v3474
        %3509 = vmatprep.subr.bf16.mxu0 %v3492
        %3510 = vmatpush1.bf16.xpose.msra.mxu0 %v3491
        %3511 = vmatprep.subr.bf16.mxu0 %v3490
        %3512 = vmatpush1.bf16.xpose.msra.mxu0 %v3489
        %3513 = vmatprep.subr.bf16.mxu0 %v3488
        %3514 = vmatpush1.bf16.xpose.msra.mxu0 %v3487
        %3515 = vmatprep.subr.bf16.mxu0 %v3486
        %3516 = vmatpush1.bf16.xpose.msra.mxu0 %v3485
        %3517 = vmatprep.subr.bf16.mxu0 %v3484
        %3518 = vmatpush1.bf16.xpose.msra.mxu0 %v3483
        %3519 = vmatprep.subr.bf16.mxu0 %v3482
        %3520 = vmatpush1.bf16.xpose.msra.mxu0 %v3481
        %3521 = vmatprep.subr.bf16.mxu0 %v3480
        %3522 = vmatpush1.bf16.xpose.msra.mxu0 %v3479
        %3523 = vmatprep.subr.bf16.mxu0 %v3478
        %3524 = vmatpush1.bf16.xpose.msra.mxu0 %v3477
        %3525 = vmatprep.subr.bf16.mxu0 0
        %3526 = vmatpush2.bf16.xpose.msra.mxu0 0
        %3527 = vmatprep.subr.bf16.mxu0 0
        %3528 = vmatpush2.bf16.xpose.msra.mxu0 0
        %3529 = vmatprep.subr.bf16.mxu0 0
        %3530 = vmatpush2.bf16.xpose.msra.mxu0 0
        %3531 = vmatprep.subr.bf16.mxu0 0
        %3532 = vmatpush2.bf16.xpose.msra.mxu0 0
        %3533 = vmatprep.subr.bf16.mxu0 0
        %3534 = vmatpush2.bf16.xpose.msra.mxu0 0
        %3535 = vmatprep.subr.bf16.mxu0 0
        %3536 = vmatpush2.bf16.xpose.msra.mxu0 0
        %3537 = vmatprep.subr.bf16.mxu0 0
        %3538 = vmatpush2.bf16.xpose.msra.mxu0 0
        %3539 = vmatprep.subr.bf16.mxu0 0
        %3540 = vmatpush2.bf16.xpose.msra.mxu0 0
        %3541 = vmatprep.mubr.bf16.mxu0 %v3412
        %3542 = vmatmul.mubr.bf16.gmra.mxu0 %v3411
        %v3543 = vpop.f32.mrf.mxu0
        %v3544 = vadd.f32 0.0, %v3543
        %v3545 = vpop.f32.mrf.mxu0
        %v3546 = vpop.f32.mrf.mxu0
        %v3547 = vpop.f32.mrf.mxu0
        %3548 = vdwg.mxu0
        %3549 = vst [vmem:[%s436] sm:$0xff] %v3544
        %s3550 = sand.u32 %s268, 1
        %s3551 = scalar_lea.sflag [#allocation11], %s3550
        %s3552 = sand.u32 %s268, 1
        %s3553 = smul.addr %s3552, 8
        %s3554 = scalar_lea.vmem [#allocation17], %s3553
        // Predicated region
        $region85: #{tpu_custom_call.1} parent=59 // pred_check
          %p3555 = pneg %p278
        $region86: #{tpu_custom_call.1} parent=59 // pred_check_branch
          %3557 = sbr.rel (%p3555) target = $region88
        $region87: #{tpu_custom_call.1} parent=59 // pred_region
          %s3559 = ssub.s32 128, 128
          %3560 = vsyncadd %s3551, %s3559
          %s3561 = smul.addr %s33, 2
          %s3562 = sadd.s32 %s34, %s3561
          %s3563 = smul.addr %s3562, 128
          %s3564 = scalar_lea.hbm %s10, %s3563
          %s3566 = sshll.u32 %s3554, 4
          %s3567 = int_to_ptr.vmem [resolvable:$true] %s3566
          %3569 = dma.vmem_to_hbm [thread:$0]  %s3567, 128, %s3564, %s3551
        $region88: #{tpu_custom_call.1} parent=59 // pred_fallthru
          _
      $region60: #{tpu_custom_call.1} parent=5 // pred_fallthru
        _
      %p3570 = scmp.le.s32.totalorder 2, %s24
      // Predicated region
      $region89: #{tpu_custom_call.1} parent=5 // pred_check
        %p3571 = pneg %p3570
      $region90: #{tpu_custom_call.1} parent=5 // pred_check_branch
        %3573 = sbr.rel (%p3571) target = $region92
      $region91: #{tpu_custom_call.1} parent=5 // pred_region
        %s3574 = ssub.s32 %s24, 2
        // Predicated region
        $region93: #{tpu_custom_call.1} parent=91 // pred_check
          %p3575 = pneg %p284
        $region94: #{tpu_custom_call.1} parent=91 // pred_check_branch
          %3577 = sbr.rel (%p3575) target = $region96
        $region95: #{tpu_custom_call.1} parent=91 // pred_region
          %s3578 = sand.u32 %s269, 1
          %s3579 = scalar_lea.sflag [#allocation11], %s3578
          %s3580 = sand.u32 %s269, 1
          %s3581 = smul.addr %s3580, 8
          %s3582 = scalar_lea.vmem [#allocation17], %s3581
          %3583 = dma.done %s3579, 128
        $region96: #{tpu_custom_call.1} parent=91 // pred_fallthru
          _
      $region92: #{tpu_custom_call.1} parent=5 // pred_fallthru
        _
    $region6: #{tpu_custom_call.1} parent=1 // loop_footer
      %s28 = sadd.s32 1, %s24
    $region7: #{tpu_custom_call.1} parent=1 // loop_footer_branch
      %23 = sbr.rel target = $region3
    $region8: #{tpu_custom_call.1} parent=1 // loop_exit
      _
    %3584 = vsyncpa [#allocation10], 1
    %s3585 = scalar_lea.sflag [#allocation10], 1
    %3586 = vsyncpa %s3585, 1
    %3587 = vsyncpa [#allocation13], 1
    %3588 = vsyncpa [#allocation16], 1
    %3589 = vsyncpa [#allocation11], 1
    %s3590 = scalar_lea.sflag [#allocation11], 1
    %3591 = vsyncpa %s3590, 1

</llo_original>
